<compile_context>
chip_gen: v7x
topology: tpu7x:2x2x1
jax: 0.10.0
libtpu: 0.0.40
codegen_flags: <defaults>
</compile_context>

<pallas_src>
import math
from functools import partial

import jax
import jax.numpy as jnp
from jax.experimental import pallas as pl
from jax.experimental.pallas import tpu as pltpu


# ---------------------------------------------------------------------------
# Head split / merge helpers (relayouts restricted to known-good classes:
# minor-dim reshape, 3-D swap of the two leading dims, leading-dims-only
# 4-D transpose that moves whole (S, hd) tiles).
# ---------------------------------------------------------------------------
def _split_heads(x, bblk, S, H, hd):
    # (bblk*S, H*hd) -> (bblk*H, S, hd)
    R = bblk * S
    x = x.reshape(R, H, hd)
    x = jnp.swapaxes(x, 0, 1)            # (H, R, hd)
    x = x.reshape(H, bblk, S, hd)
    x = jnp.transpose(x, (1, 0, 2, 3))   # (bblk, H, S, hd) — leading dims only
    return x.reshape(bblk * H, S, hd)


def _merge_heads(x, bblk, S, H, hd):
    # (bblk*H, S, hd) -> (bblk*S, H*hd)  (inverse of _split_heads)
    R = bblk * S
    x = x.reshape(bblk, H, S, hd)
    x = jnp.transpose(x, (1, 0, 2, 3))   # (H, bblk, S, hd) — leading dims only
    x = x.reshape(H, R, hd)
    x = jnp.swapaxes(x, 0, 1)            # (R, H, hd)
    return x.reshape(R, H * hd)


# ---------------------------------------------------------------------------
# Kernel: one grid step processes a block of `bblk` full batch elements.
# ---------------------------------------------------------------------------
def mhsa_kernel(q_ref, k_ref, v_ref, w_ref, b_ref, o_ref, *,
                num_heads: int, head_dim: int, compute_dtype, approx_recip: bool):
    """q/k/v_ref: (bblk, S, D) activations (compute_dtype)
       w_ref:     (4, D, D) stacked [Wq*scale, Wk, Wv, Wo], (in, out) layout
       b_ref:     (4, 1, D) stacked [bq*scale, bk, bv, bo], float32
       o_ref:     (bblk, S, D)
    """
    bblk, S, D = q_ref.shape
    H, hd = num_heads, head_dim
    R = bblk * S  # all rows of this block -> MXU M dimension

    # Flatten batch rows (leading-dim merge, no relayout).
    q = q_ref[...].reshape(R, D)
    k = k_ref[...].reshape(R, D)
    v = v_ref[...].reshape(R, D)

    # Projections at full M = bblk*S width; f32 accumulation on the MXU.
    # The 1/sqrt(model_dim) score scale is pre-folded into w_ref[0] / b_ref[0].
    qp = (jnp.dot(q, w_ref[0], preferred_element_type=jnp.float32)
          + b_ref[0]).astype(compute_dtype)
    kp = (jnp.dot(k, w_ref[1], preferred_element_type=jnp.float32)
          + b_ref[1]).astype(compute_dtype)
    vp = (jnp.dot(v, w_ref[2], preferred_element_type=jnp.float32)
          + b_ref[2]).astype(compute_dtype)

    # Head split: batched (bblk*H) attention, no per-head lane slicing.
    qh = _split_heads(qp, bblk, S, H, hd)
    kh = _split_heads(kp, bblk, S, H, hd)
    vh = _split_heads(vp, bblk, S, H, hd)

    # Scores for all (batch, head) pairs; contraction on the last dim (no .T).
    s = jnp.einsum('bqd,bkd->bqk', qh, kh,
                   preferred_element_type=jnp.float32)     # (bblk*H, S, S)

    # Numerically stable softmax. exp(s - max) in one expression keeps only
    # ~2 (bblk*H, S, S) f32 slabs live (not s / e / p separately).
    p = jnp.exp(s - jnp.max(s, axis=-1, keepdims=True))
    denom = jnp.sum(p, axis=-1, keepdims=True)
    if approx_recip:
        p = p * pl.reciprocal(denom, approx=True)          # EUP slot, ~free
    else:
        p = p / denom                                      # exact, for validation

    # TODO(synk): do_dropout=True path (dropout on attention probs) not implemented.
    # TODO(synk): mask branch not implemented (module default mask=None).
    # TODO(synk): replace materialized scores with flash-style KV tiling for large S.

    ho = jnp.einsum('bqk,bkd->bqd', p.astype(compute_dtype), vh,
                    preferred_element_type=jnp.float32)    # (bblk*H, S, hd)

    # Merge heads back to (R, D) for the output projection.
    concat = _merge_heads(ho.astype(compute_dtype), bblk, S, H, hd)

    out = jnp.dot(concat, w_ref[3], preferred_element_type=jnp.float32) + b_ref[3]
    o_ref[...] = out.reshape(bblk, S, D).astype(o_ref.dtype)


# ---------------------------------------------------------------------------
# One-time parameter preparation (hoisted out of the forward call).
# ---------------------------------------------------------------------------
def prepare_params(params, model_dim: int, compute_dtype=jnp.float32):
    """Transpose PyTorch (out,in) Linear weights to (in,out), fold the
    1/sqrt(model_dim) score scale into the Q projection (weight AND bias),
    cast to the matmul operand dtype and stack into (4,D,D) / (4,1,D).

    Note (documented per review): folding the scale before a bf16 cast rounds
    slightly differently than scaling the f32 scores post-matmul; accumulation
    and softmax stay f32 either way.
    """
    D = model_dim
    scale = 1.0 / math.sqrt(float(D))
    w_stack = jnp.stack([
        params["wq"].T * scale,
        params["wk"].T,
        params["wv"].T,
        params["wo"].T,
    ]).astype(compute_dtype)                                # (4, D, D)
    b_stack = jnp.stack([
        params["bq"] * scale,
        params["bk"],
        params["bv"],
        params["bo"],
    ]).reshape(4, 1, D).astype(jnp.float32)                 # (4, 1, D)
    return {"w": w_stack, "b": b_stack, "compute_dtype": compute_dtype}


# ---------------------------------------------------------------------------
# Block sizing / VMEM budget
# ---------------------------------------------------------------------------
def _vmem_estimate_bytes(bblk, S, D, H, compute_bytes, io_bytes):
    """Rough per-grid-step VMEM footprint (for block sizing + compiler budget)."""
    R = bblk * S
    act_in = 3 * 2 * R * D * compute_bytes              # q/k/v blocks, double-buffered
    act_out = 2 * R * D * io_bytes                       # output block, double-buffered
    weights = 4 * D * D * compute_bytes + 4 * D * 4      # single resident copy
    proj = 3 * R * D * (4 + compute_bytes)               # qp/kp/vp + head-split copies
    scores = 2 * bblk * H * S * S * 4                    # ~2 live (bblk*H,S,S) f32 slabs
    ctx = R * D * (4 + compute_bytes)                    # context + merged concat
    return act_in + act_out + weights + proj + scores + ctx


def _choose_batch_block(B, S, D, H, compute_bytes, io_bytes,
                        target_rows=512, vmem_budget=36 * 1024 * 1024):
    """Largest divisor of B whose block keeps MXU M (= bblk*S) near target_rows
    and fits the VMEM budget.  Small B*S collapses into a single grid step."""
    best = 1
    for cand in range(1, B + 1):
        if B % cand:
            continue
        if cand > 1 and cand * S > target_rows:
            continue
        if cand > 1 and _vmem_estimate_bytes(cand, S, D, H,
                                             compute_bytes, io_bytes) > vmem_budget:
            continue
        best = cand
    return best


# ---------------------------------------------------------------------------
# Public wrapper — mirrors MultiHeadSelfAttentionModule.forward(value, key, query)
# ---------------------------------------------------------------------------
def multi_head_self_attention(value, key, query, prepared, num_heads: int,
                              do_dropout: bool = False, mask=None,
                              approx_recip: bool = True):
    """value/key/query: (B, S, D).  `prepared` comes from prepare_params().
    bf16 compute_dtype is recommended on v5e, v6e and v7x (accumulation and
    softmax stay f32)."""
    if do_dropout:
        raise NotImplementedError("do_dropout=True is not implemented in the Pallas kernel")
    if mask is not None:
        raise NotImplementedError("mask is not implemented in the Pallas kernel")

    B, S, D = query.shape
    if D % num_heads:
        raise ValueError("model_dimensions must be divisible by number of heads")
    head_dim = D // num_heads
    compute_dtype = prepared["compute_dtype"]
    cbytes = jnp.dtype(compute_dtype).itemsize
    obytes = jnp.dtype(query.dtype).itemsize

    bblk = _choose_batch_block(B, S, D, num_heads, cbytes, obytes)
    grid = (B // bblk,)

    # Computed VMEM budget: footprint + margin, >= 32 MiB default scoped limit,
    # capped at 56 MiB to stay safely below v7x's 64 MiB physical VMEM.
    est = _vmem_estimate_bytes(bblk, S, D, num_heads, cbytes, obytes)
    vmem_limit = int(min(max(est * 5 // 4 + (8 << 20), 32 << 20), 56 << 20))

    q_in = query.astype(compute_dtype)
    k_in = key.astype(compute_dtype)
    v_in = value.astype(compute_dtype)

    act_spec = pl.BlockSpec((bblk, S, D), lambda i: (i, 0, 0))
    # Whole weight/bias stacks resident in VMEM (constant across the grid,
    # single copy — not double-buffered like pipelined blocks).
    resident_spec = pl.BlockSpec(memory_space=pltpu.MemorySpace.VMEM)

    kernel = partial(mhsa_kernel, num_heads=num_heads, head_dim=head_dim,
                     compute_dtype=compute_dtype, approx_recip=approx_recip)

    return pl.pallas_call(
        kernel,
        out_shape=jax.ShapeDtypeStruct((B, S, D), query.dtype),
        grid=grid,
        in_specs=[act_spec, act_spec, act_spec, resident_spec, resident_spec],
        out_specs=act_spec,
        compiler_params=pltpu.CompilerParams(
            # NOTE: on v7x (2 TensorCores) keep B // bblk even where possible
            # so both cores get work on this parallel axis.
            dimension_semantics=("parallel",),
            vmem_limit_bytes=vmem_limit,
        ),
        # Binding: query -> q_ref, key -> k_ref, value -> v_ref (the module
        # computes Q from `query`, K from `key`, V from `value`).
    )(q_in, k_in, v_in, prepared["w"], prepared["b"])


# ---------------------------------------------------------------------------
# Pure-JAX reference (full-precision matmuls so the tight check is meaningful).
# ---------------------------------------------------------------------------
def reference_mhsa(value, key, query, params, num_heads: int,
                   precision=jax.lax.Precision.HIGHEST):
    B, S, D = query.shape
    hd = D // num_heads

    def lin(x, w, b):
        return jnp.einsum('bsi,oi->bso', x, w, precision=precision) + b

    q = lin(query, params["wq"], params["bq"]).reshape(B, S, num_heads, hd).transpose(0, 2, 1, 3)
    k = lin(key, params["wk"], params["bk"]).reshape(B, S, num_heads, hd).transpose(0, 2, 1, 3)
    v = lin(value, params["wv"], params["bv"]).reshape(B, S, num_heads, hd).transpose(0, 2, 1, 3)

    scores = jnp.einsum("bhqd,bhkd->bhqk", q, k, precision=precision) / math.sqrt(D)
    scores = jax.nn.softmax(scores, axis=-1)
    out = jnp.einsum("bhqk,bhkd->bhqd", scores, v, precision=precision)
    out = out.transpose(0, 2, 1, 3).reshape(B, S, D)
    return lin(out, params["wo"], params["bo"])


def init_params(rng, model_dim):
    """Deterministic init mimicking nn.Linear default (uniform +-1/sqrt(fan_in))."""
    bound = 1.0 / math.sqrt(model_dim)
    keys = jax.random.split(rng, 8)
    p = {}
    for i, (nw, nb) in enumerate(zip(["wq", "wk", "wv", "wo"],
                                     ["bq", "bk", "bv", "bo"])):
        p[nw] = jax.random.uniform(keys[2 * i], (model_dim, model_dim),
                                   jnp.float32, -bound, bound)
        p[nb] = jax.random.uniform(keys[2 * i + 1], (model_dim,),
                                   jnp.float32, -bound, bound)
    return p


if __name__ == "__main__":
    B, S, D = 2, 8, 32
    NUM_HEADS = 8  # head_dim = 4

    root = jax.random.PRNGKey(0)
    k_param, k_q, k_k, k_v = jax.random.split(root, 4)

    params = init_params(k_param, D)
    query = jax.random.normal(k_q, (B, S, D), jnp.float32)
    key = jax.random.normal(k_k, (B, S, D), jnp.float32)
    value = jax.random.normal(k_v, (B, S, D), jnp.float32)

    ref = reference_mhsa(value, key, query, params, NUM_HEADS)

    # 1) f32 operands + exact softmax divide: tight-tolerance validation
    #    (guards against the approx reciprocal hiding real regressions).
    prep_f32 = prepare_params(params, D, compute_dtype=jnp.float32)
    out_exact = jax.block_until_ready(
        multi_head_self_attention(value, key, query, prep_f32, NUM_HEADS,
                                  approx_recip=False))
    assert out_exact.shape == (B, S, D)
    assert jnp.allclose(out_exact, ref, atol=2e-3, rtol=2e-3), (
        f"exact-f32 max abs diff {float(jnp.max(jnp.abs(out_exact - ref)))}")

    # 2) f32 operands + EUP approximate reciprocal (production f32 path).
    out_f32 = jax.block_until_ready(
        multi_head_self_attention(value, key, query, prep_f32, NUM_HEADS))
    assert jnp.allclose(out_f32, ref, atol=1e-2, rtol=1e-2), (
        f"approx-f32 max abs diff {float(jnp.max(jnp.abs(out_f32 - ref)))}")

    # 3) bf16 matmul operands (recommended on v5e, v6e AND v7x); softmax and
    #    all accumulation remain f32.
    prep_bf16 = prepare_params(params, D, compute_dtype=jnp.bfloat16)
    out_bf16 = jax.block_until_ready(
        multi_head_self_attention(value, key, query, prep_bf16, NUM_HEADS))
    assert jnp.allclose(out_bf16, ref, atol=5e-2, rtol=5e-2), (
        f"bf16 max abs diff {float(jnp.max(jnp.abs(out_bf16 - ref)))}")

    print("KERNEL_OK")
</pallas_src>

<mosaic_0001>
module attributes {stable_mosaic.version = 11 : i64} {
  func.func @mhsa_kernel(%arg0: i32, %arg1: memref<2x8x32xf32, #tpu.memory_space<vmem>>, %arg2: memref<2x8x32xf32, #tpu.memory_space<vmem>>, %arg3: memref<2x8x32xf32, #tpu.memory_space<vmem>>, %arg4: memref<4x32x32xf32, #tpu.memory_space<vmem>>, %arg5: memref<4x1x32xf32, #tpu.memory_space<vmem>>, %arg6: memref<2x8x32xf32, #tpu.memory_space<vmem>>) attributes {dimension_semantics = [#tpu.dimension_semantics<parallel>], iteration_bounds = array<i64: 1>, scalar_prefetch = 0 : i64, scratch_operands = 0 : i64, tpu.core_type = #tpu.core_type<tc>, window_params = [{transform_indices = @transform_0, window_bounds = array<i64: 2, 8, 32>}, {transform_indices = @transform_1, window_bounds = array<i64: 2, 8, 32>}, {transform_indices = @transform_2, window_bounds = array<i64: 2, 8, 32>}, {pipeline_mode = #tpu.pipeline_mode<synchronous>, transform_indices = @transform_3, window_bounds = array<i64: 4, 32, 32>}, {pipeline_mode = #tpu.pipeline_mode<synchronous>, transform_indices = @transform_4, window_bounds = array<i64: 4, 1, 32>}, {transform_indices = @transform_5, window_bounds = array<i64: 2, 8, 32>}]} {
    %c0 = arith.constant 0 : index
    %c0_0 = arith.constant 0 : index
    %c0_1 = arith.constant 0 : index
    %0 = vector.load %arg1[%c0, %c0_0, %c0_1] : memref<2x8x32xf32, #tpu.memory_space<vmem>>, vector<2x8x32xf32>
    %1 = vector.shape_cast %0 : vector<2x8x32xf32> to vector<16x32xf32>
    %c0_2 = arith.constant 0 : index
    %c0_3 = arith.constant 0 : index
    %c0_4 = arith.constant 0 : index
    %2 = vector.load %arg2[%c0_2, %c0_3, %c0_4] : memref<2x8x32xf32, #tpu.memory_space<vmem>>, vector<2x8x32xf32>
    %3 = vector.shape_cast %2 : vector<2x8x32xf32> to vector<16x32xf32>
    %c0_5 = arith.constant 0 : index
    %c0_6 = arith.constant 0 : index
    %c0_7 = arith.constant 0 : index
    %4 = vector.load %arg3[%c0_5, %c0_6, %c0_7] : memref<2x8x32xf32, #tpu.memory_space<vmem>>, vector<2x8x32xf32>
    %5 = vector.shape_cast %4 : vector<2x8x32xf32> to vector<16x32xf32>
    %c0_8 = arith.constant 0 : index
    %c0_9 = arith.constant 0 : index
    %c0_10 = arith.constant 0 : index
    %6 = vector.load %arg4[%c0_8, %c0_9, %c0_10] : memref<4x32x32xf32, #tpu.memory_space<vmem>>, vector<1x32x32xf32>
    %7 = vector.shape_cast %6 : vector<1x32x32xf32> to vector<32x32xf32>
    %cst = arith.constant dense<0.000000e+00> : vector<16x32xf32>
    %8 = tpu.matmul %1, %7, %cst {dimension_numbers = #tpu.dot_dimension_numbers<[1], [0], [0], [1], [0, 0, 1, 1], [], []>} : vector<16x32xf32>, vector<32x32xf32>, vector<16x32xf32> -> vector<16x32xf32>
    %c0_11 = arith.constant 0 : index
    %c0_12 = arith.constant 0 : index
    %c0_13 = arith.constant 0 : index
    %9 = vector.load %arg5[%c0_11, %c0_12, %c0_13] : memref<4x1x32xf32, #tpu.memory_space<vmem>>, vector<1x1x32xf32>
    %10 = vector.shape_cast %9 : vector<1x1x32xf32> to vector<1x32xf32>
    %11 = vector.broadcast %10 : vector<1x32xf32> to vector<16x32xf32>
    %12 = arith.addf %8, %11 : vector<16x32xf32>
    %c1 = arith.constant 1 : index
    %c0_14 = arith.constant 0 : index
    %c0_15 = arith.constant 0 : index
    %13 = vector.load %arg4[%c1, %c0_14, %c0_15] : memref<4x32x32xf32, #tpu.memory_space<vmem>>, vector<1x32x32xf32>
    %14 = vector.shape_cast %13 : vector<1x32x32xf32> to vector<32x32xf32>
    %cst_16 = arith.constant dense<0.000000e+00> : vector<16x32xf32>
    %15 = tpu.matmul %3, %14, %cst_16 {dimension_numbers = #tpu.dot_dimension_numbers<[1], [0], [0], [1], [0, 0, 1, 1], [], []>} : vector<16x32xf32>, vector<32x32xf32>, vector<16x32xf32> -> vector<16x32xf32>
    %c1_17 = arith.constant 1 : index
    %c0_18 = arith.constant 0 : index
    %c0_19 = arith.constant 0 : index
    %16 = vector.load %arg5[%c1_17, %c0_18, %c0_19] : memref<4x1x32xf32, #tpu.memory_space<vmem>>, vector<1x1x32xf32>
    %17 = vector.shape_cast %16 : vector<1x1x32xf32> to vector<1x32xf32>
    %18 = vector.broadcast %17 : vector<1x32xf32> to vector<16x32xf32>
    %19 = arith.addf %15, %18 : vector<16x32xf32>
    %c2 = arith.constant 2 : index
    %c0_20 = arith.constant 0 : index
    %c0_21 = arith.constant 0 : index
    %20 = vector.load %arg4[%c2, %c0_20, %c0_21] : memref<4x32x32xf32, #tpu.memory_space<vmem>>, vector<1x32x32xf32>
    %21 = vector.shape_cast %20 : vector<1x32x32xf32> to vector<32x32xf32>
    %cst_22 = arith.constant dense<0.000000e+00> : vector<16x32xf32>
    %22 = tpu.matmul %5, %21, %cst_22 {dimension_numbers = #tpu.dot_dimension_numbers<[1], [0], [0], [1], [0, 0, 1, 1], [], []>} : vector<16x32xf32>, vector<32x32xf32>, vector<16x32xf32> -> vector<16x32xf32>
    %c2_23 = arith.constant 2 : index
    %c0_24 = arith.constant 0 : index
    %c0_25 = arith.constant 0 : index
    %23 = vector.load %arg5[%c2_23, %c0_24, %c0_25] : memref<4x1x32xf32, #tpu.memory_space<vmem>>, vector<1x1x32xf32>
    %24 = vector.shape_cast %23 : vector<1x1x32xf32> to vector<1x32xf32>
    %25 = vector.broadcast %24 : vector<1x32xf32> to vector<16x32xf32>
    %26 = arith.addf %22, %25 : vector<16x32xf32>
    %27 = vector.shape_cast %12 : vector<16x32xf32> to vector<16x8x4xf32>
    %28 = tpu.transpose %27, [1, 0, 2] : vector<16x8x4xf32> -> vector<8x16x4xf32>
    %29 = vector.shape_cast %28 : vector<8x16x4xf32> to vector<8x2x8x4xf32>
    %30 = tpu.transpose %29, [1, 0, 2, 3] : vector<8x2x8x4xf32> -> vector<2x8x8x4xf32>
    %31 = vector.shape_cast %30 : vector<2x8x8x4xf32> to vector<16x8x4xf32>
    %32 = vector.shape_cast %19 : vector<16x32xf32> to vector<16x8x4xf32>
    %33 = tpu.transpose %32, [1, 0, 2] : vector<16x8x4xf32> -> vector<8x16x4xf32>
    %34 = vector.shape_cast %33 : vector<8x16x4xf32> to vector<8x2x8x4xf32>
    %35 = tpu.transpose %34, [1, 0, 2, 3] : vector<8x2x8x4xf32> -> vector<2x8x8x4xf32>
    %36 = vector.shape_cast %35 : vector<2x8x8x4xf32> to vector<16x8x4xf32>
    %37 = vector.shape_cast %26 : vector<16x32xf32> to vector<16x8x4xf32>
    %38 = tpu.transpose %37, [1, 0, 2] : vector<16x8x4xf32> -> vector<8x16x4xf32>
    %39 = vector.shape_cast %38 : vector<8x16x4xf32> to vector<8x2x8x4xf32>
    %40 = tpu.transpose %39, [1, 0, 2, 3] : vector<8x2x8x4xf32> -> vector<2x8x8x4xf32>
    %41 = vector.shape_cast %40 : vector<2x8x8x4xf32> to vector<16x8x4xf32>
    "tpu.trace_start"() <{level = 10 : i32, message = "bqd,bkd->bqk"}> : () -> ()
    %cst_26 = arith.constant dense<0.000000e+00> : vector<16x8x8xf32>
    %42 = tpu.matmul %31, %36, %cst_26 {dimension_numbers = #tpu.dot_dimension_numbers<[2], [2], [1], [1], [0, 0, 0, 1, 1, 1], [0], [0]>} : vector<16x8x4xf32>, vector<16x8x4xf32>, vector<16x8x8xf32> -> vector<16x8x8xf32>
    "tpu.trace_stop"() : () -> ()
    %cst_27 = arith.constant dense<0xFF800000> : vector<16x8xf32>
    %43 = vector.multi_reduction <maximumf>, %42, %cst_27 [2] : vector<16x8x8xf32> to vector<16x8xf32>
    %44 = vector.shape_cast %43 : vector<16x8xf32> to vector<16x8x1xf32>
    %45 = vector.broadcast %44 : vector<16x8x1xf32> to vector<16x8x8xf32>
    %46 = arith.subf %42, %45 : vector<16x8x8xf32>
    %47 = math.exp %46 : vector<16x8x8xf32>
    %cst_28 = arith.constant dense<0.000000e+00> : vector<16x8xf32>
    %48 = vector.multi_reduction <add>, %47, %cst_28 [2] : vector<16x8x8xf32> to vector<16x8xf32>
    %49 = vector.shape_cast %48 : vector<16x8xf32> to vector<16x8x1xf32>
    %50 = vector.broadcast %49 : vector<16x8x1xf32> to vector<16x8x8xf32>
    %51 = arith.divf %47, %50 : vector<16x8x8xf32>
    "tpu.trace_start"() <{level = 10 : i32, message = "bqk,bkd->bqd"}> : () -> ()
    %cst_29 = arith.constant dense<0.000000e+00> : vector<16x8x4xf32>
    %52 = tpu.matmul %51, %41, %cst_29 {dimension_numbers = #tpu.dot_dimension_numbers<[2], [1], [1], [2], [0, 0, 0, 1, 1, 2], [0], [0]>} : vector<16x8x8xf32>, vector<16x8x4xf32>, vector<16x8x4xf32> -> vector<16x8x4xf32>
    "tpu.trace_stop"() : () -> ()
    %53 = vector.shape_cast %52 : vector<16x8x4xf32> to vector<2x8x8x4xf32>
    %54 = tpu.transpose %53, [1, 0, 2, 3] : vector<2x8x8x4xf32> -> vector<8x2x8x4xf32>
    %55 = vector.shape_cast %54 : vector<8x2x8x4xf32> to vector<8x16x4xf32>
    %56 = tpu.transpose %55, [1, 0, 2] : vector<8x16x4xf32> -> vector<16x8x4xf32>
    %57 = vector.shape_cast %56 : vector<16x8x4xf32> to vector<16x32xf32>
    %c3 = arith.constant 3 : index
    %c0_30 = arith.constant 0 : index
    %c0_31 = arith.constant 0 : index
    %58 = vector.load %arg4[%c3, %c0_30, %c0_31] : memref<4x32x32xf32, #tpu.memory_space<vmem>>, vector<1x32x32xf32>
    %59 = vector.shape_cast %58 : vector<1x32x32xf32> to vector<32x32xf32>
    %cst_32 = arith.constant dense<0.000000e+00> : vector<16x32xf32>
    %60 = tpu.matmul %57, %59, %cst_32 {dimension_numbers = #tpu.dot_dimension_numbers<[1], [0], [0], [1], [0, 0, 1, 1], [], []>} : vector<16x32xf32>, vector<32x32xf32>, vector<16x32xf32> -> vector<16x32xf32>
    %c3_33 = arith.constant 3 : index
    %c0_34 = arith.constant 0 : index
    %c0_35 = arith.constant 0 : index
    %61 = vector.load %arg5[%c3_33, %c0_34, %c0_35] : memref<4x1x32xf32, #tpu.memory_space<vmem>>, vector<1x1x32xf32>
    %62 = vector.shape_cast %61 : vector<1x1x32xf32> to vector<1x32xf32>
    %63 = vector.broadcast %62 : vector<1x32xf32> to vector<16x32xf32>
    %64 = arith.addf %60, %63 : vector<16x32xf32>
    %65 = vector.shape_cast %64 : vector<16x32xf32> to vector<2x8x32xf32>
    %c0_36 = arith.constant 0 : index
    %c0_37 = arith.constant 0 : index
    %c0_38 = arith.constant 0 : index
    %66 = vector.load %arg6[%c0_36, %c0_37, %c0_38] : memref<2x8x32xf32, #tpu.memory_space<vmem>>, vector<2x8x32xf32>
    tpu.vector_store %arg6[%c0_36, %c0_37, %c0_38], %65 {strides = array<i32>} : memref<2x8x32xf32, #tpu.memory_space<vmem>>, vector<2x8x32xf32>,
    return
  }
  func.func @transform_0(%arg0: i32) -> (i32, i32, i32) {
    %c0_i32 = arith.constant 0 : i32
    %c0_i32_0 = arith.constant 0 : i32
    %c0_i32_1 = arith.constant 0 : i32
    return %arg0, %c0_i32, %c0_i32_0 : i32, i32, i32
  }
  func.func @transform_1(%arg0: i32) -> (i32, i32, i32) {
    %c0_i32 = arith.constant 0 : i32
    %c0_i32_0 = arith.constant 0 : i32
    %c0_i32_1 = arith.constant 0 : i32
    return %arg0, %c0_i32, %c0_i32_0 : i32, i32, i32
  }
  func.func @transform_2(%arg0: i32) -> (i32, i32, i32) {
    %c0_i32 = arith.constant 0 : i32
    %c0_i32_0 = arith.constant 0 : i32
    %c0_i32_1 = arith.constant 0 : i32
    return %arg0, %c0_i32, %c0_i32_0 : i32, i32, i32
  }
  func.func @transform_3(%arg0: i32) -> (i32, i32, i32) {
    %c0_i32 = arith.constant 0 : i32
    %c0_i32_0 = arith.constant 0 : i32
    %c0_i32_1 = arith.constant 0 : i32
    %c0_i32_2 = arith.constant 0 : i32
    return %c0_i32, %c0_i32_0, %c0_i32_1 : i32, i32, i32
  }
  func.func @transform_4(%arg0: i32) -> (i32, i32, i32) {
    %c0_i32 = arith.constant 0 : i32
    %c0_i32_0 = arith.constant 0 : i32
    %c0_i32_1 = arith.constant 0 : i32
    %c0_i32_2 = arith.constant 0 : i32
    return %c0_i32, %c0_i32_0, %c0_i32_1 : i32, i32, i32
  }
  func.func @transform_5(%arg0: i32) -> (i32, i32, i32) {
    %c0_i32 = arith.constant 0 : i32
    %c0_i32_0 = arith.constant 0 : i32
    %c0_i32_1 = arith.constant 0 : i32
    return %arg0, %c0_i32, %c0_i32_0 : i32, i32, i32
  }
}

</mosaic_0001>

<llo_original>
// kernel: tpu_custom_call.1
$region0: #{tpu_custom_call.1}
  #allocation0 [shape = 'u32[]', space=smem, size = 0x4, offset = 0x4, fixed_abs, tag = 'smem constant byte address 0x4 - core index']
  #allocation1 [shape = 'u32[144,128]{1,0:T(1,128)}', space=vmem, size = 0x12000, scoped, tag = 'internal scratch']
  %s0 = inlined_call_operand.hbm [shape: f32[2,8,32], index: 0, kind: input, shape index: {}]
  %s1 = inlined_call_operand.hbm [shape: f32[2,8,32], index: 1, kind: input, shape index: {}]
  %s2 = inlined_call_operand.hbm [shape: f32[2,8,32], index: 2, kind: input, shape index: {}]
  %s3 = inlined_call_operand.hbm [shape: f32[4,32,32], index: 3, kind: input, shape index: {}]
  %s4 = inlined_call_operand.vmem [shape: f32[4,1,32], index: 4, kind: input, shape index: {}]
  %s5 = inlined_call_operand.hbm [shape: f32[2,8,32], index: 5, kind: output, shape index: {}]
  %s6 = sld [smem:[#allocation0]]
  $region46: #{tpu_custom_call.1} parent=0
    _
  %s8 = ssub.s32 1, %s6
  %s9 = scalar_select 0, %s8, %s6
  $region1: #{tpu_custom_call.1} parent=0
    #allocation2 [shape = 'u8[8192]{0}', space=vmem, size = 0x2000, scoped, tag = 'input window, operand 0, single buffered']
    #allocation3 [shape = 's32[1]{0}', space=sflag, size = 0x4, scoped, tag = 'scoped memory for tpu_custom_call.1']
    #allocation4 [shape = 's32[1]{0}', space=sflag, size = 0x4, scoped, tag = 'scoped memory for tpu_custom_call.1']
    #allocation5 [shape = 'u8[8192]{0}', space=vmem, size = 0x2000, scoped, tag = 'input window, operand 1, single buffered']
    #allocation6 [shape = 's32[1]{0}', space=sflag, size = 0x4, scoped, tag = 'scoped memory for tpu_custom_call.1']
    #allocation7 [shape = 'u8[8192]{0}', space=vmem, size = 0x2000, scoped, tag = 'input window, operand 2, single buffered']
    #allocation8 [shape = 'u8[65536]{0}', space=vmem, size = 0x10000, scoped, tag = 'input window, operand 3, single buffered']
    #allocation9 [shape = 's32[1]{0}', space=sflag, size = 0x4, scoped, tag = 'scoped memory for tpu_custom_call.1']
    #allocation10 [shape = 'u8[8192]{0}', space=vmem, size = 0x2000, scoped, tag = 'output window, operand 0, single buffered']
    %10 = vsyncpa [#allocation3], 0
    %11 = vsyncpa [#allocation6], 0
    %12 = vsyncpa [#allocation9], 0
    %13 = vsyncpa [#allocation4], 0
    // Predicated region
    $region2: #{tpu_custom_call.1} parent=1 // pred_check
      _
    $region3: #{tpu_custom_call.1} parent=1 // pred_check_branch
      %15 = sbr.rel (0) target = $region5
    $region4: #{tpu_custom_call.1} parent=1 // pred_region
      %s17 = ssub.s32 256, 256
      %18 = vsyncadd [#allocation3], %s17
      %s19 = sshll.u32 [#allocation2], 4
      %s20 = int_to_ptr.vmem [resolvable:$true] %s19
      %25 = dma.hbm_to_vmem [thread:$0]  %s0, 256, %s20, [#allocation3], 128, 128, 8
    $region5: #{tpu_custom_call.1} parent=1 // pred_fallthru
      _
    // Predicated region
    $region6: #{tpu_custom_call.1} parent=1 // pred_check
      _
    $region7: #{tpu_custom_call.1} parent=1 // pred_check_branch
      %27 = sbr.rel (0) target = $region9
    $region8: #{tpu_custom_call.1} parent=1 // pred_region
      %s29 = ssub.s32 256, 256
      %30 = vsyncadd [#allocation6], %s29
      %s31 = sshll.u32 [#allocation5], 4
      %s32 = int_to_ptr.vmem [resolvable:$true] %s31
      %37 = dma.hbm_to_vmem [thread:$0]  %s1, 256, %s32, [#allocation6], 128, 128, 8
    $region9: #{tpu_custom_call.1} parent=1 // pred_fallthru
      _
    // Predicated region
    $region10: #{tpu_custom_call.1} parent=1 // pred_check
      _
    $region11: #{tpu_custom_call.1} parent=1 // pred_check_branch
      %39 = sbr.rel (0) target = $region13
    $region12: #{tpu_custom_call.1} parent=1 // pred_region
      %s41 = ssub.s32 256, 256
      %42 = vsyncadd [#allocation6], %s41
      %s43 = sshll.u32 [#allocation7], 4
      %s44 = int_to_ptr.vmem [resolvable:$true] %s43
      %49 = dma.hbm_to_vmem [thread:$0]  %s2, 256, %s44, [#allocation6], 128, 128, 8
    $region13: #{tpu_custom_call.1} parent=1 // pred_fallthru
      _
    // Predicated region
    $region14: #{tpu_custom_call.1} parent=1 // pred_check
      _
    $region15: #{tpu_custom_call.1} parent=1 // pred_check_branch
      %51 = sbr.rel (0) target = $region17
    $region16: #{tpu_custom_call.1} parent=1 // pred_region
      %s53 = ssub.s32 2048, 2048
      %54 = vsyncadd [#allocation9], %s53
      %s55 = sshll.u32 [#allocation8], 4
      %s56 = int_to_ptr.vmem [resolvable:$true] %s55
      %61 = dma.hbm_to_vmem [thread:$0]  %s3, 2048, %s56, [#allocation9], 128, 128, 8
    $region17: #{tpu_custom_call.1} parent=1 // pred_fallthru
      _
    // Predicated region
    $region18: #{tpu_custom_call.1} parent=1 // pred_check
      _
    $region19: #{tpu_custom_call.1} parent=1 // pred_check_branch
      %63 = sbr.rel (0) target = $region21
    $region20: #{tpu_custom_call.1} parent=1 // pred_region
      _
    $region21: #{tpu_custom_call.1} parent=1 // pred_fallthru
      _
    // Predicated region
    $region22: #{tpu_custom_call.1} parent=1 // pred_check
      _
    $region23: #{tpu_custom_call.1} parent=1 // pred_check_branch
      %65 = sbr.rel (0) target = $region25
    $region24: #{tpu_custom_call.1} parent=1 // pred_region
      %66 = dma.done [#allocation3], 256
    $region25: #{tpu_custom_call.1} parent=1 // pred_fallthru
      _
    // Predicated region
    $region26: #{tpu_custom_call.1} parent=1 // pred_check
      _
    $region27: #{tpu_custom_call.1} parent=1 // pred_check_branch
      %68 = sbr.rel (0) target = $region29
    $region28: #{tpu_custom_call.1} parent=1 // pred_region
      %69 = dma.done [#allocation6], 256
    $region29: #{tpu_custom_call.1} parent=1 // pred_fallthru
      _
    // Predicated region
    $region30: #{tpu_custom_call.1} parent=1 // pred_check
      _
    $region31: #{tpu_custom_call.1} parent=1 // pred_check_branch
      %71 = sbr.rel (0) target = $region33
    $region32: #{tpu_custom_call.1} parent=1 // pred_region
      %72 = dma.done [#allocation6], 256
    $region33: #{tpu_custom_call.1} parent=1 // pred_fallthru
      _
    // Predicated region
    $region34: #{tpu_custom_call.1} parent=1 // pred_check
      _
    $region35: #{tpu_custom_call.1} parent=1 // pred_check_branch
      %74 = sbr.rel (0) target = $region37
    $region36: #{tpu_custom_call.1} parent=1 // pred_region
      %75 = dma.done [#allocation9], 2048
    $region37: #{tpu_custom_call.1} parent=1 // pred_fallthru
      _
    %v76 = vld [vmem:[#allocation2] sm:$0xff]
    %v77 = vld [vmem:[#allocation2 + $0x8] sm:$0xff]
    %v78 = vld [vmem:[#allocation5] sm:$0xff]
    %v79 = vld [vmem:[#allocation5 + $0x8] sm:$0xff]
    %v80 = vld [vmem:[#allocation7] sm:$0xff]
    %v81 = vld [vmem:[#allocation7 + $0x8] sm:$0xff]
    %v82 = vld [vmem:[#allocation8] sm:$0xff]
    %v83 = vld [vmem:[#allocation8 + $0x8] sm:$0xff]
    %v84 = vld [vmem:[#allocation8 + $0x10] sm:$0xff]
    %v85 = vld [vmem:[#allocation8 + $0x18] sm:$0xff]
    %v86 = vld [vmem:[%s4] sm:$0x1]
    %v88 = vlaneseq
    %v89 = vshrl.u32 %v88, 7
    %v90 = vsub.s32 0, %v89
    %v91 = vrot.slane %v86, %v90
    %vm93 = vcmask 261120
    %v95 = vsel %vm93, %v76, 0
    %v98 = vsel %vm93, %v77, 0
    %100 = vmatprep.subr.mxu0 0.0
    %101 = vmatpush1.msra.mxu0 %v82
    %102 = vmatprep.subr.mxu0 0.0
    %103 = vmatpush1.msra.mxu0 %v83
    %104 = vmatprep.subr.mxu0 0.0
    %105 = vmatpush1.msra.mxu0 %v84
    %106 = vmatprep.subr.mxu0 0.0
    %107 = vmatpush1.msra.mxu0 %v85
    %108 = vmatprep.subr.mxu0 0.0
    %109 = vmatpush1.msra.mxu0 0.0
    %110 = vmatprep.subr.mxu0 0.0
    %111 = vmatpush1.msra.mxu0 0.0
    %112 = vmatprep.subr.mxu0 0.0
    %113 = vmatpush1.msra.mxu0 0.0
    %114 = vmatprep.subr.mxu0 0.0
    %115 = vmatpush1.msra.mxu0 0.0
    %116 = vmatprep.subr.mxu0 0.0
    %117 = vmatpush1.msra.mxu0 0.0
    %118 = vmatprep.subr.mxu0 0.0
    %119 = vmatpush1.msra.mxu0 0.0
    %120 = vmatprep.subr.mxu0 0.0
    %121 = vmatpush1.msra.mxu0 0.0
    %122 = vmatprep.subr.mxu0 0.0
    %123 = vmatpush1.msra.mxu0 0.0
    %124 = vmatprep.subr.mxu0 0.0
    %125 = vmatpush1.msra.mxu0 0.0
    %126 = vmatprep.subr.mxu0 0.0
    %127 = vmatpush1.msra.mxu0 0.0
    %128 = vmatprep.subr.mxu0 0.0
    %129 = vmatpush1.msra.mxu0 0.0
    %130 = vmatprep.subr.mxu0 0.0
    %131 = vmatpush1.msra.mxu0 0.0
    %132 = vmatprep.subr.mxu0 0.0
    %133 = vmatpush1.msra.mxu0 0.0
    %134 = vmatprep.subr.mxu0 0.0
    %135 = vmatpush1.msra.mxu0 0.0
    %136 = vmatprep.subr.mxu0 0.0
    %137 = vmatpush1.msra.mxu0 0.0
    %138 = vmatprep.subr.mxu0 0.0
    %139 = vmatpush1.msra.mxu0 0.0
    %140 = vmatprep.subr.mxu0 0.0
    %141 = vmatpush1.msra.mxu0 0.0
    %142 = vmatprep.subr.mxu0 0.0
    %143 = vmatpush1.msra.mxu0 0.0
    %144 = vmatprep.subr.mxu0 0.0
    %145 = vmatpush1.msra.mxu0 0.0
    %146 = vmatprep.subr.mxu0 0.0
    %147 = vmatpush1.msra.mxu0 0.0
    %148 = vmatprep.subr.mxu0 0.0
    %149 = vmatpush1.msra.mxu0 0.0
    %150 = vmatprep.subr.mxu0 0.0
    %151 = vmatpush1.msra.mxu0 0.0
    %152 = vmatprep.subr.mxu0 0.0
    %153 = vmatpush1.msra.mxu0 0.0
    %154 = vmatprep.subr.mxu0 0.0
    %155 = vmatpush1.msra.mxu0 0.0
    %156 = vmatprep.subr.mxu0 0.0
    %157 = vmatpush1.msra.mxu0 0.0
    %158 = vmatprep.subr.mxu0 0.0
    %159 = vmatpush1.msra.mxu0 0.0
    %160 = vmatprep.subr.mxu0 0.0
    %161 = vmatpush1.msra.mxu0 0.0
    %162 = vmatprep.subr.mxu0 0.0
    %163 = vmatpush1.msra.mxu0 0.0
    %164 = vmatprep.mubr.f32.mxu0 0.0
    %165 = vmatmul.mubr.f32.gmra.mrb[0].mxu0 %v95
    %v166 = vpop.f32.mrb[0].mxu0
    %v167 = vadd.f32 %v91, %v166
    %v168 = vpop.f32.mrb[0].mxu0
    %169 = vmatprep.mubr.f32.mxu0 0.0
    %170 = vmatmul.mubr.f32.gmra.mrb[0].mxu0 %v98
    %v171 = vpop.f32.mrb[0].mxu0
    %v172 = vadd.f32 %v91, %v171
    %v173 = vpop.f32.mrb[0].mxu0
    %174 = vdwg.mxu0
    %s175 = scalar_lea.vmem [#allocation8], 32
    %v176 = vld [vmem:[%s175] sm:$0xff]
    %v177 = vld [vmem:[%s175 + $0x8] sm:$0xff]
    %v178 = vld [vmem:[%s175 + $0x10] sm:$0xff]
    %v179 = vld [vmem:[%s175 + $0x18] sm:$0xff]
    %s180 = scalar_lea.vmem %s4, 1
    %v181 = vld [vmem:[%s180] sm:$0x1]
    %v183 = vlaneseq
    %v184 = vshrl.u32 %v183, 7
    %v185 = vsub.s32 0, %v184
    %v186 = vrot.slane %v181, %v185
    %v189 = vsel %vm93, %v78, 0
    %v192 = vsel %vm93, %v79, 0
    %194 = vmatprep.subr.mxu0 0.0
    %195 = vmatpush1.msra.mxu0 %v176
    %196 = vmatprep.subr.mxu0 0.0
    %197 = vmatpush1.msra.mxu0 %v177
    %198 = vmatprep.subr.mxu0 0.0
    %199 = vmatpush1.msra.mxu0 %v178
    %200 = vmatprep.subr.mxu0 0.0
    %201 = vmatpush1.msra.mxu0 %v179
    %202 = vmatprep.subr.mxu0 0.0
    %203 = vmatpush1.msra.mxu0 0.0
    %204 = vmatprep.subr.mxu0 0.0
    %205 = vmatpush1.msra.mxu0 0.0
    %206 = vmatprep.subr.mxu0 0.0
    %207 = vmatpush1.msra.mxu0 0.0
    %208 = vmatprep.subr.mxu0 0.0
    %209 = vmatpush1.msra.mxu0 0.0
    %210 = vmatprep.subr.mxu0 0.0
    %211 = vmatpush1.msra.mxu0 0.0
    %212 = vmatprep.subr.mxu0 0.0
    %213 = vmatpush1.msra.mxu0 0.0
    %214 = vmatprep.subr.mxu0 0.0
    %215 = vmatpush1.msra.mxu0 0.0
    %216 = vmatprep.subr.mxu0 0.0
    %217 = vmatpush1.msra.mxu0 0.0
    %218 = vmatprep.subr.mxu0 0.0
    %219 = vmatpush1.msra.mxu0 0.0
    %220 = vmatprep.subr.mxu0 0.0
    %221 = vmatpush1.msra.mxu0 0.0
    %222 = vmatprep.subr.mxu0 0.0
    %223 = vmatpush1.msra.mxu0 0.0
    %224 = vmatprep.subr.mxu0 0.0
    %225 = vmatpush1.msra.mxu0 0.0
    %226 = vmatprep.subr.mxu0 0.0
    %227 = vmatpush1.msra.mxu0 0.0
    %228 = vmatprep.subr.mxu0 0.0
    %229 = vmatpush1.msra.mxu0 0.0
    %230 = vmatprep.subr.mxu0 0.0
    %231 = vmatpush1.msra.mxu0 0.0
    %232 = vmatprep.subr.mxu0 0.0
    %233 = vmatpush1.msra.mxu0 0.0
    %234 = vmatprep.subr.mxu0 0.0
    %235 = vmatpush1.msra.mxu0 0.0
    %236 = vmatprep.subr.mxu0 0.0
    %237 = vmatpush1.msra.mxu0 0.0
    %238 = vmatprep.subr.mxu0 0.0
    %239 = vmatpush1.msra.mxu0 0.0
    %240 = vmatprep.subr.mxu0 0.0
    %241 = vmatpush1.msra.mxu0 0.0
    %242 = vmatprep.subr.mxu0 0.0
    %243 = vmatpush1.msra.mxu0 0.0
    %244 = vmatprep.subr.mxu0 0.0
    %245 = vmatpush1.msra.mxu0 0.0
    %246 = vmatprep.subr.mxu0 0.0
    %247 = vmatpush1.msra.mxu0 0.0
    %248 = vmatprep.subr.mxu0 0.0
    %249 = vmatpush1.msra.mxu0 0.0
    %250 = vmatprep.subr.mxu0 0.0
    %251 = vmatpush1.msra.mxu0 0.0
    %252 = vmatprep.subr.mxu0 0.0
    %253 = vmatpush1.msra.mxu0 0.0
    %254 = vmatprep.subr.mxu0 0.0
    %255 = vmatpush1.msra.mxu0 0.0
    %256 = vmatprep.subr.mxu0 0.0
    %257 = vmatpush1.msra.mxu0 0.0
    %258 = vmatprep.mubr.f32.mxu0 0.0
    %259 = vmatmul.mubr.f32.gmra.mrb[0].mxu0 %v189
    %v260 = vpop.f32.mrb[0].mxu0
    %v261 = vadd.f32 %v186, %v260
    %v262 = vpop.f32.mrb[0].mxu0
    %263 = vmatprep.mubr.f32.mxu0 0.0
    %264 = vmatmul.mubr.f32.gmra.mrb[0].mxu0 %v192
    %v265 = vpop.f32.mrb[0].mxu0
    %v266 = vadd.f32 %v186, %v265
    %v267 = vpop.f32.mrb[0].mxu0
    %268 = vdwg.mxu0
    %s269 = scalar_lea.vmem [#allocation8], 64
    %v270 = vld [vmem:[%s269] sm:$0xff]
    %v271 = vld [vmem:[%s269 + $0x8] sm:$0xff]
    %v272 = vld [vmem:[%s269 + $0x10] sm:$0xff]
    %v273 = vld [vmem:[%s269 + $0x18] sm:$0xff]
    %s274 = scalar_lea.vmem %s4, 2
    %v275 = vld [vmem:[%s274] sm:$0x1]
    %v277 = vlaneseq
    %v278 = vshrl.u32 %v277, 7
    %v279 = vsub.s32 0, %v278
    %v280 = vrot.slane %v275, %v279
    %v283 = vsel %vm93, %v80, 0
    %v286 = vsel %vm93, %v81, 0
    %288 = vmatprep.subr.mxu0 0.0
    %289 = vmatpush1.msra.mxu0 %v270
    %290 = vmatprep.subr.mxu0 0.0
    %291 = vmatpush1.msra.mxu0 %v271
    %292 = vmatprep.subr.mxu0 0.0
    %293 = vmatpush1.msra.mxu0 %v272
    %294 = vmatprep.subr.mxu0 0.0
    %295 = vmatpush1.msra.mxu0 %v273
    %296 = vmatprep.subr.mxu0 0.0
    %297 = vmatpush1.msra.mxu0 0.0
    %298 = vmatprep.subr.mxu0 0.0
    %299 = vmatpush1.msra.mxu0 0.0
    %300 = vmatprep.subr.mxu0 0.0
    %301 = vmatpush1.msra.mxu0 0.0
    %302 = vmatprep.subr.mxu0 0.0
    %303 = vmatpush1.msra.mxu0 0.0
    %304 = vmatprep.subr.mxu0 0.0
    %305 = vmatpush1.msra.mxu0 0.0
    %306 = vmatprep.subr.mxu0 0.0
    %307 = vmatpush1.msra.mxu0 0.0
    %308 = vmatprep.subr.mxu0 0.0
    %309 = vmatpush1.msra.mxu0 0.0
    %310 = vmatprep.subr.mxu0 0.0
    %311 = vmatpush1.msra.mxu0 0.0
    %312 = vmatprep.subr.mxu0 0.0
    %313 = vmatpush1.msra.mxu0 0.0
    %314 = vmatprep.subr.mxu0 0.0
    %315 = vmatpush1.msra.mxu0 0.0
    %316 = vmatprep.subr.mxu0 0.0
    %317 = vmatpush1.msra.mxu0 0.0
    %318 = vmatprep.subr.mxu0 0.0
    %319 = vmatpush1.msra.mxu0 0.0
    %320 = vmatprep.subr.mxu0 0.0
    %321 = vmatpush1.msra.mxu0 0.0
    %322 = vmatprep.subr.mxu0 0.0
    %323 = vmatpush1.msra.mxu0 0.0
    %324 = vmatprep.subr.mxu0 0.0
    %325 = vmatpush1.msra.mxu0 0.0
    %326 = vmatprep.subr.mxu0 0.0
    %327 = vmatpush1.msra.mxu0 0.0
    %328 = vmatprep.subr.mxu0 0.0
    %329 = vmatpush1.msra.mxu0 0.0
    %330 = vmatprep.subr.mxu0 0.0
    %331 = vmatpush1.msra.mxu0 0.0
    %332 = vmatprep.subr.mxu0 0.0
    %333 = vmatpush1.msra.mxu0 0.0
    %334 = vmatprep.subr.mxu0 0.0
    %335 = vmatpush1.msra.mxu0 0.0
    %336 = vmatprep.subr.mxu0 0.0
    %337 = vmatpush1.msra.mxu0 0.0
    %338 = vmatprep.subr.mxu0 0.0
    %339 = vmatpush1.msra.mxu0 0.0
    %340 = vmatprep.subr.mxu0 0.0
    %341 = vmatpush1.msra.mxu0 0.0
    %342 = vmatprep.subr.mxu0 0.0
    %343 = vmatpush1.msra.mxu0 0.0
    %344 = vmatprep.subr.mxu0 0.0
    %345 = vmatpush1.msra.mxu0 0.0
    %346 = vmatprep.subr.mxu0 0.0
    %347 = vmatpush1.msra.mxu0 0.0
    %348 = vmatprep.subr.mxu0 0.0
    %349 = vmatpush1.msra.mxu0 0.0
    %350 = vmatprep.subr.mxu0 0.0
    %351 = vmatpush1.msra.mxu0 0.0
    %352 = vmatprep.mubr.f32.mxu0 0.0
    %353 = vmatmul.mubr.f32.gmra.mrb[0].mxu0 %v283
    %v354 = vpop.f32.mrb[0].mxu0
    %v355 = vadd.f32 %v280, %v354
    %v356 = vpop.f32.mrb[0].mxu0
    %357 = vmatprep.mubr.f32.mxu0 0.0
    %358 = vmatmul.mubr.f32.gmra.mrb[0].mxu0 %v286
    %v359 = vpop.f32.mrb[0].mxu0
    %v360 = vadd.f32 %v280, %v359
    %v361 = vpop.f32.mrb[0].mxu0
    %362 = vdwg.mxu0
    %365 = vrot.lane.b32.xlu0 %v167, 124
    %v366 = vpop.permute.xlu0 %365
    %367 = vrot.lane.b32.xlu0 %v172, 124
    %v368 = vpop.permute.xlu0 %367
    %371 = vrot.lane.b32.xlu0 %v167, 120
    %v372 = vpop.permute.xlu0 %371
    %373 = vrot.lane.b32.xlu0 %v172, 120
    %v374 = vpop.permute.xlu0 %373
    %377 = vrot.lane.b32.xlu0 %v167, 116
    %v378 = vpop.permute.xlu0 %377
    %379 = vrot.lane.b32.xlu0 %v172, 116
    %v380 = vpop.permute.xlu0 %379
    %383 = vrot.lane.b32.xlu0 %v167, 112
    %v384 = vpop.permute.xlu0 %383
    %385 = vrot.lane.b32.xlu0 %v172, 112
    %v386 = vpop.permute.xlu0 %385
    %389 = vrot.lane.b32.xlu0 %v167, 108
    %v390 = vpop.permute.xlu0 %389
    %391 = vrot.lane.b32.xlu0 %v172, 108
    %v392 = vpop.permute.xlu0 %391
    %395 = vrot.lane.b32.xlu0 %v167, 104
    %v396 = vpop.permute.xlu0 %395
    %397 = vrot.lane.b32.xlu0 %v172, 104
    %v398 = vpop.permute.xlu0 %397
    %401 = vrot.lane.b32.xlu0 %v167, 100
    %v402 = vpop.permute.xlu0 %401
    %403 = vrot.lane.b32.xlu0 %v172, 100
    %v404 = vpop.permute.xlu0 %403
    %v407 = vcombine.low %v167, %v372
    %v408 = vcombine.high %v167, %v372
    %v410 = vunpack.c.l.s4 1983009808
    %v411 = vunpack.c.0.s8 %v410
    %v412 = vlaneseq
    %v413 = vshrl.u32 %v412, 7
    %v414 = vsub.s32 %v411, %v413
    %v415 = vrot.slane %v407, %v414
    %v417 = vunpack.c.l.s4 1983009808
    %v418 = vunpack.c.0.s8 %v417
    %v419 = vlaneseq
    %v420 = vshrl.u32 %v419, 7
    %v421 = vsub.s32 %v418, %v420
    %v422 = vrot.slane %v408, %v421
    %v423 = vcombine.low %v366, %v378
    %v424 = vcombine.high %v366, %v378
    %v426 = vunpack.c.l.s4 1983009808
    %v427 = vunpack.c.0.s8 %v426
    %v428 = vlaneseq
    %v429 = vshrl.u32 %v428, 7
    %v430 = vsub.s32 %v427, %v429
    %v431 = vrot.slane %v423, %v430
    %v433 = vunpack.c.l.s4 1983009808
    %v434 = vunpack.c.0.s8 %v433
    %v435 = vlaneseq
    %v436 = vshrl.u32 %v435, 7
    %v437 = vsub.s32 %v434, %v436
    %v438 = vrot.slane %v424, %v437
    %v439 = vcombine.low %v384, %v396
    %v440 = vcombine.high %v384, %v396
    %v442 = vunpack.c.l.s4 1983009808
    %v443 = vunpack.c.0.s8 %v442
    %v444 = vlaneseq
    %v445 = vshrl.u32 %v444, 7
    %v446 = vsub.s32 %v443, %v445
    %v447 = vrot.slane %v439, %v446
    %v449 = vunpack.c.l.s4 1983009808
    %v450 = vunpack.c.0.s8 %v449
    %v451 = vlaneseq
    %v452 = vshrl.u32 %v451, 7
    %v453 = vsub.s32 %v450, %v452
    %v454 = vrot.slane %v440, %v453
    %v455 = vcombine.low %v390, %v402
    %v456 = vcombine.high %v390, %v402
    %v458 = vunpack.c.l.s4 1983009808
    %v459 = vunpack.c.0.s8 %v458
    %v460 = vlaneseq
    %v461 = vshrl.u32 %v460, 7
    %v462 = vsub.s32 %v459, %v461
    %v463 = vrot.slane %v455, %v462
    %v465 = vunpack.c.l.s4 1983009808
    %v466 = vunpack.c.0.s8 %v465
    %v467 = vlaneseq
    %v468 = vshrl.u32 %v467, 7
    %v469 = vsub.s32 %v466, %v468
    %v470 = vrot.slane %v456, %v469
    %v471 = vcombine.low %v415, %v431
    %v472 = vcombine.high %v415, %v431
    %v474 = vunpack.c.l.s4 1934713408
    %v475 = vunpack.c.0.s8 %v474
    %v476 = vlaneseq
    %v477 = vshrl.u32 %v476, 7
    %v478 = vsub.s32 %v475, %v477
    %v479 = vrot.slane %v471, %v478
    %v481 = vunpack.c.l.s4 1934713408
    %v482 = vunpack.c.0.s8 %v481
    %v483 = vlaneseq
    %v484 = vshrl.u32 %v483, 7
    %v485 = vsub.s32 %v482, %v484
    %v486 = vrot.slane %v472, %v485
    %v487 = vcombine.low %v422, %v438
    %v488 = vcombine.high %v422, %v438
    %v490 = vunpack.c.l.s4 1934713408
    %v491 = vunpack.c.0.s8 %v490
    %v492 = vlaneseq
    %v493 = vshrl.u32 %v492, 7
    %v494 = vsub.s32 %v491, %v493
    %v495 = vrot.slane %v487, %v494
    %v497 = vunpack.c.l.s4 1934713408
    %v498 = vunpack.c.0.s8 %v497
    %v499 = vlaneseq
    %v500 = vshrl.u32 %v499, 7
    %v501 = vsub.s32 %v498, %v500
    %v502 = vrot.slane %v488, %v501
    %v503 = vcombine.low %v447, %v463
    %v504 = vcombine.high %v447, %v463
    %v506 = vunpack.c.l.s4 1934713408
    %v507 = vunpack.c.0.s8 %v506
    %v508 = vlaneseq
    %v509 = vshrl.u32 %v508, 7
    %v510 = vsub.s32 %v507, %v509
    %v511 = vrot.slane %v503, %v510
    %v513 = vunpack.c.l.s4 1934713408
    %v514 = vunpack.c.0.s8 %v513
    %v515 = vlaneseq
    %v516 = vshrl.u32 %v515, 7
    %v517 = vsub.s32 %v514, %v516
    %v518 = vrot.slane %v504, %v517
    %v519 = vcombine.low %v454, %v470
    %v520 = vcombine.high %v454, %v470
    %v522 = vunpack.c.l.s4 1934713408
    %v523 = vunpack.c.0.s8 %v522
    %v524 = vlaneseq
    %v525 = vshrl.u32 %v524, 7
    %v526 = vsub.s32 %v523, %v525
    %v527 = vrot.slane %v519, %v526
    %v529 = vunpack.c.l.s4 1934713408
    %v530 = vunpack.c.0.s8 %v529
    %v531 = vlaneseq
    %v532 = vshrl.u32 %v531, 7
    %v533 = vsub.s32 %v530, %v532
    %v534 = vrot.slane %v520, %v533
    %v535 = vcombine.low %v479, %v511
    %v536 = vcombine.high %v479, %v511
    %v537 = vcombine.low %v486, %v518
    %v538 = vcombine.high %v486, %v518
    %v539 = vcombine.low %v495, %v527
    %v540 = vcombine.high %v495, %v527
    %v541 = vcombine.low %v502, %v534
    %v542 = vcombine.high %v502, %v534
    %v543 = vcombine.low %v172, %v374
    %v544 = vcombine.high %v172, %v374
    %v546 = vunpack.c.l.s4 1983009808
    %v547 = vunpack.c.0.s8 %v546
    %v548 = vlaneseq
    %v549 = vshrl.u32 %v548, 7
    %v550 = vsub.s32 %v547, %v549
    %v551 = vrot.slane %v543, %v550
    %v553 = vunpack.c.l.s4 1983009808
    %v554 = vunpack.c.0.s8 %v553
    %v555 = vlaneseq
    %v556 = vshrl.u32 %v555, 7
    %v557 = vsub.s32 %v554, %v556
    %v558 = vrot.slane %v544, %v557
    %v559 = vcombine.low %v368, %v380
    %v560 = vcombine.high %v368, %v380
    %v562 = vunpack.c.l.s4 1983009808
    %v563 = vunpack.c.0.s8 %v562
    %v564 = vlaneseq
    %v565 = vshrl.u32 %v564, 7
    %v566 = vsub.s32 %v563, %v565
    %v567 = vrot.slane %v559, %v566
    %v569 = vunpack.c.l.s4 1983009808
    %v570 = vunpack.c.0.s8 %v569
    %v571 = vlaneseq
    %v572 = vshrl.u32 %v571, 7
    %v573 = vsub.s32 %v570, %v572
    %v574 = vrot.slane %v560, %v573
    %v575 = vcombine.low %v386, %v398
    %v576 = vcombine.high %v386, %v398
    %v578 = vunpack.c.l.s4 1983009808
    %v579 = vunpack.c.0.s8 %v578
    %v580 = vlaneseq
    %v581 = vshrl.u32 %v580, 7
    %v582 = vsub.s32 %v579, %v581
    %v583 = vrot.slane %v575, %v582
    %v585 = vunpack.c.l.s4 1983009808
    %v586 = vunpack.c.0.s8 %v585
    %v587 = vlaneseq
    %v588 = vshrl.u32 %v587, 7
    %v589 = vsub.s32 %v586, %v588
    %v590 = vrot.slane %v576, %v589
    %v591 = vcombine.low %v392, %v404
    %v592 = vcombine.high %v392, %v404
    %v594 = vunpack.c.l.s4 1983009808
    %v595 = vunpack.c.0.s8 %v594
    %v596 = vlaneseq
    %v597 = vshrl.u32 %v596, 7
    %v598 = vsub.s32 %v595, %v597
    %v599 = vrot.slane %v591, %v598
    %v601 = vunpack.c.l.s4 1983009808
    %v602 = vunpack.c.0.s8 %v601
    %v603 = vlaneseq
    %v604 = vshrl.u32 %v603, 7
    %v605 = vsub.s32 %v602, %v604
    %v606 = vrot.slane %v592, %v605
    %v607 = vcombine.low %v551, %v567
    %v608 = vcombine.high %v551, %v567
    %v610 = vunpack.c.l.s4 1934713408
    %v611 = vunpack.c.0.s8 %v610
    %v612 = vlaneseq
    %v613 = vshrl.u32 %v612, 7
    %v614 = vsub.s32 %v611, %v613
    %v615 = vrot.slane %v607, %v614
    %v617 = vunpack.c.l.s4 1934713408
    %v618 = vunpack.c.0.s8 %v617
    %v619 = vlaneseq
    %v620 = vshrl.u32 %v619, 7
    %v621 = vsub.s32 %v618, %v620
    %v622 = vrot.slane %v608, %v621
    %v623 = vcombine.low %v558, %v574
    %v624 = vcombine.high %v558, %v574
    %v626 = vunpack.c.l.s4 1934713408
    %v627 = vunpack.c.0.s8 %v626
    %v628 = vlaneseq
    %v629 = vshrl.u32 %v628, 7
    %v630 = vsub.s32 %v627, %v629
    %v631 = vrot.slane %v623, %v630
    %v633 = vunpack.c.l.s4 1934713408
    %v634 = vunpack.c.0.s8 %v633
    %v635 = vlaneseq
    %v636 = vshrl.u32 %v635, 7
    %v637 = vsub.s32 %v634, %v636
    %v638 = vrot.slane %v624, %v637
    %v639 = vcombine.low %v583, %v599
    %v640 = vcombine.high %v583, %v599
    %v642 = vunpack.c.l.s4 1934713408
    %v643 = vunpack.c.0.s8 %v642
    %v644 = vlaneseq
    %v645 = vshrl.u32 %v644, 7
    %v646 = vsub.s32 %v643, %v645
    %v647 = vrot.slane %v639, %v646
    %v649 = vunpack.c.l.s4 1934713408
    %v650 = vunpack.c.0.s8 %v649
    %v651 = vlaneseq
    %v652 = vshrl.u32 %v651, 7
    %v653 = vsub.s32 %v650, %v652
    %v654 = vrot.slane %v640, %v653
    %v655 = vcombine.low %v590, %v606
    %v656 = vcombine.high %v590, %v606
    %v658 = vunpack.c.l.s4 1934713408
    %v659 = vunpack.c.0.s8 %v658
    %v660 = vlaneseq
    %v661 = vshrl.u32 %v660, 7
    %v662 = vsub.s32 %v659, %v661
    %v663 = vrot.slane %v655, %v662
    %v665 = vunpack.c.l.s4 1934713408
    %v666 = vunpack.c.0.s8 %v665
    %v667 = vlaneseq
    %v668 = vshrl.u32 %v667, 7
    %v669 = vsub.s32 %v666, %v668
    %v670 = vrot.slane %v656, %v669
    %v671 = vcombine.low %v615, %v647
    %v672 = vcombine.high %v615, %v647
    %v673 = vcombine.low %v622, %v654
    %v674 = vcombine.high %v622, %v654
    %v675 = vcombine.low %v631, %v663
    %v676 = vcombine.high %v631, %v663
    %v677 = vcombine.low %v638, %v670
    %v678 = vcombine.high %v638, %v670
    %v679 = vcombine.low %v535, %v537
    %v680 = vcombine.high %v535, %v537
    %v682 = vunpack.c.l.s4 1983009808
    %v683 = vunpack.c.0.s8 %v682
    %v684 = vlaneseq
    %v685 = vshrl.u32 %v684, 7
    %v686 = vsub.s32 %v683, %v685
    %v687 = vrot.slane %v679, %v686
    %v689 = vunpack.c.l.s4 1983009808
    %v690 = vunpack.c.0.s8 %v689
    %v691 = vlaneseq
    %v692 = vshrl.u32 %v691, 7
    %v693 = vsub.s32 %v690, %v692
    %v694 = vrot.slane %v680, %v693
    %v695 = vcombine.low %v536, %v538
    %v696 = vcombine.high %v536, %v538
    %v698 = vunpack.c.l.s4 1983009808
    %v699 = vunpack.c.0.s8 %v698
    %v700 = vlaneseq
    %v701 = vshrl.u32 %v700, 7
    %v702 = vsub.s32 %v699, %v701
    %v703 = vrot.slane %v695, %v702
    %v705 = vunpack.c.l.s4 1983009808
    %v706 = vunpack.c.0.s8 %v705
    %v707 = vlaneseq
    %v708 = vshrl.u32 %v707, 7
    %v709 = vsub.s32 %v706, %v708
    %v710 = vrot.slane %v696, %v709
    %v711 = vcombine.low %v539, %v541
    %v712 = vcombine.high %v539, %v541
    %v714 = vunpack.c.l.s4 1983009808
    %v715 = vunpack.c.0.s8 %v714
    %v716 = vlaneseq
    %v717 = vshrl.u32 %v716, 7
    %v718 = vsub.s32 %v715, %v717
    %v719 = vrot.slane %v711, %v718
    %v721 = vunpack.c.l.s4 1983009808
    %v722 = vunpack.c.0.s8 %v721
    %v723 = vlaneseq
    %v724 = vshrl.u32 %v723, 7
    %v725 = vsub.s32 %v722, %v724
    %v726 = vrot.slane %v712, %v725
    %v727 = vcombine.low %v540, %v542
    %v728 = vcombine.high %v540, %v542
    %v730 = vunpack.c.l.s4 1983009808
    %v731 = vunpack.c.0.s8 %v730
    %v732 = vlaneseq
    %v733 = vshrl.u32 %v732, 7
    %v734 = vsub.s32 %v731, %v733
    %v735 = vrot.slane %v727, %v734
    %v737 = vunpack.c.l.s4 1983009808
    %v738 = vunpack.c.0.s8 %v737
    %v739 = vlaneseq
    %v740 = vshrl.u32 %v739, 7
    %v741 = vsub.s32 %v738, %v740
    %v742 = vrot.slane %v728, %v741
    %v743 = vcombine.low %v687, %v703
    %v744 = vcombine.high %v687, %v703
    %v746 = vunpack.c.l.s4 1934713408
    %v747 = vunpack.c.0.s8 %v746
    %v748 = vlaneseq
    %v749 = vshrl.u32 %v748, 7
    %v750 = vsub.s32 %v747, %v749
    %v751 = vrot.slane %v743, %v750
    %v753 = vunpack.c.l.s4 1934713408
    %v754 = vunpack.c.0.s8 %v753
    %v755 = vlaneseq
    %v756 = vshrl.u32 %v755, 7
    %v757 = vsub.s32 %v754, %v756
    %v758 = vrot.slane %v744, %v757
    %v759 = vcombine.low %v694, %v710
    %v760 = vcombine.high %v694, %v710
    %v762 = vunpack.c.l.s4 1934713408
    %v763 = vunpack.c.0.s8 %v762
    %v764 = vlaneseq
    %v765 = vshrl.u32 %v764, 7
    %v766 = vsub.s32 %v763, %v765
    %v767 = vrot.slane %v759, %v766
    %v769 = vunpack.c.l.s4 1934713408
    %v770 = vunpack.c.0.s8 %v769
    %v771 = vlaneseq
    %v772 = vshrl.u32 %v771, 7
    %v773 = vsub.s32 %v770, %v772
    %v774 = vrot.slane %v760, %v773
    %v775 = vcombine.low %v719, %v735
    %v776 = vcombine.high %v719, %v735
    %v778 = vunpack.c.l.s4 1934713408
    %v779 = vunpack.c.0.s8 %v778
    %v780 = vlaneseq
    %v781 = vshrl.u32 %v780, 7
    %v782 = vsub.s32 %v779, %v781
    %v783 = vrot.slane %v775, %v782
    %v785 = vunpack.c.l.s4 1934713408
    %v786 = vunpack.c.0.s8 %v785
    %v787 = vlaneseq
    %v788 = vshrl.u32 %v787, 7
    %v789 = vsub.s32 %v786, %v788
    %v790 = vrot.slane %v776, %v789
    %v791 = vcombine.low %v726, %v742
    %v792 = vcombine.high %v726, %v742
    %v794 = vunpack.c.l.s4 1934713408
    %v795 = vunpack.c.0.s8 %v794
    %v796 = vlaneseq
    %v797 = vshrl.u32 %v796, 7
    %v798 = vsub.s32 %v795, %v797
    %v799 = vrot.slane %v791, %v798
    %v801 = vunpack.c.l.s4 1934713408
    %v802 = vunpack.c.0.s8 %v801
    %v803 = vlaneseq
    %v804 = vshrl.u32 %v803, 7
    %v805 = vsub.s32 %v802, %v804
    %v806 = vrot.slane %v792, %v805
    %v807 = vcombine.low %v751, %v783
    %v808 = vcombine.high %v751, %v783
    %v809 = vcombine.low %v758, %v790
    %v810 = vcombine.high %v758, %v790
    %v811 = vcombine.low %v767, %v799
    %v812 = vcombine.high %v767, %v799
    %v813 = vcombine.low %v774, %v806
    %v814 = vcombine.high %v774, %v806
    %v815 = vcombine.low %v671, %v673
    %v816 = vcombine.high %v671, %v673
    %v818 = vunpack.c.l.s4 1983009808
    %v819 = vunpack.c.0.s8 %v818
    %v820 = vlaneseq
    %v821 = vshrl.u32 %v820, 7
    %v822 = vsub.s32 %v819, %v821
    %v823 = vrot.slane %v815, %v822
    %v825 = vunpack.c.l.s4 1983009808
    %v826 = vunpack.c.0.s8 %v825
    %v827 = vlaneseq
    %v828 = vshrl.u32 %v827, 7
    %v829 = vsub.s32 %v826, %v828
    %v830 = vrot.slane %v816, %v829
    %v831 = vcombine.low %v672, %v674
    %v832 = vcombine.high %v672, %v674
    %v834 = vunpack.c.l.s4 1983009808
    %v835 = vunpack.c.0.s8 %v834
    %v836 = vlaneseq
    %v837 = vshrl.u32 %v836, 7
    %v838 = vsub.s32 %v835, %v837
    %v839 = vrot.slane %v831, %v838
    %v841 = vunpack.c.l.s4 1983009808
    %v842 = vunpack.c.0.s8 %v841
    %v843 = vlaneseq
    %v844 = vshrl.u32 %v843, 7
    %v845 = vsub.s32 %v842, %v844
    %v846 = vrot.slane %v832, %v845
    %v847 = vcombine.low %v675, %v677
    %v848 = vcombine.high %v675, %v677
    %v850 = vunpack.c.l.s4 1983009808
    %v851 = vunpack.c.0.s8 %v850
    %v852 = vlaneseq
    %v853 = vshrl.u32 %v852, 7
    %v854 = vsub.s32 %v851, %v853
    %v855 = vrot.slane %v847, %v854
    %v857 = vunpack.c.l.s4 1983009808
    %v858 = vunpack.c.0.s8 %v857
    %v859 = vlaneseq
    %v860 = vshrl.u32 %v859, 7
    %v861 = vsub.s32 %v858, %v860
    %v862 = vrot.slane %v848, %v861
    %v863 = vcombine.low %v676, %v678
    %v864 = vcombine.high %v676, %v678
    %v866 = vunpack.c.l.s4 1983009808
    %v867 = vunpack.c.0.s8 %v866
    %v868 = vlaneseq
    %v869 = vshrl.u32 %v868, 7
    %v870 = vsub.s32 %v867, %v869
    %v871 = vrot.slane %v863, %v870
    %v873 = vunpack.c.l.s4 1983009808
    %v874 = vunpack.c.0.s8 %v873
    %v875 = vlaneseq
    %v876 = vshrl.u32 %v875, 7
    %v877 = vsub.s32 %v874, %v876
    %v878 = vrot.slane %v864, %v877
    %v879 = vcombine.low %v823, %v839
    %v880 = vcombine.high %v823, %v839
    %v882 = vunpack.c.l.s4 1934713408
    %v883 = vunpack.c.0.s8 %v882
    %v884 = vlaneseq
    %v885 = vshrl.u32 %v884, 7
    %v886 = vsub.s32 %v883, %v885
    %v887 = vrot.slane %v879, %v886
    %v889 = vunpack.c.l.s4 1934713408
    %v890 = vunpack.c.0.s8 %v889
    %v891 = vlaneseq
    %v892 = vshrl.u32 %v891, 7
    %v893 = vsub.s32 %v890, %v892
    %v894 = vrot.slane %v880, %v893
    %v895 = vcombine.low %v830, %v846
    %v896 = vcombine.high %v830, %v846
    %v898 = vunpack.c.l.s4 1934713408
    %v899 = vunpack.c.0.s8 %v898
    %v900 = vlaneseq
    %v901 = vshrl.u32 %v900, 7
    %v902 = vsub.s32 %v899, %v901
    %v903 = vrot.slane %v895, %v902
    %v905 = vunpack.c.l.s4 1934713408
    %v906 = vunpack.c.0.s8 %v905
    %v907 = vlaneseq
    %v908 = vshrl.u32 %v907, 7
    %v909 = vsub.s32 %v906, %v908
    %v910 = vrot.slane %v896, %v909
    %v911 = vcombine.low %v855, %v871
    %v912 = vcombine.high %v855, %v871
    %v914 = vunpack.c.l.s4 1934713408
    %v915 = vunpack.c.0.s8 %v914
    %v916 = vlaneseq
    %v917 = vshrl.u32 %v916, 7
    %v918 = vsub.s32 %v915, %v917
    %v919 = vrot.slane %v911, %v918
    %v921 = vunpack.c.l.s4 1934713408
    %v922 = vunpack.c.0.s8 %v921
    %v923 = vlaneseq
    %v924 = vshrl.u32 %v923, 7
    %v925 = vsub.s32 %v922, %v924
    %v926 = vrot.slane %v912, %v925
    %v927 = vcombine.low %v862, %v878
    %v928 = vcombine.high %v862, %v878
    %v930 = vunpack.c.l.s4 1934713408
    %v931 = vunpack.c.0.s8 %v930
    %v932 = vlaneseq
    %v933 = vshrl.u32 %v932, 7
    %v934 = vsub.s32 %v931, %v933
    %v935 = vrot.slane %v927, %v934
    %v937 = vunpack.c.l.s4 1934713408
    %v938 = vunpack.c.0.s8 %v937
    %v939 = vlaneseq
    %v940 = vshrl.u32 %v939, 7
    %v941 = vsub.s32 %v938, %v940
    %v942 = vrot.slane %v928, %v941
    %v943 = vcombine.low %v887, %v919
    %v944 = vcombine.high %v887, %v919
    %v945 = vcombine.low %v894, %v926
    %v946 = vcombine.high %v894, %v926
    %v947 = vcombine.low %v903, %v935
    %v948 = vcombine.high %v903, %v935
    %v949 = vcombine.low %v910, %v942
    %v950 = vcombine.high %v910, %v942
    %953 = vrot.lane.b32.xlu0 %v261, 124
    %v954 = vpop.permute.xlu0 %953
    %955 = vrot.lane.b32.xlu0 %v266, 124
    %v956 = vpop.permute.xlu0 %955
    %959 = vrot.lane.b32.xlu0 %v261, 120
    %v960 = vpop.permute.xlu0 %959
    %961 = vrot.lane.b32.xlu0 %v266, 120
    %v962 = vpop.permute.xlu0 %961
    %965 = vrot.lane.b32.xlu0 %v261, 116
    %v966 = vpop.permute.xlu0 %965
    %967 = vrot.lane.b32.xlu0 %v266, 116
    %v968 = vpop.permute.xlu0 %967
    %971 = vrot.lane.b32.xlu0 %v261, 112
    %v972 = vpop.permute.xlu0 %971
    %973 = vrot.lane.b32.xlu0 %v266, 112
    %v974 = vpop.permute.xlu0 %973
    %977 = vrot.lane.b32.xlu0 %v261, 108
    %v978 = vpop.permute.xlu0 %977
    %979 = vrot.lane.b32.xlu0 %v266, 108
    %v980 = vpop.permute.xlu0 %979
    %983 = vrot.lane.b32.xlu0 %v261, 104
    %v984 = vpop.permute.xlu0 %983
    %985 = vrot.lane.b32.xlu0 %v266, 104
    %v986 = vpop.permute.xlu0 %985
    %989 = vrot.lane.b32.xlu0 %v261, 100
    %v990 = vpop.permute.xlu0 %989
    %991 = vrot.lane.b32.xlu0 %v266, 100
    %v992 = vpop.permute.xlu0 %991
    %v995 = vcombine.low %v261, %v960
    %v996 = vcombine.high %v261, %v960
    %v998 = vunpack.c.l.s4 1983009808
    %v999 = vunpack.c.0.s8 %v998
    %v1000 = vlaneseq
    %v1001 = vshrl.u32 %v1000, 7
    %v1002 = vsub.s32 %v999, %v1001
    %v1003 = vrot.slane %v995, %v1002
    %v1005 = vunpack.c.l.s4 1983009808
    %v1006 = vunpack.c.0.s8 %v1005
    %v1007 = vlaneseq
    %v1008 = vshrl.u32 %v1007, 7
    %v1009 = vsub.s32 %v1006, %v1008
    %v1010 = vrot.slane %v996, %v1009
    %v1011 = vcombine.low %v954, %v966
    %v1012 = vcombine.high %v954, %v966
    %v1014 = vunpack.c.l.s4 1983009808
    %v1015 = vunpack.c.0.s8 %v1014
    %v1016 = vlaneseq
    %v1017 = vshrl.u32 %v1016, 7
    %v1018 = vsub.s32 %v1015, %v1017
    %v1019 = vrot.slane %v1011, %v1018
    %v1021 = vunpack.c.l.s4 1983009808
    %v1022 = vunpack.c.0.s8 %v1021
    %v1023 = vlaneseq
    %v1024 = vshrl.u32 %v1023, 7
    %v1025 = vsub.s32 %v1022, %v1024
    %v1026 = vrot.slane %v1012, %v1025
    %v1027 = vcombine.low %v972, %v984
    %v1028 = vcombine.high %v972, %v984
    %v1030 = vunpack.c.l.s4 1983009808
    %v1031 = vunpack.c.0.s8 %v1030
    %v1032 = vlaneseq
    %v1033 = vshrl.u32 %v1032, 7
    %v1034 = vsub.s32 %v1031, %v1033
    %v1035 = vrot.slane %v1027, %v1034
    %v1037 = vunpack.c.l.s4 1983009808
    %v1038 = vunpack.c.0.s8 %v1037
    %v1039 = vlaneseq
    %v1040 = vshrl.u32 %v1039, 7
    %v1041 = vsub.s32 %v1038, %v1040
    %v1042 = vrot.slane %v1028, %v1041
    %v1043 = vcombine.low %v978, %v990
    %v1044 = vcombine.high %v978, %v990
    %v1046 = vunpack.c.l.s4 1983009808
    %v1047 = vunpack.c.0.s8 %v1046
    %v1048 = vlaneseq
    %v1049 = vshrl.u32 %v1048, 7
    %v1050 = vsub.s32 %v1047, %v1049
    %v1051 = vrot.slane %v1043, %v1050
    %v1053 = vunpack.c.l.s4 1983009808
    %v1054 = vunpack.c.0.s8 %v1053
    %v1055 = vlaneseq
    %v1056 = vshrl.u32 %v1055, 7
    %v1057 = vsub.s32 %v1054, %v1056
    %v1058 = vrot.slane %v1044, %v1057
    %v1059 = vcombine.low %v1003, %v1019
    %v1060 = vcombine.high %v1003, %v1019
    %v1062 = vunpack.c.l.s4 1934713408
    %v1063 = vunpack.c.0.s8 %v1062
    %v1064 = vlaneseq
    %v1065 = vshrl.u32 %v1064, 7
    %v1066 = vsub.s32 %v1063, %v1065
    %v1067 = vrot.slane %v1059, %v1066
    %v1069 = vunpack.c.l.s4 1934713408
    %v1070 = vunpack.c.0.s8 %v1069
    %v1071 = vlaneseq
    %v1072 = vshrl.u32 %v1071, 7
    %v1073 = vsub.s32 %v1070, %v1072
    %v1074 = vrot.slane %v1060, %v1073
    %v1075 = vcombine.low %v1010, %v1026
    %v1076 = vcombine.high %v1010, %v1026
    %v1078 = vunpack.c.l.s4 1934713408
    %v1079 = vunpack.c.0.s8 %v1078
    %v1080 = vlaneseq
    %v1081 = vshrl.u32 %v1080, 7
    %v1082 = vsub.s32 %v1079, %v1081
    %v1083 = vrot.slane %v1075, %v1082
    %v1085 = vunpack.c.l.s4 1934713408
    %v1086 = vunpack.c.0.s8 %v1085
    %v1087 = vlaneseq
    %v1088 = vshrl.u32 %v1087, 7
    %v1089 = vsub.s32 %v1086, %v1088
    %v1090 = vrot.slane %v1076, %v1089
    %v1091 = vcombine.low %v1035, %v1051
    %v1092 = vcombine.high %v1035, %v1051
    %v1094 = vunpack.c.l.s4 1934713408
    %v1095 = vunpack.c.0.s8 %v1094
    %v1096 = vlaneseq
    %v1097 = vshrl.u32 %v1096, 7
    %v1098 = vsub.s32 %v1095, %v1097
    %v1099 = vrot.slane %v1091, %v1098
    %v1101 = vunpack.c.l.s4 1934713408
    %v1102 = vunpack.c.0.s8 %v1101
    %v1103 = vlaneseq
    %v1104 = vshrl.u32 %v1103, 7
    %v1105 = vsub.s32 %v1102, %v1104
    %v1106 = vrot.slane %v1092, %v1105
    %v1107 = vcombine.low %v1042, %v1058
    %v1108 = vcombine.high %v1042, %v1058
    %v1110 = vunpack.c.l.s4 1934713408
    %v1111 = vunpack.c.0.s8 %v1110
    %v1112 = vlaneseq
    %v1113 = vshrl.u32 %v1112, 7
    %v1114 = vsub.s32 %v1111, %v1113
    %v1115 = vrot.slane %v1107, %v1114
    %v1117 = vunpack.c.l.s4 1934713408
    %v1118 = vunpack.c.0.s8 %v1117
    %v1119 = vlaneseq
    %v1120 = vshrl.u32 %v1119, 7
    %v1121 = vsub.s32 %v1118, %v1120
    %v1122 = vrot.slane %v1108, %v1121
    %v1123 = vcombine.low %v1067, %v1099
    %v1124 = vcombine.high %v1067, %v1099
    %v1125 = vcombine.low %v1074, %v1106
    %v1126 = vcombine.high %v1074, %v1106
    %v1127 = vcombine.low %v1083, %v1115
    %v1128 = vcombine.high %v1083, %v1115
    %v1129 = vcombine.low %v1090, %v1122
    %v1130 = vcombine.high %v1090, %v1122
    %v1131 = vcombine.low %v266, %v962
    %v1132 = vcombine.high %v266, %v962
    %v1134 = vunpack.c.l.s4 1983009808
    %v1135 = vunpack.c.0.s8 %v1134
    %v1136 = vlaneseq
    %v1137 = vshrl.u32 %v1136, 7
    %v1138 = vsub.s32 %v1135, %v1137
    %v1139 = vrot.slane %v1131, %v1138
    %v1141 = vunpack.c.l.s4 1983009808
    %v1142 = vunpack.c.0.s8 %v1141
    %v1143 = vlaneseq
    %v1144 = vshrl.u32 %v1143, 7
    %v1145 = vsub.s32 %v1142, %v1144
    %v1146 = vrot.slane %v1132, %v1145
    %v1147 = vcombine.low %v956, %v968
    %v1148 = vcombine.high %v956, %v968
    %v1150 = vunpack.c.l.s4 1983009808
    %v1151 = vunpack.c.0.s8 %v1150
    %v1152 = vlaneseq
    %v1153 = vshrl.u32 %v1152, 7
    %v1154 = vsub.s32 %v1151, %v1153
    %v1155 = vrot.slane %v1147, %v1154
    %v1157 = vunpack.c.l.s4 1983009808
    %v1158 = vunpack.c.0.s8 %v1157
    %v1159 = vlaneseq
    %v1160 = vshrl.u32 %v1159, 7
    %v1161 = vsub.s32 %v1158, %v1160
    %v1162 = vrot.slane %v1148, %v1161
    %v1163 = vcombine.low %v974, %v986
    %v1164 = vcombine.high %v974, %v986
    %v1166 = vunpack.c.l.s4 1983009808
    %v1167 = vunpack.c.0.s8 %v1166
    %v1168 = vlaneseq
    %v1169 = vshrl.u32 %v1168, 7
    %v1170 = vsub.s32 %v1167, %v1169
    %v1171 = vrot.slane %v1163, %v1170
    %v1173 = vunpack.c.l.s4 1983009808
    %v1174 = vunpack.c.0.s8 %v1173
    %v1175 = vlaneseq
    %v1176 = vshrl.u32 %v1175, 7
    %v1177 = vsub.s32 %v1174, %v1176
    %v1178 = vrot.slane %v1164, %v1177
    %v1179 = vcombine.low %v980, %v992
    %v1180 = vcombine.high %v980, %v992
    %v1182 = vunpack.c.l.s4 1983009808
    %v1183 = vunpack.c.0.s8 %v1182
    %v1184 = vlaneseq
    %v1185 = vshrl.u32 %v1184, 7
    %v1186 = vsub.s32 %v1183, %v1185
    %v1187 = vrot.slane %v1179, %v1186
    %v1189 = vunpack.c.l.s4 1983009808
    %v1190 = vunpack.c.0.s8 %v1189
    %v1191 = vlaneseq
    %v1192 = vshrl.u32 %v1191, 7
    %v1193 = vsub.s32 %v1190, %v1192
    %v1194 = vrot.slane %v1180, %v1193
    %v1195 = vcombine.low %v1139, %v1155
    %v1196 = vcombine.high %v1139, %v1155
    %v1198 = vunpack.c.l.s4 1934713408
    %v1199 = vunpack.c.0.s8 %v1198
    %v1200 = vlaneseq
    %v1201 = vshrl.u32 %v1200, 7
    %v1202 = vsub.s32 %v1199, %v1201
    %v1203 = vrot.slane %v1195, %v1202
    %v1205 = vunpack.c.l.s4 1934713408
    %v1206 = vunpack.c.0.s8 %v1205
    %v1207 = vlaneseq
    %v1208 = vshrl.u32 %v1207, 7
    %v1209 = vsub.s32 %v1206, %v1208
    %v1210 = vrot.slane %v1196, %v1209
    %v1211 = vcombine.low %v1146, %v1162
    %v1212 = vcombine.high %v1146, %v1162
    %v1214 = vunpack.c.l.s4 1934713408
    %v1215 = vunpack.c.0.s8 %v1214
    %v1216 = vlaneseq
    %v1217 = vshrl.u32 %v1216, 7
    %v1218 = vsub.s32 %v1215, %v1217
    %v1219 = vrot.slane %v1211, %v1218
    %v1221 = vunpack.c.l.s4 1934713408
    %v1222 = vunpack.c.0.s8 %v1221
    %v1223 = vlaneseq
    %v1224 = vshrl.u32 %v1223, 7
    %v1225 = vsub.s32 %v1222, %v1224
    %v1226 = vrot.slane %v1212, %v1225
    %v1227 = vcombine.low %v1171, %v1187
    %v1228 = vcombine.high %v1171, %v1187
    %v1230 = vunpack.c.l.s4 1934713408
    %v1231 = vunpack.c.0.s8 %v1230
    %v1232 = vlaneseq
    %v1233 = vshrl.u32 %v1232, 7
    %v1234 = vsub.s32 %v1231, %v1233
    %v1235 = vrot.slane %v1227, %v1234
    %v1237 = vunpack.c.l.s4 1934713408
    %v1238 = vunpack.c.0.s8 %v1237
    %v1239 = vlaneseq
    %v1240 = vshrl.u32 %v1239, 7
    %v1241 = vsub.s32 %v1238, %v1240
    %v1242 = vrot.slane %v1228, %v1241
    %v1243 = vcombine.low %v1178, %v1194
    %v1244 = vcombine.high %v1178, %v1194
    %v1246 = vunpack.c.l.s4 1934713408
    %v1247 = vunpack.c.0.s8 %v1246
    %v1248 = vlaneseq
    %v1249 = vshrl.u32 %v1248, 7
    %v1250 = vsub.s32 %v1247, %v1249
    %v1251 = vrot.slane %v1243, %v1250
    %v1253 = vunpack.c.l.s4 1934713408
    %v1254 = vunpack.c.0.s8 %v1253
    %v1255 = vlaneseq
    %v1256 = vshrl.u32 %v1255, 7
    %v1257 = vsub.s32 %v1254, %v1256
    %v1258 = vrot.slane %v1244, %v1257
    %v1259 = vcombine.low %v1203, %v1235
    %v1260 = vcombine.high %v1203, %v1235
    %v1261 = vcombine.low %v1210, %v1242
    %v1262 = vcombine.high %v1210, %v1242
    %v1263 = vcombine.low %v1219, %v1251
    %v1264 = vcombine.high %v1219, %v1251
    %v1265 = vcombine.low %v1226, %v1258
    %v1266 = vcombine.high %v1226, %v1258
    %v1267 = vcombine.low %v1123, %v1125
    %v1268 = vcombine.high %v1123, %v1125
    %v1270 = vunpack.c.l.s4 1983009808
    %v1271 = vunpack.c.0.s8 %v1270
    %v1272 = vlaneseq
    %v1273 = vshrl.u32 %v1272, 7
    %v1274 = vsub.s32 %v1271, %v1273
    %v1275 = vrot.slane %v1267, %v1274
    %v1277 = vunpack.c.l.s4 1983009808
    %v1278 = vunpack.c.0.s8 %v1277
    %v1279 = vlaneseq
    %v1280 = vshrl.u32 %v1279, 7
    %v1281 = vsub.s32 %v1278, %v1280
    %v1282 = vrot.slane %v1268, %v1281
    %v1283 = vcombine.low %v1124, %v1126
    %v1284 = vcombine.high %v1124, %v1126
    %v1286 = vunpack.c.l.s4 1983009808
    %v1287 = vunpack.c.0.s8 %v1286
    %v1288 = vlaneseq
    %v1289 = vshrl.u32 %v1288, 7
    %v1290 = vsub.s32 %v1287, %v1289
    %v1291 = vrot.slane %v1283, %v1290
    %v1293 = vunpack.c.l.s4 1983009808
    %v1294 = vunpack.c.0.s8 %v1293
    %v1295 = vlaneseq
    %v1296 = vshrl.u32 %v1295, 7
    %v1297 = vsub.s32 %v1294, %v1296
    %v1298 = vrot.slane %v1284, %v1297
    %v1299 = vcombine.low %v1127, %v1129
    %v1300 = vcombine.high %v1127, %v1129
    %v1302 = vunpack.c.l.s4 1983009808
    %v1303 = vunpack.c.0.s8 %v1302
    %v1304 = vlaneseq
    %v1305 = vshrl.u32 %v1304, 7
    %v1306 = vsub.s32 %v1303, %v1305
    %v1307 = vrot.slane %v1299, %v1306
    %v1309 = vunpack.c.l.s4 1983009808
    %v1310 = vunpack.c.0.s8 %v1309
    %v1311 = vlaneseq
    %v1312 = vshrl.u32 %v1311, 7
    %v1313 = vsub.s32 %v1310, %v1312
    %v1314 = vrot.slane %v1300, %v1313
    %v1315 = vcombine.low %v1128, %v1130
    %v1316 = vcombine.high %v1128, %v1130
    %v1318 = vunpack.c.l.s4 1983009808
    %v1319 = vunpack.c.0.s8 %v1318
    %v1320 = vlaneseq
    %v1321 = vshrl.u32 %v1320, 7
    %v1322 = vsub.s32 %v1319, %v1321
    %v1323 = vrot.slane %v1315, %v1322
    %v1325 = vunpack.c.l.s4 1983009808
    %v1326 = vunpack.c.0.s8 %v1325
    %v1327 = vlaneseq
    %v1328 = vshrl.u32 %v1327, 7
    %v1329 = vsub.s32 %v1326, %v1328
    %v1330 = vrot.slane %v1316, %v1329
    %v1331 = vcombine.low %v1275, %v1291
    %v1332 = vcombine.high %v1275, %v1291
    %v1334 = vunpack.c.l.s4 1934713408
    %v1335 = vunpack.c.0.s8 %v1334
    %v1336 = vlaneseq
    %v1337 = vshrl.u32 %v1336, 7
    %v1338 = vsub.s32 %v1335, %v1337
    %v1339 = vrot.slane %v1331, %v1338
    %v1341 = vunpack.c.l.s4 1934713408
    %v1342 = vunpack.c.0.s8 %v1341
    %v1343 = vlaneseq
    %v1344 = vshrl.u32 %v1343, 7
    %v1345 = vsub.s32 %v1342, %v1344
    %v1346 = vrot.slane %v1332, %v1345
    %v1347 = vcombine.low %v1282, %v1298
    %v1348 = vcombine.high %v1282, %v1298
    %v1350 = vunpack.c.l.s4 1934713408
    %v1351 = vunpack.c.0.s8 %v1350
    %v1352 = vlaneseq
    %v1353 = vshrl.u32 %v1352, 7
    %v1354 = vsub.s32 %v1351, %v1353
    %v1355 = vrot.slane %v1347, %v1354
    %v1357 = vunpack.c.l.s4 1934713408
    %v1358 = vunpack.c.0.s8 %v1357
    %v1359 = vlaneseq
    %v1360 = vshrl.u32 %v1359, 7
    %v1361 = vsub.s32 %v1358, %v1360
    %v1362 = vrot.slane %v1348, %v1361
    %v1363 = vcombine.low %v1307, %v1323
    %v1364 = vcombine.high %v1307, %v1323
    %v1366 = vunpack.c.l.s4 1934713408
    %v1367 = vunpack.c.0.s8 %v1366
    %v1368 = vlaneseq
    %v1369 = vshrl.u32 %v1368, 7
    %v1370 = vsub.s32 %v1367, %v1369
    %v1371 = vrot.slane %v1363, %v1370
    %v1373 = vunpack.c.l.s4 1934713408
    %v1374 = vunpack.c.0.s8 %v1373
    %v1375 = vlaneseq
    %v1376 = vshrl.u32 %v1375, 7
    %v1377 = vsub.s32 %v1374, %v1376
    %v1378 = vrot.slane %v1364, %v1377
    %v1379 = vcombine.low %v1314, %v1330
    %v1380 = vcombine.high %v1314, %v1330
    %v1382 = vunpack.c.l.s4 1934713408
    %v1383 = vunpack.c.0.s8 %v1382
    %v1384 = vlaneseq
    %v1385 = vshrl.u32 %v1384, 7
    %v1386 = vsub.s32 %v1383, %v1385
    %v1387 = vrot.slane %v1379, %v1386
    %v1389 = vunpack.c.l.s4 1934713408
    %v1390 = vunpack.c.0.s8 %v1389
    %v1391 = vlaneseq
    %v1392 = vshrl.u32 %v1391, 7
    %v1393 = vsub.s32 %v1390, %v1392
    %v1394 = vrot.slane %v1380, %v1393
    %v1395 = vcombine.low %v1339, %v1371
    %v1396 = vcombine.high %v1339, %v1371
    %v1397 = vcombine.low %v1346, %v1378
    %v1398 = vcombine.high %v1346, %v1378
    %v1399 = vcombine.low %v1355, %v1387
    %v1400 = vcombine.high %v1355, %v1387
    %v1401 = vcombine.low %v1362, %v1394
    %v1402 = vcombine.high %v1362, %v1394
    %v1403 = vcombine.low %v1259, %v1261
    %v1404 = vcombine.high %v1259, %v1261
    %v1406 = vunpack.c.l.s4 1983009808
    %v1407 = vunpack.c.0.s8 %v1406
    %v1408 = vlaneseq
    %v1409 = vshrl.u32 %v1408, 7
    %v1410 = vsub.s32 %v1407, %v1409
    %v1411 = vrot.slane %v1403, %v1410
    %v1413 = vunpack.c.l.s4 1983009808
    %v1414 = vunpack.c.0.s8 %v1413
    %v1415 = vlaneseq
    %v1416 = vshrl.u32 %v1415, 7
    %v1417 = vsub.s32 %v1414, %v1416
    %v1418 = vrot.slane %v1404, %v1417
    %v1419 = vcombine.low %v1260, %v1262
    %v1420 = vcombine.high %v1260, %v1262
    %v1422 = vunpack.c.l.s4 1983009808
    %v1423 = vunpack.c.0.s8 %v1422
    %v1424 = vlaneseq
    %v1425 = vshrl.u32 %v1424, 7
    %v1426 = vsub.s32 %v1423, %v1425
    %v1427 = vrot.slane %v1419, %v1426
    %v1429 = vunpack.c.l.s4 1983009808
    %v1430 = vunpack.c.0.s8 %v1429
    %v1431 = vlaneseq
    %v1432 = vshrl.u32 %v1431, 7
    %v1433 = vsub.s32 %v1430, %v1432
    %v1434 = vrot.slane %v1420, %v1433
    %v1435 = vcombine.low %v1263, %v1265
    %v1436 = vcombine.high %v1263, %v1265
    %v1438 = vunpack.c.l.s4 1983009808
    %v1439 = vunpack.c.0.s8 %v1438
    %v1440 = vlaneseq
    %v1441 = vshrl.u32 %v1440, 7
    %v1442 = vsub.s32 %v1439, %v1441
    %v1443 = vrot.slane %v1435, %v1442
    %v1445 = vunpack.c.l.s4 1983009808
    %v1446 = vunpack.c.0.s8 %v1445
    %v1447 = vlaneseq
    %v1448 = vshrl.u32 %v1447, 7
    %v1449 = vsub.s32 %v1446, %v1448
    %v1450 = vrot.slane %v1436, %v1449
    %v1451 = vcombine.low %v1264, %v1266
    %v1452 = vcombine.high %v1264, %v1266
    %v1454 = vunpack.c.l.s4 1983009808
    %v1455 = vunpack.c.0.s8 %v1454
    %v1456 = vlaneseq
    %v1457 = vshrl.u32 %v1456, 7
    %v1458 = vsub.s32 %v1455, %v1457
    %v1459 = vrot.slane %v1451, %v1458
    %v1461 = vunpack.c.l.s4 1983009808
    %v1462 = vunpack.c.0.s8 %v1461
    %v1463 = vlaneseq
    %v1464 = vshrl.u32 %v1463, 7
    %v1465 = vsub.s32 %v1462, %v1464
    %v1466 = vrot.slane %v1452, %v1465
    %v1467 = vcombine.low %v1411, %v1427
    %v1468 = vcombine.high %v1411, %v1427
    %v1470 = vunpack.c.l.s4 1934713408
    %v1471 = vunpack.c.0.s8 %v1470
    %v1472 = vlaneseq
    %v1473 = vshrl.u32 %v1472, 7
    %v1474 = vsub.s32 %v1471, %v1473
    %v1475 = vrot.slane %v1467, %v1474
    %v1477 = vunpack.c.l.s4 1934713408
    %v1478 = vunpack.c.0.s8 %v1477
    %v1479 = vlaneseq
    %v1480 = vshrl.u32 %v1479, 7
    %v1481 = vsub.s32 %v1478, %v1480
    %v1482 = vrot.slane %v1468, %v1481
    %v1483 = vcombine.low %v1418, %v1434
    %v1484 = vcombine.high %v1418, %v1434
    %v1486 = vunpack.c.l.s4 1934713408
    %v1487 = vunpack.c.0.s8 %v1486
    %v1488 = vlaneseq
    %v1489 = vshrl.u32 %v1488, 7
    %v1490 = vsub.s32 %v1487, %v1489
    %v1491 = vrot.slane %v1483, %v1490
    %v1493 = vunpack.c.l.s4 1934713408
    %v1494 = vunpack.c.0.s8 %v1493
    %v1495 = vlaneseq
    %v1496 = vshrl.u32 %v1495, 7
    %v1497 = vsub.s32 %v1494, %v1496
    %v1498 = vrot.slane %v1484, %v1497
    %v1499 = vcombine.low %v1443, %v1459
    %v1500 = vcombine.high %v1443, %v1459
    %v1502 = vunpack.c.l.s4 1934713408
    %v1503 = vunpack.c.0.s8 %v1502
    %v1504 = vlaneseq
    %v1505 = vshrl.u32 %v1504, 7
    %v1506 = vsub.s32 %v1503, %v1505
    %v1507 = vrot.slane %v1499, %v1506
    %v1509 = vunpack.c.l.s4 1934713408
    %v1510 = vunpack.c.0.s8 %v1509
    %v1511 = vlaneseq
    %v1512 = vshrl.u32 %v1511, 7
    %v1513 = vsub.s32 %v1510, %v1512
    %v1514 = vrot.slane %v1500, %v1513
    %v1515 = vcombine.low %v1450, %v1466
    %v1516 = vcombine.high %v1450, %v1466
    %v1518 = vunpack.c.l.s4 1934713408
    %v1519 = vunpack.c.0.s8 %v1518
    %v1520 = vlaneseq
    %v1521 = vshrl.u32 %v1520, 7
    %v1522 = vsub.s32 %v1519, %v1521
    %v1523 = vrot.slane %v1515, %v1522
    %v1525 = vunpack.c.l.s4 1934713408
    %v1526 = vunpack.c.0.s8 %v1525
    %v1527 = vlaneseq
    %v1528 = vshrl.u32 %v1527, 7
    %v1529 = vsub.s32 %v1526, %v1528
    %v1530 = vrot.slane %v1516, %v1529
    %v1531 = vcombine.low %v1475, %v1507
    %v1532 = vcombine.high %v1475, %v1507
    %v1533 = vcombine.low %v1482, %v1514
    %v1534 = vcombine.high %v1482, %v1514
    %v1535 = vcombine.low %v1491, %v1523
    %v1536 = vcombine.high %v1491, %v1523
    %v1537 = vcombine.low %v1498, %v1530
    %v1538 = vcombine.high %v1498, %v1530
    %1541 = vrot.lane.b32.xlu0 %v355, 124
    %v1542 = vpop.permute.xlu0 %1541
    %1543 = vrot.lane.b32.xlu0 %v360, 124
    %v1544 = vpop.permute.xlu0 %1543
    %1547 = vrot.lane.b32.xlu0 %v355, 120
    %v1548 = vpop.permute.xlu0 %1547
    %1549 = vrot.lane.b32.xlu0 %v360, 120
    %v1550 = vpop.permute.xlu0 %1549
    %1553 = vrot.lane.b32.xlu0 %v355, 116
    %v1554 = vpop.permute.xlu0 %1553
    %1555 = vrot.lane.b32.xlu0 %v360, 116
    %v1556 = vpop.permute.xlu0 %1555
    %1559 = vrot.lane.b32.xlu0 %v355, 112
    %v1560 = vpop.permute.xlu0 %1559
    %1561 = vrot.lane.b32.xlu0 %v360, 112
    %v1562 = vpop.permute.xlu0 %1561
    %1565 = vrot.lane.b32.xlu0 %v355, 108
    %v1566 = vpop.permute.xlu0 %1565
    %1567 = vrot.lane.b32.xlu0 %v360, 108
    %v1568 = vpop.permute.xlu0 %1567
    %1571 = vrot.lane.b32.xlu0 %v355, 104
    %v1572 = vpop.permute.xlu0 %1571
    %1573 = vrot.lane.b32.xlu0 %v360, 104
    %v1574 = vpop.permute.xlu0 %1573
    %1577 = vrot.lane.b32.xlu0 %v355, 100
    %v1578 = vpop.permute.xlu0 %1577
    %1579 = vrot.lane.b32.xlu0 %v360, 100
    %v1580 = vpop.permute.xlu0 %1579
    %v1583 = vcombine.low %v355, %v1548
    %v1584 = vcombine.high %v355, %v1548
    %v1586 = vunpack.c.l.s4 1983009808
    %v1587 = vunpack.c.0.s8 %v1586
    %v1588 = vlaneseq
    %v1589 = vshrl.u32 %v1588, 7
    %v1590 = vsub.s32 %v1587, %v1589
    %v1591 = vrot.slane %v1583, %v1590
    %v1593 = vunpack.c.l.s4 1983009808
    %v1594 = vunpack.c.0.s8 %v1593
    %v1595 = vlaneseq
    %v1596 = vshrl.u32 %v1595, 7
    %v1597 = vsub.s32 %v1594, %v1596
    %v1598 = vrot.slane %v1584, %v1597
    %v1599 = vcombine.low %v1542, %v1554
    %v1600 = vcombine.high %v1542, %v1554
    %v1602 = vunpack.c.l.s4 1983009808
    %v1603 = vunpack.c.0.s8 %v1602
    %v1604 = vlaneseq
    %v1605 = vshrl.u32 %v1604, 7
    %v1606 = vsub.s32 %v1603, %v1605
    %v1607 = vrot.slane %v1599, %v1606
    %v1609 = vunpack.c.l.s4 1983009808
    %v1610 = vunpack.c.0.s8 %v1609
    %v1611 = vlaneseq
    %v1612 = vshrl.u32 %v1611, 7
    %v1613 = vsub.s32 %v1610, %v1612
    %v1614 = vrot.slane %v1600, %v1613
    %v1615 = vcombine.low %v1560, %v1572
    %v1616 = vcombine.high %v1560, %v1572
    %v1618 = vunpack.c.l.s4 1983009808
    %v1619 = vunpack.c.0.s8 %v1618
    %v1620 = vlaneseq
    %v1621 = vshrl.u32 %v1620, 7
    %v1622 = vsub.s32 %v1619, %v1621
    %v1623 = vrot.slane %v1615, %v1622
    %v1625 = vunpack.c.l.s4 1983009808
    %v1626 = vunpack.c.0.s8 %v1625
    %v1627 = vlaneseq
    %v1628 = vshrl.u32 %v1627, 7
    %v1629 = vsub.s32 %v1626, %v1628
    %v1630 = vrot.slane %v1616, %v1629
    %v1631 = vcombine.low %v1566, %v1578
    %v1632 = vcombine.high %v1566, %v1578
    %v1634 = vunpack.c.l.s4 1983009808
    %v1635 = vunpack.c.0.s8 %v1634
    %v1636 = vlaneseq
    %v1637 = vshrl.u32 %v1636, 7
    %v1638 = vsub.s32 %v1635, %v1637
    %v1639 = vrot.slane %v1631, %v1638
    %v1641 = vunpack.c.l.s4 1983009808
    %v1642 = vunpack.c.0.s8 %v1641
    %v1643 = vlaneseq
    %v1644 = vshrl.u32 %v1643, 7
    %v1645 = vsub.s32 %v1642, %v1644
    %v1646 = vrot.slane %v1632, %v1645
    %v1647 = vcombine.low %v1591, %v1607
    %v1648 = vcombine.high %v1591, %v1607
    %v1650 = vunpack.c.l.s4 1934713408
    %v1651 = vunpack.c.0.s8 %v1650
    %v1652 = vlaneseq
    %v1653 = vshrl.u32 %v1652, 7
    %v1654 = vsub.s32 %v1651, %v1653
    %v1655 = vrot.slane %v1647, %v1654
    %v1657 = vunpack.c.l.s4 1934713408
    %v1658 = vunpack.c.0.s8 %v1657
    %v1659 = vlaneseq
    %v1660 = vshrl.u32 %v1659, 7
    %v1661 = vsub.s32 %v1658, %v1660
    %v1662 = vrot.slane %v1648, %v1661
    %v1663 = vcombine.low %v1598, %v1614
    %v1664 = vcombine.high %v1598, %v1614
    %v1666 = vunpack.c.l.s4 1934713408
    %v1667 = vunpack.c.0.s8 %v1666
    %v1668 = vlaneseq
    %v1669 = vshrl.u32 %v1668, 7
    %v1670 = vsub.s32 %v1667, %v1669
    %v1671 = vrot.slane %v1663, %v1670
    %v1673 = vunpack.c.l.s4 1934713408
    %v1674 = vunpack.c.0.s8 %v1673
    %v1675 = vlaneseq
    %v1676 = vshrl.u32 %v1675, 7
    %v1677 = vsub.s32 %v1674, %v1676
    %v1678 = vrot.slane %v1664, %v1677
    %v1679 = vcombine.low %v1623, %v1639
    %v1680 = vcombine.high %v1623, %v1639
    %v1682 = vunpack.c.l.s4 1934713408
    %v1683 = vunpack.c.0.s8 %v1682
    %v1684 = vlaneseq
    %v1685 = vshrl.u32 %v1684, 7
    %v1686 = vsub.s32 %v1683, %v1685
    %v1687 = vrot.slane %v1679, %v1686
    %v1689 = vunpack.c.l.s4 1934713408
    %v1690 = vunpack.c.0.s8 %v1689
    %v1691 = vlaneseq
    %v1692 = vshrl.u32 %v1691, 7
    %v1693 = vsub.s32 %v1690, %v1692
    %v1694 = vrot.slane %v1680, %v1693
    %v1695 = vcombine.low %v1630, %v1646
    %v1696 = vcombine.high %v1630, %v1646
    %v1698 = vunpack.c.l.s4 1934713408
    %v1699 = vunpack.c.0.s8 %v1698
    %v1700 = vlaneseq
    %v1701 = vshrl.u32 %v1700, 7
    %v1702 = vsub.s32 %v1699, %v1701
    %v1703 = vrot.slane %v1695, %v1702
    %v1705 = vunpack.c.l.s4 1934713408
    %v1706 = vunpack.c.0.s8 %v1705
    %v1707 = vlaneseq
    %v1708 = vshrl.u32 %v1707, 7
    %v1709 = vsub.s32 %v1706, %v1708
    %v1710 = vrot.slane %v1696, %v1709
    %v1711 = vcombine.low %v1655, %v1687
    %v1712 = vcombine.high %v1655, %v1687
    %v1713 = vcombine.low %v1662, %v1694
    %v1714 = vcombine.high %v1662, %v1694
    %v1715 = vcombine.low %v1671, %v1703
    %v1716 = vcombine.high %v1671, %v1703
    %v1717 = vcombine.low %v1678, %v1710
    %v1718 = vcombine.high %v1678, %v1710
    %v1719 = vcombine.low %v360, %v1550
    %v1720 = vcombine.high %v360, %v1550
    %v1722 = vunpack.c.l.s4 1983009808
    %v1723 = vunpack.c.0.s8 %v1722
    %v1724 = vlaneseq
    %v1725 = vshrl.u32 %v1724, 7
    %v1726 = vsub.s32 %v1723, %v1725
    %v1727 = vrot.slane %v1719, %v1726
    %v1729 = vunpack.c.l.s4 1983009808
    %v1730 = vunpack.c.0.s8 %v1729
    %v1731 = vlaneseq
    %v1732 = vshrl.u32 %v1731, 7
    %v1733 = vsub.s32 %v1730, %v1732
    %v1734 = vrot.slane %v1720, %v1733
    %v1735 = vcombine.low %v1544, %v1556
    %v1736 = vcombine.high %v1544, %v1556
    %v1738 = vunpack.c.l.s4 1983009808
    %v1739 = vunpack.c.0.s8 %v1738
    %v1740 = vlaneseq
    %v1741 = vshrl.u32 %v1740, 7
    %v1742 = vsub.s32 %v1739, %v1741
    %v1743 = vrot.slane %v1735, %v1742
    %v1745 = vunpack.c.l.s4 1983009808
    %v1746 = vunpack.c.0.s8 %v1745
    %v1747 = vlaneseq
    %v1748 = vshrl.u32 %v1747, 7
    %v1749 = vsub.s32 %v1746, %v1748
    %v1750 = vrot.slane %v1736, %v1749
    %v1751 = vcombine.low %v1562, %v1574
    %v1752 = vcombine.high %v1562, %v1574
    %v1754 = vunpack.c.l.s4 1983009808
    %v1755 = vunpack.c.0.s8 %v1754
    %v1756 = vlaneseq
    %v1757 = vshrl.u32 %v1756, 7
    %v1758 = vsub.s32 %v1755, %v1757
    %v1759 = vrot.slane %v1751, %v1758
    %v1761 = vunpack.c.l.s4 1983009808
    %v1762 = vunpack.c.0.s8 %v1761
    %v1763 = vlaneseq
    %v1764 = vshrl.u32 %v1763, 7
    %v1765 = vsub.s32 %v1762, %v1764
    %v1766 = vrot.slane %v1752, %v1765
    %v1767 = vcombine.low %v1568, %v1580
    %v1768 = vcombine.high %v1568, %v1580
    %v1770 = vunpack.c.l.s4 1983009808
    %v1771 = vunpack.c.0.s8 %v1770
    %v1772 = vlaneseq
    %v1773 = vshrl.u32 %v1772, 7
    %v1774 = vsub.s32 %v1771, %v1773
    %v1775 = vrot.slane %v1767, %v1774
    %v1777 = vunpack.c.l.s4 1983009808
    %v1778 = vunpack.c.0.s8 %v1777
    %v1779 = vlaneseq
    %v1780 = vshrl.u32 %v1779, 7
    %v1781 = vsub.s32 %v1778, %v1780
    %v1782 = vrot.slane %v1768, %v1781
    %v1783 = vcombine.low %v1727, %v1743
    %v1784 = vcombine.high %v1727, %v1743
    %v1786 = vunpack.c.l.s4 1934713408
    %v1787 = vunpack.c.0.s8 %v1786
    %v1788 = vlaneseq
    %v1789 = vshrl.u32 %v1788, 7
    %v1790 = vsub.s32 %v1787, %v1789
    %v1791 = vrot.slane %v1783, %v1790
    %v1793 = vunpack.c.l.s4 1934713408
    %v1794 = vunpack.c.0.s8 %v1793
    %v1795 = vlaneseq
    %v1796 = vshrl.u32 %v1795, 7
    %v1797 = vsub.s32 %v1794, %v1796
    %v1798 = vrot.slane %v1784, %v1797
    %v1799 = vcombine.low %v1734, %v1750
    %v1800 = vcombine.high %v1734, %v1750
    %v1802 = vunpack.c.l.s4 1934713408
    %v1803 = vunpack.c.0.s8 %v1802
    %v1804 = vlaneseq
    %v1805 = vshrl.u32 %v1804, 7
    %v1806 = vsub.s32 %v1803, %v1805
    %v1807 = vrot.slane %v1799, %v1806
    %v1809 = vunpack.c.l.s4 1934713408
    %v1810 = vunpack.c.0.s8 %v1809
    %v1811 = vlaneseq
    %v1812 = vshrl.u32 %v1811, 7
    %v1813 = vsub.s32 %v1810, %v1812
    %v1814 = vrot.slane %v1800, %v1813
    %v1815 = vcombine.low %v1759, %v1775
    %v1816 = vcombine.high %v1759, %v1775
    %v1818 = vunpack.c.l.s4 1934713408
    %v1819 = vunpack.c.0.s8 %v1818
    %v1820 = vlaneseq
    %v1821 = vshrl.u32 %v1820, 7
    %v1822 = vsub.s32 %v1819, %v1821
    %v1823 = vrot.slane %v1815, %v1822
    %v1825 = vunpack.c.l.s4 1934713408
    %v1826 = vunpack.c.0.s8 %v1825
    %v1827 = vlaneseq
    %v1828 = vshrl.u32 %v1827, 7
    %v1829 = vsub.s32 %v1826, %v1828
    %v1830 = vrot.slane %v1816, %v1829
    %v1831 = vcombine.low %v1766, %v1782
    %v1832 = vcombine.high %v1766, %v1782
    %v1834 = vunpack.c.l.s4 1934713408
    %v1835 = vunpack.c.0.s8 %v1834
    %v1836 = vlaneseq
    %v1837 = vshrl.u32 %v1836, 7
    %v1838 = vsub.s32 %v1835, %v1837
    %v1839 = vrot.slane %v1831, %v1838
    %v1841 = vunpack.c.l.s4 1934713408
    %v1842 = vunpack.c.0.s8 %v1841
    %v1843 = vlaneseq
    %v1844 = vshrl.u32 %v1843, 7
    %v1845 = vsub.s32 %v1842, %v1844
    %v1846 = vrot.slane %v1832, %v1845
    %v1847 = vcombine.low %v1791, %v1823
    %v1848 = vcombine.high %v1791, %v1823
    %v1849 = vcombine.low %v1798, %v1830
    %v1850 = vcombine.high %v1798, %v1830
    %v1851 = vcombine.low %v1807, %v1839
    %v1852 = vcombine.high %v1807, %v1839
    %v1853 = vcombine.low %v1814, %v1846
    %v1854 = vcombine.high %v1814, %v1846
    %v1855 = vcombine.low %v1711, %v1713
    %v1856 = vcombine.high %v1711, %v1713
    %v1858 = vunpack.c.l.s4 1983009808
    %v1859 = vunpack.c.0.s8 %v1858
    %v1860 = vlaneseq
    %v1861 = vshrl.u32 %v1860, 7
    %v1862 = vsub.s32 %v1859, %v1861
    %v1863 = vrot.slane %v1855, %v1862
    %v1865 = vunpack.c.l.s4 1983009808
    %v1866 = vunpack.c.0.s8 %v1865
    %v1867 = vlaneseq
    %v1868 = vshrl.u32 %v1867, 7
    %v1869 = vsub.s32 %v1866, %v1868
    %v1870 = vrot.slane %v1856, %v1869
    %v1871 = vcombine.low %v1712, %v1714
    %v1872 = vcombine.high %v1712, %v1714
    %v1874 = vunpack.c.l.s4 1983009808
    %v1875 = vunpack.c.0.s8 %v1874
    %v1876 = vlaneseq
    %v1877 = vshrl.u32 %v1876, 7
    %v1878 = vsub.s32 %v1875, %v1877
    %v1879 = vrot.slane %v1871, %v1878
    %v1881 = vunpack.c.l.s4 1983009808
    %v1882 = vunpack.c.0.s8 %v1881
    %v1883 = vlaneseq
    %v1884 = vshrl.u32 %v1883, 7
    %v1885 = vsub.s32 %v1882, %v1884
    %v1886 = vrot.slane %v1872, %v1885
    %v1887 = vcombine.low %v1715, %v1717
    %v1888 = vcombine.high %v1715, %v1717
    %v1890 = vunpack.c.l.s4 1983009808
    %v1891 = vunpack.c.0.s8 %v1890
    %v1892 = vlaneseq
    %v1893 = vshrl.u32 %v1892, 7
    %v1894 = vsub.s32 %v1891, %v1893
    %v1895 = vrot.slane %v1887, %v1894
    %v1897 = vunpack.c.l.s4 1983009808
    %v1898 = vunpack.c.0.s8 %v1897
    %v1899 = vlaneseq
    %v1900 = vshrl.u32 %v1899, 7
    %v1901 = vsub.s32 %v1898, %v1900
    %v1902 = vrot.slane %v1888, %v1901
    %v1903 = vcombine.low %v1716, %v1718
    %v1904 = vcombine.high %v1716, %v1718
    %v1906 = vunpack.c.l.s4 1983009808
    %v1907 = vunpack.c.0.s8 %v1906
    %v1908 = vlaneseq
    %v1909 = vshrl.u32 %v1908, 7
    %v1910 = vsub.s32 %v1907, %v1909
    %v1911 = vrot.slane %v1903, %v1910
    %v1913 = vunpack.c.l.s4 1983009808
    %v1914 = vunpack.c.0.s8 %v1913
    %v1915 = vlaneseq
    %v1916 = vshrl.u32 %v1915, 7
    %v1917 = vsub.s32 %v1914, %v1916
    %v1918 = vrot.slane %v1904, %v1917
    %v1919 = vcombine.low %v1863, %v1879
    %v1920 = vcombine.high %v1863, %v1879
    %v1922 = vunpack.c.l.s4 1934713408
    %v1923 = vunpack.c.0.s8 %v1922
    %v1924 = vlaneseq
    %v1925 = vshrl.u32 %v1924, 7
    %v1926 = vsub.s32 %v1923, %v1925
    %v1927 = vrot.slane %v1919, %v1926
    %v1929 = vunpack.c.l.s4 1934713408
    %v1930 = vunpack.c.0.s8 %v1929
    %v1931 = vlaneseq
    %v1932 = vshrl.u32 %v1931, 7
    %v1933 = vsub.s32 %v1930, %v1932
    %v1934 = vrot.slane %v1920, %v1933
    %v1935 = vcombine.low %v1870, %v1886
    %v1936 = vcombine.high %v1870, %v1886
    %v1938 = vunpack.c.l.s4 1934713408
    %v1939 = vunpack.c.0.s8 %v1938
    %v1940 = vlaneseq
    %v1941 = vshrl.u32 %v1940, 7
    %v1942 = vsub.s32 %v1939, %v1941
    %v1943 = vrot.slane %v1935, %v1942
    %v1945 = vunpack.c.l.s4 1934713408
    %v1946 = vunpack.c.0.s8 %v1945
    %v1947 = vlaneseq
    %v1948 = vshrl.u32 %v1947, 7
    %v1949 = vsub.s32 %v1946, %v1948
    %v1950 = vrot.slane %v1936, %v1949
    %v1951 = vcombine.low %v1895, %v1911
    %v1952 = vcombine.high %v1895, %v1911
    %v1954 = vunpack.c.l.s4 1934713408
    %v1955 = vunpack.c.0.s8 %v1954
    %v1956 = vlaneseq
    %v1957 = vshrl.u32 %v1956, 7
    %v1958 = vsub.s32 %v1955, %v1957
    %v1959 = vrot.slane %v1951, %v1958
    %v1961 = vunpack.c.l.s4 1934713408
    %v1962 = vunpack.c.0.s8 %v1961
    %v1963 = vlaneseq
    %v1964 = vshrl.u32 %v1963, 7
    %v1965 = vsub.s32 %v1962, %v1964
    %v1966 = vrot.slane %v1952, %v1965
    %v1967 = vcombine.low %v1902, %v1918
    %v1968 = vcombine.high %v1902, %v1918
    %v1970 = vunpack.c.l.s4 1934713408
    %v1971 = vunpack.c.0.s8 %v1970
    %v1972 = vlaneseq
    %v1973 = vshrl.u32 %v1972, 7
    %v1974 = vsub.s32 %v1971, %v1973
    %v1975 = vrot.slane %v1967, %v1974
    %v1977 = vunpack.c.l.s4 1934713408
    %v1978 = vunpack.c.0.s8 %v1977
    %v1979 = vlaneseq
    %v1980 = vshrl.u32 %v1979, 7
    %v1981 = vsub.s32 %v1978, %v1980
    %v1982 = vrot.slane %v1968, %v1981
    %v1983 = vcombine.low %v1927, %v1959
    %v1984 = vcombine.high %v1927, %v1959
    %v1985 = vcombine.low %v1934, %v1966
    %v1986 = vcombine.high %v1934, %v1966
    %v1987 = vcombine.low %v1943, %v1975
    %v1988 = vcombine.high %v1943, %v1975
    %v1989 = vcombine.low %v1950, %v1982
    %v1990 = vcombine.high %v1950, %v1982
    %v1991 = vcombine.low %v1847, %v1849
    %v1992 = vcombine.high %v1847, %v1849
    %v1994 = vunpack.c.l.s4 1983009808
    %v1995 = vunpack.c.0.s8 %v1994
    %v1996 = vlaneseq
    %v1997 = vshrl.u32 %v1996, 7
    %v1998 = vsub.s32 %v1995, %v1997
    %v1999 = vrot.slane %v1991, %v1998
    %v2001 = vunpack.c.l.s4 1983009808
    %v2002 = vunpack.c.0.s8 %v2001
    %v2003 = vlaneseq
    %v2004 = vshrl.u32 %v2003, 7
    %v2005 = vsub.s32 %v2002, %v2004
    %v2006 = vrot.slane %v1992, %v2005
    %v2007 = vcombine.low %v1848, %v1850
    %v2008 = vcombine.high %v1848, %v1850
    %v2010 = vunpack.c.l.s4 1983009808
    %v2011 = vunpack.c.0.s8 %v2010
    %v2012 = vlaneseq
    %v2013 = vshrl.u32 %v2012, 7
    %v2014 = vsub.s32 %v2011, %v2013
    %v2015 = vrot.slane %v2007, %v2014
    %v2017 = vunpack.c.l.s4 1983009808
    %v2018 = vunpack.c.0.s8 %v2017
    %v2019 = vlaneseq
    %v2020 = vshrl.u32 %v2019, 7
    %v2021 = vsub.s32 %v2018, %v2020
    %v2022 = vrot.slane %v2008, %v2021
    %v2023 = vcombine.low %v1851, %v1853
    %v2024 = vcombine.high %v1851, %v1853
    %v2026 = vunpack.c.l.s4 1983009808
    %v2027 = vunpack.c.0.s8 %v2026
    %v2028 = vlaneseq
    %v2029 = vshrl.u32 %v2028, 7
    %v2030 = vsub.s32 %v2027, %v2029
    %v2031 = vrot.slane %v2023, %v2030
    %v2033 = vunpack.c.l.s4 1983009808
    %v2034 = vunpack.c.0.s8 %v2033
    %v2035 = vlaneseq
    %v2036 = vshrl.u32 %v2035, 7
    %v2037 = vsub.s32 %v2034, %v2036
    %v2038 = vrot.slane %v2024, %v2037
    %v2039 = vcombine.low %v1852, %v1854
    %v2040 = vcombine.high %v1852, %v1854
    %v2042 = vunpack.c.l.s4 1983009808
    %v2043 = vunpack.c.0.s8 %v2042
    %v2044 = vlaneseq
    %v2045 = vshrl.u32 %v2044, 7
    %v2046 = vsub.s32 %v2043, %v2045
    %v2047 = vrot.slane %v2039, %v2046
    %v2049 = vunpack.c.l.s4 1983009808
    %v2050 = vunpack.c.0.s8 %v2049
    %v2051 = vlaneseq
    %v2052 = vshrl.u32 %v2051, 7
    %v2053 = vsub.s32 %v2050, %v2052
    %v2054 = vrot.slane %v2040, %v2053
    %v2055 = vcombine.low %v1999, %v2015
    %v2056 = vcombine.high %v1999, %v2015
    %v2058 = vunpack.c.l.s4 1934713408
    %v2059 = vunpack.c.0.s8 %v2058
    %v2060 = vlaneseq
    %v2061 = vshrl.u32 %v2060, 7
    %v2062 = vsub.s32 %v2059, %v2061
    %v2063 = vrot.slane %v2055, %v2062
    %v2065 = vunpack.c.l.s4 1934713408
    %v2066 = vunpack.c.0.s8 %v2065
    %v2067 = vlaneseq
    %v2068 = vshrl.u32 %v2067, 7
    %v2069 = vsub.s32 %v2066, %v2068
    %v2070 = vrot.slane %v2056, %v2069
    %v2071 = vcombine.low %v2006, %v2022
    %v2072 = vcombine.high %v2006, %v2022
    %v2074 = vunpack.c.l.s4 1934713408
    %v2075 = vunpack.c.0.s8 %v2074
    %v2076 = vlaneseq
    %v2077 = vshrl.u32 %v2076, 7
    %v2078 = vsub.s32 %v2075, %v2077
    %v2079 = vrot.slane %v2071, %v2078
    %v2081 = vunpack.c.l.s4 1934713408
    %v2082 = vunpack.c.0.s8 %v2081
    %v2083 = vlaneseq
    %v2084 = vshrl.u32 %v2083, 7
    %v2085 = vsub.s32 %v2082, %v2084
    %v2086 = vrot.slane %v2072, %v2085
    %v2087 = vcombine.low %v2031, %v2047
    %v2088 = vcombine.high %v2031, %v2047
    %v2090 = vunpack.c.l.s4 1934713408
    %v2091 = vunpack.c.0.s8 %v2090
    %v2092 = vlaneseq
    %v2093 = vshrl.u32 %v2092, 7
    %v2094 = vsub.s32 %v2091, %v2093
    %v2095 = vrot.slane %v2087, %v2094
    %v2097 = vunpack.c.l.s4 1934713408
    %v2098 = vunpack.c.0.s8 %v2097
    %v2099 = vlaneseq
    %v2100 = vshrl.u32 %v2099, 7
    %v2101 = vsub.s32 %v2098, %v2100
    %v2102 = vrot.slane %v2088, %v2101
    %v2103 = vcombine.low %v2038, %v2054
    %v2104 = vcombine.high %v2038, %v2054
    %v2106 = vunpack.c.l.s4 1934713408
    %v2107 = vunpack.c.0.s8 %v2106
    %v2108 = vlaneseq
    %v2109 = vshrl.u32 %v2108, 7
    %v2110 = vsub.s32 %v2107, %v2109
    %v2111 = vrot.slane %v2103, %v2110
    %v2113 = vunpack.c.l.s4 1934713408
    %v2114 = vunpack.c.0.s8 %v2113
    %v2115 = vlaneseq
    %v2116 = vshrl.u32 %v2115, 7
    %v2117 = vsub.s32 %v2114, %v2116
    %v2118 = vrot.slane %v2104, %v2117
    %v2119 = vcombine.low %v2063, %v2095
    %v2120 = vcombine.high %v2063, %v2095
    %v2121 = vcombine.low %v2070, %v2102
    %v2122 = vcombine.high %v2070, %v2102
    %v2123 = vcombine.low %v2079, %v2111
    %v2124 = vcombine.high %v2079, %v2111
    %v2125 = vcombine.low %v2086, %v2118
    %v2126 = vcombine.high %v2086, %v2118
    %vm2127 = vcmask 31744
    %v2129 = vsel %vm2127, %v807, 0
    %v2132 = vsel %vm2127, %v1395, 0
    %2134 = vmatprep.subr.mxu0 0.0
    %2135 = vmatpush1.xpose.msra.mxu0 %v2132
    %2136 = vmatprep.subr.mxu0 0.0
    %2137 = vmatpush1.xpose.msra.mxu0 0.0
    %2138 = vmatprep.subr.mxu0 0.0
    %2139 = vmatpush1.xpose.msra.mxu0 0.0
    %2140 = vmatprep.subr.mxu0 0.0
    %2141 = vmatpush1.xpose.msra.mxu0 0.0
    %2142 = vmatprep.subr.mxu0 0.0
    %2143 = vmatpush1.xpose.msra.mxu0 0.0
    %2144 = vmatprep.subr.mxu0 0.0
    %2145 = vmatpush1.xpose.msra.mxu0 0.0
    %2146 = vmatprep.subr.mxu0 0.0
    %2147 = vmatpush1.xpose.msra.mxu0 0.0
    %2148 = vmatprep.subr.mxu0 0.0
    %2149 = vmatpush1.xpose.msra.mxu0 0.0
    %2150 = vmatprep.subr.mxu0 0.0
    %2151 = vmatpush1.xpose.msra.mxu0 0.0
    %2152 = vmatprep.subr.mxu0 0.0
    %2153 = vmatpush1.xpose.msra.mxu0 0.0
    %2154 = vmatprep.subr.mxu0 0.0
    %2155 = vmatpush1.xpose.msra.mxu0 0.0
    %2156 = vmatprep.subr.mxu0 0.0
    %2157 = vmatpush1.xpose.msra.mxu0 0.0
    %2158 = vmatprep.subr.mxu0 0.0
    %2159 = vmatpush1.xpose.msra.mxu0 0.0
    %2160 = vmatprep.subr.mxu0 0.0
    %2161 = vmatpush1.xpose.msra.mxu0 0.0
    %2162 = vmatprep.subr.mxu0 0.0
    %2163 = vmatpush1.xpose.msra.mxu0 0.0
    %2164 = vmatprep.subr.mxu0 0.0
    %2165 = vmatpush1.xpose.msra.mxu0 0.0
    %2166 = vmatprep.subr.mxu0 0.0
    %2167 = vmatpush1.xpose.msra.mxu0 0.0
    %2168 = vmatprep.subr.mxu0 0.0
    %2169 = vmatpush1.xpose.msra.mxu0 0.0
    %2170 = vmatprep.subr.mxu0 0.0
    %2171 = vmatpush1.xpose.msra.mxu0 0.0
    %2172 = vmatprep.subr.mxu0 0.0
    %2173 = vmatpush1.xpose.msra.mxu0 0.0
    %2174 = vmatprep.subr.mxu0 0.0
    %2175 = vmatpush1.xpose.msra.mxu0 0.0
    %2176 = vmatprep.subr.mxu0 0.0
    %2177 = vmatpush1.xpose.msra.mxu0 0.0
    %2178 = vmatprep.subr.mxu0 0.0
    %2179 = vmatpush1.xpose.msra.mxu0 0.0
    %2180 = vmatprep.subr.mxu0 0.0
    %2181 = vmatpush1.xpose.msra.mxu0 0.0
    %2182 = vmatprep.subr.mxu0 0.0
    %2183 = vmatpush1.xpose.msra.mxu0 0.0
    %2184 = vmatprep.subr.mxu0 0.0
    %2185 = vmatpush1.xpose.msra.mxu0 0.0
    %2186 = vmatprep.subr.mxu0 0.0
    %2187 = vmatpush1.xpose.msra.mxu0 0.0
    %2188 = vmatprep.subr.mxu0 0.0
    %2189 = vmatpush1.xpose.msra.mxu0 0.0
    %2190 = vmatprep.subr.mxu0 0.0
    %2191 = vmatpush1.xpose.msra.mxu0 0.0
    %2192 = vmatprep.subr.mxu0 0.0
    %2193 = vmatpush1.xpose.msra.mxu0 0.0
    %2194 = vmatprep.subr.mxu0 0.0
    %2195 = vmatpush1.xpose.msra.mxu0 0.0
    %2196 = vmatprep.subr.mxu0 0.0
    %2197 = vmatpush1.xpose.msra.mxu0 0.0
    %2198 = vmatprep.mubr.f32.mxu0 0.0
    %2199 = vmatmul.mubr.f32.gmra.mrb[0].mxu0 %v2129
    %v2200 = vpop.f32.mrb[0].mxu0
    %v2201 = vadd.f32 0.0, %v2200
    %v2202 = vpop.f32.mrb[0].mxu0
    %2203 = vdwg.mxu0
    %v2205 = vsel %vm2127, %v808, 0
    %v2208 = vsel %vm2127, %v1396, 0
    %2210 = vmatprep.subr.mxu0 0.0
    %2211 = vmatpush1.xpose.msra.mxu0 %v2208
    %2212 = vmatprep.subr.mxu0 0.0
    %2213 = vmatpush1.xpose.msra.mxu0 0.0
    %2214 = vmatprep.subr.mxu0 0.0
    %2215 = vmatpush1.xpose.msra.mxu0 0.0
    %2216 = vmatprep.subr.mxu0 0.0
    %2217 = vmatpush1.xpose.msra.mxu0 0.0
    %2218 = vmatprep.subr.mxu0 0.0
    %2219 = vmatpush1.xpose.msra.mxu0 0.0
    %2220 = vmatprep.subr.mxu0 0.0
    %2221 = vmatpush1.xpose.msra.mxu0 0.0
    %2222 = vmatprep.subr.mxu0 0.0
    %2223 = vmatpush1.xpose.msra.mxu0 0.0
    %2224 = vmatprep.subr.mxu0 0.0
    %2225 = vmatpush1.xpose.msra.mxu0 0.0
    %2226 = vmatprep.subr.mxu0 0.0
    %2227 = vmatpush1.xpose.msra.mxu0 0.0
    %2228 = vmatprep.subr.mxu0 0.0
    %2229 = vmatpush1.xpose.msra.mxu0 0.0
    %2230 = vmatprep.subr.mxu0 0.0
    %2231 = vmatpush1.xpose.msra.mxu0 0.0
    %2232 = vmatprep.subr.mxu0 0.0
    %2233 = vmatpush1.xpose.msra.mxu0 0.0
    %2234 = vmatprep.subr.mxu0 0.0
    %2235 = vmatpush1.xpose.msra.mxu0 0.0
    %2236 = vmatprep.subr.mxu0 0.0
    %2237 = vmatpush1.xpose.msra.mxu0 0.0
    %2238 = vmatprep.subr.mxu0 0.0
    %2239 = vmatpush1.xpose.msra.mxu0 0.0
    %2240 = vmatprep.subr.mxu0 0.0
    %2241 = vmatpush1.xpose.msra.mxu0 0.0
    %2242 = vmatprep.subr.mxu0 0.0
    %2243 = vmatpush1.xpose.msra.mxu0 0.0
    %2244 = vmatprep.subr.mxu0 0.0
    %2245 = vmatpush1.xpose.msra.mxu0 0.0
    %2246 = vmatprep.subr.mxu0 0.0
    %2247 = vmatpush1.xpose.msra.mxu0 0.0
    %2248 = vmatprep.subr.mxu0 0.0
    %2249 = vmatpush1.xpose.msra.mxu0 0.0
    %2250 = vmatprep.subr.mxu0 0.0
    %2251 = vmatpush1.xpose.msra.mxu0 0.0
    %2252 = vmatprep.subr.mxu0 0.0
    %2253 = vmatpush1.xpose.msra.mxu0 0.0
    %2254 = vmatprep.subr.mxu0 0.0
    %2255 = vmatpush1.xpose.msra.mxu0 0.0
    %2256 = vmatprep.subr.mxu0 0.0
    %2257 = vmatpush1.xpose.msra.mxu0 0.0
    %2258 = vmatprep.subr.mxu0 0.0
    %2259 = vmatpush1.xpose.msra.mxu0 0.0
    %2260 = vmatprep.subr.mxu0 0.0
    %2261 = vmatpush1.xpose.msra.mxu0 0.0
    %2262 = vmatprep.subr.mxu0 0.0
    %2263 = vmatpush1.xpose.msra.mxu0 0.0
    %2264 = vmatprep.subr.mxu0 0.0
    %2265 = vmatpush1.xpose.msra.mxu0 0.0
    %2266 = vmatprep.subr.mxu0 0.0
    %2267 = vmatpush1.xpose.msra.mxu0 0.0
    %2268 = vmatprep.subr.mxu0 0.0
    %2269 = vmatpush1.xpose.msra.mxu0 0.0
    %2270 = vmatprep.subr.mxu0 0.0
    %2271 = vmatpush1.xpose.msra.mxu0 0.0
    %2272 = vmatprep.subr.mxu0 0.0
    %2273 = vmatpush1.xpose.msra.mxu0 0.0
    %2274 = vmatprep.mubr.f32.mxu0 0.0
    %2275 = vmatmul.mubr.f32.gmra.mrb[0].mxu0 %v2205
    %v2276 = vpop.f32.mrb[0].mxu0
    %v2277 = vadd.f32 0.0, %v2276
    %v2278 = vpop.f32.mrb[0].mxu0
    %2279 = vdwg.mxu0
    %v2281 = vsel %vm2127, %v809, 0
    %v2284 = vsel %vm2127, %v1397, 0
    %2286 = vmatprep.subr.mxu0 0.0
    %2287 = vmatpush1.xpose.msra.mxu0 %v2284
    %2288 = vmatprep.subr.mxu0 0.0
    %2289 = vmatpush1.xpose.msra.mxu0 0.0
    %2290 = vmatprep.subr.mxu0 0.0
    %2291 = vmatpush1.xpose.msra.mxu0 0.0
    %2292 = vmatprep.subr.mxu0 0.0
    %2293 = vmatpush1.xpose.msra.mxu0 0.0
    %2294 = vmatprep.subr.mxu0 0.0
    %2295 = vmatpush1.xpose.msra.mxu0 0.0
    %2296 = vmatprep.subr.mxu0 0.0
    %2297 = vmatpush1.xpose.msra.mxu0 0.0
    %2298 = vmatprep.subr.mxu0 0.0
    %2299 = vmatpush1.xpose.msra.mxu0 0.0
    %2300 = vmatprep.subr.mxu0 0.0
    %2301 = vmatpush1.xpose.msra.mxu0 0.0
    %2302 = vmatprep.subr.mxu0 0.0
    %2303 = vmatpush1.xpose.msra.mxu0 0.0
    %2304 = vmatprep.subr.mxu0 0.0
    %2305 = vmatpush1.xpose.msra.mxu0 0.0
    %2306 = vmatprep.subr.mxu0 0.0
    %2307 = vmatpush1.xpose.msra.mxu0 0.0
    %2308 = vmatprep.subr.mxu0 0.0
    %2309 = vmatpush1.xpose.msra.mxu0 0.0
    %2310 = vmatprep.subr.mxu0 0.0
    %2311 = vmatpush1.xpose.msra.mxu0 0.0
    %2312 = vmatprep.subr.mxu0 0.0
    %2313 = vmatpush1.xpose.msra.mxu0 0.0
    %2314 = vmatprep.subr.mxu0 0.0
    %2315 = vmatpush1.xpose.msra.mxu0 0.0
    %2316 = vmatprep.subr.mxu0 0.0
    %2317 = vmatpush1.xpose.msra.mxu0 0.0
    %2318 = vmatprep.subr.mxu0 0.0
    %2319 = vmatpush1.xpose.msra.mxu0 0.0
    %2320 = vmatprep.subr.mxu0 0.0
    %2321 = vmatpush1.xpose.msra.mxu0 0.0
    %2322 = vmatprep.subr.mxu0 0.0
    %2323 = vmatpush1.xpose.msra.mxu0 0.0
    %2324 = vmatprep.subr.mxu0 0.0
    %2325 = vmatpush1.xpose.msra.mxu0 0.0
    %2326 = vmatprep.subr.mxu0 0.0
    %2327 = vmatpush1.xpose.msra.mxu0 0.0
    %2328 = vmatprep.subr.mxu0 0.0
    %2329 = vmatpush1.xpose.msra.mxu0 0.0
    %2330 = vmatprep.subr.mxu0 0.0
    %2331 = vmatpush1.xpose.msra.mxu0 0.0
    %2332 = vmatprep.subr.mxu0 0.0
    %2333 = vmatpush1.xpose.msra.mxu0 0.0
    %2334 = vmatprep.subr.mxu0 0.0
    %2335 = vmatpush1.xpose.msra.mxu0 0.0
    %2336 = vmatprep.subr.mxu0 0.0
    %2337 = vmatpush1.xpose.msra.mxu0 0.0
    %2338 = vmatprep.subr.mxu0 0.0
    %2339 = vmatpush1.xpose.msra.mxu0 0.0
    %2340 = vmatprep.subr.mxu0 0.0
    %2341 = vmatpush1.xpose.msra.mxu0 0.0
    %2342 = vmatprep.subr.mxu0 0.0
    %2343 = vmatpush1.xpose.msra.mxu0 0.0
    %2344 = vmatprep.subr.mxu0 0.0
    %2345 = vmatpush1.xpose.msra.mxu0 0.0
    %2346 = vmatprep.subr.mxu0 0.0
    %2347 = vmatpush1.xpose.msra.mxu0 0.0
    %2348 = vmatprep.subr.mxu0 0.0
    %2349 = vmatpush1.xpose.msra.mxu0 0.0
    %2350 = vmatprep.mubr.f32.mxu0 0.0
    %2351 = vmatmul.mubr.f32.gmra.mrb[0].mxu0 %v2281
    %v2352 = vpop.f32.mrb[0].mxu0
    %v2353 = vadd.f32 0.0, %v2352
    %v2354 = vpop.f32.mrb[0].mxu0
    %2355 = vdwg.mxu0
    %v2357 = vsel %vm2127, %v810, 0
    %v2360 = vsel %vm2127, %v1398, 0
    %2362 = vmatprep.subr.mxu0 0.0
    %2363 = vmatpush1.xpose.msra.mxu0 %v2360
    %2364 = vmatprep.subr.mxu0 0.0
    %2365 = vmatpush1.xpose.msra.mxu0 0.0
    %2366 = vmatprep.subr.mxu0 0.0
    %2367 = vmatpush1.xpose.msra.mxu0 0.0
    %2368 = vmatprep.subr.mxu0 0.0
    %2369 = vmatpush1.xpose.msra.mxu0 0.0
    %2370 = vmatprep.subr.mxu0 0.0
    %2371 = vmatpush1.xpose.msra.mxu0 0.0
    %2372 = vmatprep.subr.mxu0 0.0
    %2373 = vmatpush1.xpose.msra.mxu0 0.0
    %2374 = vmatprep.subr.mxu0 0.0
    %2375 = vmatpush1.xpose.msra.mxu0 0.0
    %2376 = vmatprep.subr.mxu0 0.0
    %2377 = vmatpush1.xpose.msra.mxu0 0.0
    %2378 = vmatprep.subr.mxu0 0.0
    %2379 = vmatpush1.xpose.msra.mxu0 0.0
    %2380 = vmatprep.subr.mxu0 0.0
    %2381 = vmatpush1.xpose.msra.mxu0 0.0
    %2382 = vmatprep.subr.mxu0 0.0
    %2383 = vmatpush1.xpose.msra.mxu0 0.0
    %2384 = vmatprep.subr.mxu0 0.0
    %2385 = vmatpush1.xpose.msra.mxu0 0.0
    %2386 = vmatprep.subr.mxu0 0.0
    %2387 = vmatpush1.xpose.msra.mxu0 0.0
    %2388 = vmatprep.subr.mxu0 0.0
    %2389 = vmatpush1.xpose.msra.mxu0 0.0
    %2390 = vmatprep.subr.mxu0 0.0
    %2391 = vmatpush1.xpose.msra.mxu0 0.0
    %2392 = vmatprep.subr.mxu0 0.0
    %2393 = vmatpush1.xpose.msra.mxu0 0.0
    %2394 = vmatprep.subr.mxu0 0.0
    %2395 = vmatpush1.xpose.msra.mxu0 0.0
    %2396 = vmatprep.subr.mxu0 0.0
    %2397 = vmatpush1.xpose.msra.mxu0 0.0
    %2398 = vmatprep.subr.mxu0 0.0
    %2399 = vmatpush1.xpose.msra.mxu0 0.0
    %2400 = vmatprep.subr.mxu0 0.0
    %2401 = vmatpush1.xpose.msra.mxu0 0.0
    %2402 = vmatprep.subr.mxu0 0.0
    %2403 = vmatpush1.xpose.msra.mxu0 0.0
    %2404 = vmatprep.subr.mxu0 0.0
    %2405 = vmatpush1.xpose.msra.mxu0 0.0
    %2406 = vmatprep.subr.mxu0 0.0
    %2407 = vmatpush1.xpose.msra.mxu0 0.0
    %2408 = vmatprep.subr.mxu0 0.0
    %2409 = vmatpush1.xpose.msra.mxu0 0.0
    %2410 = vmatprep.subr.mxu0 0.0
    %2411 = vmatpush1.xpose.msra.mxu0 0.0
    %2412 = vmatprep.subr.mxu0 0.0
    %2413 = vmatpush1.xpose.msra.mxu0 0.0
    %2414 = vmatprep.subr.mxu0 0.0
    %2415 = vmatpush1.xpose.msra.mxu0 0.0
    %2416 = vmatprep.subr.mxu0 0.0
    %2417 = vmatpush1.xpose.msra.mxu0 0.0
    %2418 = vmatprep.subr.mxu0 0.0
    %2419 = vmatpush1.xpose.msra.mxu0 0.0
    %2420 = vmatprep.subr.mxu0 0.0
    %2421 = vmatpush1.xpose.msra.mxu0 0.0
    %2422 = vmatprep.subr.mxu0 0.0
    %2423 = vmatpush1.xpose.msra.mxu0 0.0
    %2424 = vmatprep.subr.mxu0 0.0
    %2425 = vmatpush1.xpose.msra.mxu0 0.0
    %2426 = vmatprep.mubr.f32.mxu0 0.0
    %2427 = vmatmul.mubr.f32.gmra.mrb[0].mxu0 %v2357
    %v2428 = vpop.f32.mrb[0].mxu0
    %v2429 = vadd.f32 0.0, %v2428
    %v2430 = vpop.f32.mrb[0].mxu0
    %2431 = vdwg.mxu0
    %v2433 = vsel %vm2127, %v811, 0
    %v2436 = vsel %vm2127, %v1399, 0
    %2438 = vmatprep.subr.mxu0 0.0
    %2439 = vmatpush1.xpose.msra.mxu0 %v2436
    %2440 = vmatprep.subr.mxu0 0.0
    %2441 = vmatpush1.xpose.msra.mxu0 0.0
    %2442 = vmatprep.subr.mxu0 0.0
    %2443 = vmatpush1.xpose.msra.mxu0 0.0
    %2444 = vmatprep.subr.mxu0 0.0
    %2445 = vmatpush1.xpose.msra.mxu0 0.0
    %2446 = vmatprep.subr.mxu0 0.0
    %2447 = vmatpush1.xpose.msra.mxu0 0.0
    %2448 = vmatprep.subr.mxu0 0.0
    %2449 = vmatpush1.xpose.msra.mxu0 0.0
    %2450 = vmatprep.subr.mxu0 0.0
    %2451 = vmatpush1.xpose.msra.mxu0 0.0
    %2452 = vmatprep.subr.mxu0 0.0
    %2453 = vmatpush1.xpose.msra.mxu0 0.0
    %2454 = vmatprep.subr.mxu0 0.0
    %2455 = vmatpush1.xpose.msra.mxu0 0.0
    %2456 = vmatprep.subr.mxu0 0.0
    %2457 = vmatpush1.xpose.msra.mxu0 0.0
    %2458 = vmatprep.subr.mxu0 0.0
    %2459 = vmatpush1.xpose.msra.mxu0 0.0
    %2460 = vmatprep.subr.mxu0 0.0
    %2461 = vmatpush1.xpose.msra.mxu0 0.0
    %2462 = vmatprep.subr.mxu0 0.0
    %2463 = vmatpush1.xpose.msra.mxu0 0.0
    %2464 = vmatprep.subr.mxu0 0.0
    %2465 = vmatpush1.xpose.msra.mxu0 0.0
    %2466 = vmatprep.subr.mxu0 0.0
    %2467 = vmatpush1.xpose.msra.mxu0 0.0
    %2468 = vmatprep.subr.mxu0 0.0
    %2469 = vmatpush1.xpose.msra.mxu0 0.0
    %2470 = vmatprep.subr.mxu0 0.0
    %2471 = vmatpush1.xpose.msra.mxu0 0.0
    %2472 = vmatprep.subr.mxu0 0.0
    %2473 = vmatpush1.xpose.msra.mxu0 0.0
    %2474 = vmatprep.subr.mxu0 0.0
    %2475 = vmatpush1.xpose.msra.mxu0 0.0
    %2476 = vmatprep.subr.mxu0 0.0
    %2477 = vmatpush1.xpose.msra.mxu0 0.0
    %2478 = vmatprep.subr.mxu0 0.0
    %2479 = vmatpush1.xpose.msra.mxu0 0.0
    %2480 = vmatprep.subr.mxu0 0.0
    %2481 = vmatpush1.xpose.msra.mxu0 0.0
    %2482 = vmatprep.subr.mxu0 0.0
    %2483 = vmatpush1.xpose.msra.mxu0 0.0
    %2484 = vmatprep.subr.mxu0 0.0
    %2485 = vmatpush1.xpose.msra.mxu0 0.0
    %2486 = vmatprep.subr.mxu0 0.0
    %2487 = vmatpush1.xpose.msra.mxu0 0.0
    %2488 = vmatprep.subr.mxu0 0.0
    %2489 = vmatpush1.xpose.msra.mxu0 0.0
    %2490 = vmatprep.subr.mxu0 0.0
    %2491 = vmatpush1.xpose.msra.mxu0 0.0
    %2492 = vmatprep.subr.mxu0 0.0
    %2493 = vmatpush1.xpose.msra.mxu0 0.0
    %2494 = vmatprep.subr.mxu0 0.0
    %2495 = vmatpush1.xpose.msra.mxu0 0.0
    %2496 = vmatprep.subr.mxu0 0.0
    %2497 = vmatpush1.xpose.msra.mxu0 0.0
    %2498 = vmatprep.subr.mxu0 0.0
    %2499 = vmatpush1.xpose.msra.mxu0 0.0
    %2500 = vmatprep.subr.mxu0 0.0
    %2501 = vmatpush1.xpose.msra.mxu0 0.0
    %2502 = vmatprep.mubr.f32.mxu0 0.0
    %2503 = vmatmul.mubr.f32.gmra.mrb[0].mxu0 %v2433
    %v2504 = vpop.f32.mrb[0].mxu0
    %v2505 = vadd.f32 0.0, %v2504
    %v2506 = vpop.f32.mrb[0].mxu0
    %2507 = vdwg.mxu0
    %v2509 = vsel %vm2127, %v812, 0
    %v2512 = vsel %vm2127, %v1400, 0
    %2514 = vmatprep.subr.mxu0 0.0
    %2515 = vmatpush1.xpose.msra.mxu0 %v2512
    %2516 = vmatprep.subr.mxu0 0.0
    %2517 = vmatpush1.xpose.msra.mxu0 0.0
    %2518 = vmatprep.subr.mxu0 0.0
    %2519 = vmatpush1.xpose.msra.mxu0 0.0
    %2520 = vmatprep.subr.mxu0 0.0
    %2521 = vmatpush1.xpose.msra.mxu0 0.0
    %2522 = vmatprep.subr.mxu0 0.0
    %2523 = vmatpush1.xpose.msra.mxu0 0.0
    %2524 = vmatprep.subr.mxu0 0.0
    %2525 = vmatpush1.xpose.msra.mxu0 0.0
    %2526 = vmatprep.subr.mxu0 0.0
    %2527 = vmatpush1.xpose.msra.mxu0 0.0
    %2528 = vmatprep.subr.mxu0 0.0
    %2529 = vmatpush1.xpose.msra.mxu0 0.0
    %2530 = vmatprep.subr.mxu0 0.0
    %2531 = vmatpush1.xpose.msra.mxu0 0.0
    %2532 = vmatprep.subr.mxu0 0.0
    %2533 = vmatpush1.xpose.msra.mxu0 0.0
    %2534 = vmatprep.subr.mxu0 0.0
    %2535 = vmatpush1.xpose.msra.mxu0 0.0
    %2536 = vmatprep.subr.mxu0 0.0
    %2537 = vmatpush1.xpose.msra.mxu0 0.0
    %2538 = vmatprep.subr.mxu0 0.0
    %2539 = vmatpush1.xpose.msra.mxu0 0.0
    %2540 = vmatprep.subr.mxu0 0.0
    %2541 = vmatpush1.xpose.msra.mxu0 0.0
    %2542 = vmatprep.subr.mxu0 0.0
    %2543 = vmatpush1.xpose.msra.mxu0 0.0
    %2544 = vmatprep.subr.mxu0 0.0
    %2545 = vmatpush1.xpose.msra.mxu0 0.0
    %2546 = vmatprep.subr.mxu0 0.0
    %2547 = vmatpush1.xpose.msra.mxu0 0.0
    %2548 = vmatprep.subr.mxu0 0.0
    %2549 = vmatpush1.xpose.msra.mxu0 0.0
    %2550 = vmatprep.subr.mxu0 0.0
    %2551 = vmatpush1.xpose.msra.mxu0 0.0
    %2552 = vmatprep.subr.mxu0 0.0
    %2553 = vmatpush1.xpose.msra.mxu0 0.0
    %2554 = vmatprep.subr.mxu0 0.0
    %2555 = vmatpush1.xpose.msra.mxu0 0.0
    %2556 = vmatprep.subr.mxu0 0.0
    %2557 = vmatpush1.xpose.msra.mxu0 0.0
    %2558 = vmatprep.subr.mxu0 0.0
    %2559 = vmatpush1.xpose.msra.mxu0 0.0
    %2560 = vmatprep.subr.mxu0 0.0
    %2561 = vmatpush1.xpose.msra.mxu0 0.0
    %2562 = vmatprep.subr.mxu0 0.0
    %2563 = vmatpush1.xpose.msra.mxu0 0.0
    %2564 = vmatprep.subr.mxu0 0.0
    %2565 = vmatpush1.xpose.msra.mxu0 0.0
    %2566 = vmatprep.subr.mxu0 0.0
    %2567 = vmatpush1.xpose.msra.mxu0 0.0
    %2568 = vmatprep.subr.mxu0 0.0
    %2569 = vmatpush1.xpose.msra.mxu0 0.0
    %2570 = vmatprep.subr.mxu0 0.0
    %2571 = vmatpush1.xpose.msra.mxu0 0.0
    %2572 = vmatprep.subr.mxu0 0.0
    %2573 = vmatpush1.xpose.msra.mxu0 0.0
    %2574 = vmatprep.subr.mxu0 0.0
    %2575 = vmatpush1.xpose.msra.mxu0 0.0
    %2576 = vmatprep.subr.mxu0 0.0
    %2577 = vmatpush1.xpose.msra.mxu0 0.0
    %2578 = vmatprep.mubr.f32.mxu0 0.0
    %2579 = vmatmul.mubr.f32.gmra.mrb[0].mxu0 %v2509
    %v2580 = vpop.f32.mrb[0].mxu0
    %v2581 = vadd.f32 0.0, %v2580
    %v2582 = vpop.f32.mrb[0].mxu0
    %2583 = vdwg.mxu0
    %v2585 = vsel %vm2127, %v813, 0
    %v2588 = vsel %vm2127, %v1401, 0
    %2590 = vmatprep.subr.mxu0 0.0
    %2591 = vmatpush1.xpose.msra.mxu0 %v2588
    %2592 = vmatprep.subr.mxu0 0.0
    %2593 = vmatpush1.xpose.msra.mxu0 0.0
    %2594 = vmatprep.subr.mxu0 0.0
    %2595 = vmatpush1.xpose.msra.mxu0 0.0
    %2596 = vmatprep.subr.mxu0 0.0
    %2597 = vmatpush1.xpose.msra.mxu0 0.0
    %2598 = vmatprep.subr.mxu0 0.0
    %2599 = vmatpush1.xpose.msra.mxu0 0.0
    %2600 = vmatprep.subr.mxu0 0.0
    %2601 = vmatpush1.xpose.msra.mxu0 0.0
    %2602 = vmatprep.subr.mxu0 0.0
    %2603 = vmatpush1.xpose.msra.mxu0 0.0
    %2604 = vmatprep.subr.mxu0 0.0
    %2605 = vmatpush1.xpose.msra.mxu0 0.0
    %2606 = vmatprep.subr.mxu0 0.0
    %2607 = vmatpush1.xpose.msra.mxu0 0.0
    %2608 = vmatprep.subr.mxu0 0.0
    %2609 = vmatpush1.xpose.msra.mxu0 0.0
    %2610 = vmatprep.subr.mxu0 0.0
    %2611 = vmatpush1.xpose.msra.mxu0 0.0
    %2612 = vmatprep.subr.mxu0 0.0
    %2613 = vmatpush1.xpose.msra.mxu0 0.0
    %2614 = vmatprep.subr.mxu0 0.0
    %2615 = vmatpush1.xpose.msra.mxu0 0.0
    %2616 = vmatprep.subr.mxu0 0.0
    %2617 = vmatpush1.xpose.msra.mxu0 0.0
    %2618 = vmatprep.subr.mxu0 0.0
    %2619 = vmatpush1.xpose.msra.mxu0 0.0
    %2620 = vmatprep.subr.mxu0 0.0
    %2621 = vmatpush1.xpose.msra.mxu0 0.0
    %2622 = vmatprep.subr.mxu0 0.0
    %2623 = vmatpush1.xpose.msra.mxu0 0.0
    %2624 = vmatprep.subr.mxu0 0.0
    %2625 = vmatpush1.xpose.msra.mxu0 0.0
    %2626 = vmatprep.subr.mxu0 0.0
    %2627 = vmatpush1.xpose.msra.mxu0 0.0
    %2628 = vmatprep.subr.mxu0 0.0
    %2629 = vmatpush1.xpose.msra.mxu0 0.0
    %2630 = vmatprep.subr.mxu0 0.0
    %2631 = vmatpush1.xpose.msra.mxu0 0.0
    %2632 = vmatprep.subr.mxu0 0.0
    %2633 = vmatpush1.xpose.msra.mxu0 0.0
    %2634 = vmatprep.subr.mxu0 0.0
    %2635 = vmatpush1.xpose.msra.mxu0 0.0
    %2636 = vmatprep.subr.mxu0 0.0
    %2637 = vmatpush1.xpose.msra.mxu0 0.0
    %2638 = vmatprep.subr.mxu0 0.0
    %2639 = vmatpush1.xpose.msra.mxu0 0.0
    %2640 = vmatprep.subr.mxu0 0.0
    %2641 = vmatpush1.xpose.msra.mxu0 0.0
    %2642 = vmatprep.subr.mxu0 0.0
    %2643 = vmatpush1.xpose.msra.mxu0 0.0
    %2644 = vmatprep.subr.mxu0 0.0
    %2645 = vmatpush1.xpose.msra.mxu0 0.0
    %2646 = vmatprep.subr.mxu0 0.0
    %2647 = vmatpush1.xpose.msra.mxu0 0.0
    %2648 = vmatprep.subr.mxu0 0.0
    %2649 = vmatpush1.xpose.msra.mxu0 0.0
    %2650 = vmatprep.subr.mxu0 0.0
    %2651 = vmatpush1.xpose.msra.mxu0 0.0
    %2652 = vmatprep.subr.mxu0 0.0
    %2653 = vmatpush1.xpose.msra.mxu0 0.0
    %2654 = vmatprep.mubr.f32.mxu0 0.0
    %2655 = vmatmul.mubr.f32.gmra.mrb[0].mxu0 %v2585
    %v2656 = vpop.f32.mrb[0].mxu0
    %v2657 = vadd.f32 0.0, %v2656
    %v2658 = vpop.f32.mrb[0].mxu0
    %2659 = vdwg.mxu0
    %v2661 = vsel %vm2127, %v814, 0
    %v2664 = vsel %vm2127, %v1402, 0
    %2666 = vmatprep.subr.mxu0 0.0
    %2667 = vmatpush1.xpose.msra.mxu0 %v2664
    %2668 = vmatprep.subr.mxu0 0.0
    %2669 = vmatpush1.xpose.msra.mxu0 0.0
    %2670 = vmatprep.subr.mxu0 0.0
    %2671 = vmatpush1.xpose.msra.mxu0 0.0
    %2672 = vmatprep.subr.mxu0 0.0
    %2673 = vmatpush1.xpose.msra.mxu0 0.0
    %2674 = vmatprep.subr.mxu0 0.0
    %2675 = vmatpush1.xpose.msra.mxu0 0.0
    %2676 = vmatprep.subr.mxu0 0.0
    %2677 = vmatpush1.xpose.msra.mxu0 0.0
    %2678 = vmatprep.subr.mxu0 0.0
    %2679 = vmatpush1.xpose.msra.mxu0 0.0
    %2680 = vmatprep.subr.mxu0 0.0
    %2681 = vmatpush1.xpose.msra.mxu0 0.0
    %2682 = vmatprep.subr.mxu0 0.0
    %2683 = vmatpush1.xpose.msra.mxu0 0.0
    %2684 = vmatprep.subr.mxu0 0.0
    %2685 = vmatpush1.xpose.msra.mxu0 0.0
    %2686 = vmatprep.subr.mxu0 0.0
    %2687 = vmatpush1.xpose.msra.mxu0 0.0
    %2688 = vmatprep.subr.mxu0 0.0
    %2689 = vmatpush1.xpose.msra.mxu0 0.0
    %2690 = vmatprep.subr.mxu0 0.0
    %2691 = vmatpush1.xpose.msra.mxu0 0.0
    %2692 = vmatprep.subr.mxu0 0.0
    %2693 = vmatpush1.xpose.msra.mxu0 0.0
    %2694 = vmatprep.subr.mxu0 0.0
    %2695 = vmatpush1.xpose.msra.mxu0 0.0
    %2696 = vmatprep.subr.mxu0 0.0
    %2697 = vmatpush1.xpose.msra.mxu0 0.0
    %2698 = vmatprep.subr.mxu0 0.0
    %2699 = vmatpush1.xpose.msra.mxu0 0.0
    %2700 = vmatprep.subr.mxu0 0.0
    %2701 = vmatpush1.xpose.msra.mxu0 0.0
    %2702 = vmatprep.subr.mxu0 0.0
    %2703 = vmatpush1.xpose.msra.mxu0 0.0
    %2704 = vmatprep.subr.mxu0 0.0
    %2705 = vmatpush1.xpose.msra.mxu0 0.0
    %2706 = vmatprep.subr.mxu0 0.0
    %2707 = vmatpush1.xpose.msra.mxu0 0.0
    %2708 = vmatprep.subr.mxu0 0.0
    %2709 = vmatpush1.xpose.msra.mxu0 0.0
    %2710 = vmatprep.subr.mxu0 0.0
    %2711 = vmatpush1.xpose.msra.mxu0 0.0
    %2712 = vmatprep.subr.mxu0 0.0
    %2713 = vmatpush1.xpose.msra.mxu0 0.0
    %2714 = vmatprep.subr.mxu0 0.0
    %2715 = vmatpush1.xpose.msra.mxu0 0.0
    %2716 = vmatprep.subr.mxu0 0.0
    %2717 = vmatpush1.xpose.msra.mxu0 0.0
    %2718 = vmatprep.subr.mxu0 0.0
    %2719 = vmatpush1.xpose.msra.mxu0 0.0
    %2720 = vmatprep.subr.mxu0 0.0
    %2721 = vmatpush1.xpose.msra.mxu0 0.0
    %2722 = vmatprep.subr.mxu0 0.0
    %2723 = vmatpush1.xpose.msra.mxu0 0.0
    %2724 = vmatprep.subr.mxu0 0.0
    %2725 = vmatpush1.xpose.msra.mxu0 0.0
    %2726 = vmatprep.subr.mxu0 0.0
    %2727 = vmatpush1.xpose.msra.mxu0 0.0
    %2728 = vmatprep.subr.mxu0 0.0
    %2729 = vmatpush1.xpose.msra.mxu0 0.0
    %2730 = vmatprep.mubr.f32.mxu0 0.0
    %2731 = vmatmul.mubr.f32.gmra.mrb[0].mxu0 %v2661
    %v2732 = vpop.f32.mrb[0].mxu0
    %v2733 = vadd.f32 0.0, %v2732
    %v2734 = vpop.f32.mrb[0].mxu0
    %2735 = vdwg.mxu0
    %v2737 = vsel %vm2127, %v943, 0
    %v2740 = vsel %vm2127, %v1531, 0
    %2742 = vmatprep.subr.mxu0 0.0
    %2743 = vmatpush1.xpose.msra.mxu0 %v2740
    %2744 = vmatprep.subr.mxu0 0.0
    %2745 = vmatpush1.xpose.msra.mxu0 0.0
    %2746 = vmatprep.subr.mxu0 0.0
    %2747 = vmatpush1.xpose.msra.mxu0 0.0
    %2748 = vmatprep.subr.mxu0 0.0
    %2749 = vmatpush1.xpose.msra.mxu0 0.0
    %2750 = vmatprep.subr.mxu0 0.0
    %2751 = vmatpush1.xpose.msra.mxu0 0.0
    %2752 = vmatprep.subr.mxu0 0.0
    %2753 = vmatpush1.xpose.msra.mxu0 0.0
    %2754 = vmatprep.subr.mxu0 0.0
    %2755 = vmatpush1.xpose.msra.mxu0 0.0
    %2756 = vmatprep.subr.mxu0 0.0
    %2757 = vmatpush1.xpose.msra.mxu0 0.0
    %2758 = vmatprep.subr.mxu0 0.0
    %2759 = vmatpush1.xpose.msra.mxu0 0.0
    %2760 = vmatprep.subr.mxu0 0.0
    %2761 = vmatpush1.xpose.msra.mxu0 0.0
    %2762 = vmatprep.subr.mxu0 0.0
    %2763 = vmatpush1.xpose.msra.mxu0 0.0
    %2764 = vmatprep.subr.mxu0 0.0
    %2765 = vmatpush1.xpose.msra.mxu0 0.0
    %2766 = vmatprep.subr.mxu0 0.0
    %2767 = vmatpush1.xpose.msra.mxu0 0.0
    %2768 = vmatprep.subr.mxu0 0.0
    %2769 = vmatpush1.xpose.msra.mxu0 0.0
    %2770 = vmatprep.subr.mxu0 0.0
    %2771 = vmatpush1.xpose.msra.mxu0 0.0
    %2772 = vmatprep.subr.mxu0 0.0
    %2773 = vmatpush1.xpose.msra.mxu0 0.0
    %2774 = vmatprep.subr.mxu0 0.0
    %2775 = vmatpush1.xpose.msra.mxu0 0.0
    %2776 = vmatprep.subr.mxu0 0.0
    %2777 = vmatpush1.xpose.msra.mxu0 0.0
    %2778 = vmatprep.subr.mxu0 0.0
    %2779 = vmatpush1.xpose.msra.mxu0 0.0
    %2780 = vmatprep.subr.mxu0 0.0
    %2781 = vmatpush1.xpose.msra.mxu0 0.0
    %2782 = vmatprep.subr.mxu0 0.0
    %2783 = vmatpush1.xpose.msra.mxu0 0.0
    %2784 = vmatprep.subr.mxu0 0.0
    %2785 = vmatpush1.xpose.msra.mxu0 0.0
    %2786 = vmatprep.subr.mxu0 0.0
    %2787 = vmatpush1.xpose.msra.mxu0 0.0
    %2788 = vmatprep.subr.mxu0 0.0
    %2789 = vmatpush1.xpose.msra.mxu0 0.0
    %2790 = vmatprep.subr.mxu0 0.0
    %2791 = vmatpush1.xpose.msra.mxu0 0.0
    %2792 = vmatprep.subr.mxu0 0.0
    %2793 = vmatpush1.xpose.msra.mxu0 0.0
    %2794 = vmatprep.subr.mxu0 0.0
    %2795 = vmatpush1.xpose.msra.mxu0 0.0
    %2796 = vmatprep.subr.mxu0 0.0
    %2797 = vmatpush1.xpose.msra.mxu0 0.0
    %2798 = vmatprep.subr.mxu0 0.0
    %2799 = vmatpush1.xpose.msra.mxu0 0.0
    %2800 = vmatprep.subr.mxu0 0.0
    %2801 = vmatpush1.xpose.msra.mxu0 0.0
    %2802 = vmatprep.subr.mxu0 0.0
    %2803 = vmatpush1.xpose.msra.mxu0 0.0
    %2804 = vmatprep.subr.mxu0 0.0
    %2805 = vmatpush1.xpose.msra.mxu0 0.0
    %2806 = vmatprep.mubr.f32.mxu0 0.0
    %2807 = vmatmul.mubr.f32.gmra.mrb[0].mxu0 %v2737
    %v2808 = vpop.f32.mrb[0].mxu0
    %v2809 = vadd.f32 0.0, %v2808
    %v2810 = vpop.f32.mrb[0].mxu0
    %2811 = vdwg.mxu0
    %v2813 = vsel %vm2127, %v944, 0
    %v2816 = vsel %vm2127, %v1532, 0
    %2818 = vmatprep.subr.mxu0 0.0
    %2819 = vmatpush1.xpose.msra.mxu0 %v2816
    %2820 = vmatprep.subr.mxu0 0.0
    %2821 = vmatpush1.xpose.msra.mxu0 0.0
    %2822 = vmatprep.subr.mxu0 0.0
    %2823 = vmatpush1.xpose.msra.mxu0 0.0
    %2824 = vmatprep.subr.mxu0 0.0
    %2825 = vmatpush1.xpose.msra.mxu0 0.0
    %2826 = vmatprep.subr.mxu0 0.0
    %2827 = vmatpush1.xpose.msra.mxu0 0.0
    %2828 = vmatprep.subr.mxu0 0.0
    %2829 = vmatpush1.xpose.msra.mxu0 0.0
    %2830 = vmatprep.subr.mxu0 0.0
    %2831 = vmatpush1.xpose.msra.mxu0 0.0
    %2832 = vmatprep.subr.mxu0 0.0
    %2833 = vmatpush1.xpose.msra.mxu0 0.0
    %2834 = vmatprep.subr.mxu0 0.0
    %2835 = vmatpush1.xpose.msra.mxu0 0.0
    %2836 = vmatprep.subr.mxu0 0.0
    %2837 = vmatpush1.xpose.msra.mxu0 0.0
    %2838 = vmatprep.subr.mxu0 0.0
    %2839 = vmatpush1.xpose.msra.mxu0 0.0
    %2840 = vmatprep.subr.mxu0 0.0
    %2841 = vmatpush1.xpose.msra.mxu0 0.0
    %2842 = vmatprep.subr.mxu0 0.0
    %2843 = vmatpush1.xpose.msra.mxu0 0.0
    %2844 = vmatprep.subr.mxu0 0.0
    %2845 = vmatpush1.xpose.msra.mxu0 0.0
    %2846 = vmatprep.subr.mxu0 0.0
    %2847 = vmatpush1.xpose.msra.mxu0 0.0
    %2848 = vmatprep.subr.mxu0 0.0
    %2849 = vmatpush1.xpose.msra.mxu0 0.0
    %2850 = vmatprep.subr.mxu0 0.0
    %2851 = vmatpush1.xpose.msra.mxu0 0.0
    %2852 = vmatprep.subr.mxu0 0.0
    %2853 = vmatpush1.xpose.msra.mxu0 0.0
    %2854 = vmatprep.subr.mxu0 0.0
    %2855 = vmatpush1.xpose.msra.mxu0 0.0
    %2856 = vmatprep.subr.mxu0 0.0
    %2857 = vmatpush1.xpose.msra.mxu0 0.0
    %2858 = vmatprep.subr.mxu0 0.0
    %2859 = vmatpush1.xpose.msra.mxu0 0.0
    %2860 = vmatprep.subr.mxu0 0.0
    %2861 = vmatpush1.xpose.msra.mxu0 0.0
    %2862 = vmatprep.subr.mxu0 0.0
    %2863 = vmatpush1.xpose.msra.mxu0 0.0
    %2864 = vmatprep.subr.mxu0 0.0
    %2865 = vmatpush1.xpose.msra.mxu0 0.0
    %2866 = vmatprep.subr.mxu0 0.0
    %2867 = vmatpush1.xpose.msra.mxu0 0.0
    %2868 = vmatprep.subr.mxu0 0.0
    %2869 = vmatpush1.xpose.msra.mxu0 0.0
    %2870 = vmatprep.subr.mxu0 0.0
    %2871 = vmatpush1.xpose.msra.mxu0 0.0
    %2872 = vmatprep.subr.mxu0 0.0
    %2873 = vmatpush1.xpose.msra.mxu0 0.0
    %2874 = vmatprep.subr.mxu0 0.0
    %2875 = vmatpush1.xpose.msra.mxu0 0.0
    %2876 = vmatprep.subr.mxu0 0.0
    %2877 = vmatpush1.xpose.msra.mxu0 0.0
    %2878 = vmatprep.subr.mxu0 0.0
    %2879 = vmatpush1.xpose.msra.mxu0 0.0
    %2880 = vmatprep.subr.mxu0 0.0
    %2881 = vmatpush1.xpose.msra.mxu0 0.0
    %2882 = vmatprep.mubr.f32.mxu0 0.0
    %2883 = vmatmul.mubr.f32.gmra.mrb[0].mxu0 %v2813
    %v2884 = vpop.f32.mrb[0].mxu0
    %v2885 = vadd.f32 0.0, %v2884
    %v2886 = vpop.f32.mrb[0].mxu0
    %2887 = vdwg.mxu0
    %v2889 = vsel %vm2127, %v945, 0
    %v2892 = vsel %vm2127, %v1533, 0
    %2894 = vmatprep.subr.mxu0 0.0
    %2895 = vmatpush1.xpose.msra.mxu0 %v2892
    %2896 = vmatprep.subr.mxu0 0.0
    %2897 = vmatpush1.xpose.msra.mxu0 0.0
    %2898 = vmatprep.subr.mxu0 0.0
    %2899 = vmatpush1.xpose.msra.mxu0 0.0
    %2900 = vmatprep.subr.mxu0 0.0
    %2901 = vmatpush1.xpose.msra.mxu0 0.0
    %2902 = vmatprep.subr.mxu0 0.0
    %2903 = vmatpush1.xpose.msra.mxu0 0.0
    %2904 = vmatprep.subr.mxu0 0.0
    %2905 = vmatpush1.xpose.msra.mxu0 0.0
    %2906 = vmatprep.subr.mxu0 0.0
    %2907 = vmatpush1.xpose.msra.mxu0 0.0
    %2908 = vmatprep.subr.mxu0 0.0
    %2909 = vmatpush1.xpose.msra.mxu0 0.0
    %2910 = vmatprep.subr.mxu0 0.0
    %2911 = vmatpush1.xpose.msra.mxu0 0.0
    %2912 = vmatprep.subr.mxu0 0.0
    %2913 = vmatpush1.xpose.msra.mxu0 0.0
    %2914 = vmatprep.subr.mxu0 0.0
    %2915 = vmatpush1.xpose.msra.mxu0 0.0
    %2916 = vmatprep.subr.mxu0 0.0
    %2917 = vmatpush1.xpose.msra.mxu0 0.0
    %2918 = vmatprep.subr.mxu0 0.0
    %2919 = vmatpush1.xpose.msra.mxu0 0.0
    %2920 = vmatprep.subr.mxu0 0.0
    %2921 = vmatpush1.xpose.msra.mxu0 0.0
    %2922 = vmatprep.subr.mxu0 0.0
    %2923 = vmatpush1.xpose.msra.mxu0 0.0
    %2924 = vmatprep.subr.mxu0 0.0
    %2925 = vmatpush1.xpose.msra.mxu0 0.0
    %2926 = vmatprep.subr.mxu0 0.0
    %2927 = vmatpush1.xpose.msra.mxu0 0.0
    %2928 = vmatprep.subr.mxu0 0.0
    %2929 = vmatpush1.xpose.msra.mxu0 0.0
    %2930 = vmatprep.subr.mxu0 0.0
    %2931 = vmatpush1.xpose.msra.mxu0 0.0
    %2932 = vmatprep.subr.mxu0 0.0
    %2933 = vmatpush1.xpose.msra.mxu0 0.0
    %2934 = vmatprep.subr.mxu0 0.0
    %2935 = vmatpush1.xpose.msra.mxu0 0.0
    %2936 = vmatprep.subr.mxu0 0.0
    %2937 = vmatpush1.xpose.msra.mxu0 0.0
    %2938 = vmatprep.subr.mxu0 0.0
    %2939 = vmatpush1.xpose.msra.mxu0 0.0
    %2940 = vmatprep.subr.mxu0 0.0
    %2941 = vmatpush1.xpose.msra.mxu0 0.0
    %2942 = vmatprep.subr.mxu0 0.0
    %2943 = vmatpush1.xpose.msra.mxu0 0.0
    %2944 = vmatprep.subr.mxu0 0.0
    %2945 = vmatpush1.xpose.msra.mxu0 0.0
    %2946 = vmatprep.subr.mxu0 0.0
    %2947 = vmatpush1.xpose.msra.mxu0 0.0
    %2948 = vmatprep.subr.mxu0 0.0
    %2949 = vmatpush1.xpose.msra.mxu0 0.0
    %2950 = vmatprep.subr.mxu0 0.0
    %2951 = vmatpush1.xpose.msra.mxu0 0.0
    %2952 = vmatprep.subr.mxu0 0.0
    %2953 = vmatpush1.xpose.msra.mxu0 0.0
    %2954 = vmatprep.subr.mxu0 0.0
    %2955 = vmatpush1.xpose.msra.mxu0 0.0
    %2956 = vmatprep.subr.mxu0 0.0
    %2957 = vmatpush1.xpose.msra.mxu0 0.0
    %2958 = vmatprep.mubr.f32.mxu0 0.0
    %2959 = vmatmul.mubr.f32.gmra.mrb[0].mxu0 %v2889
    %v2960 = vpop.f32.mrb[0].mxu0
    %v2961 = vadd.f32 0.0, %v2960
    %v2962 = vpop.f32.mrb[0].mxu0
    %2963 = vdwg.mxu0
    %v2965 = vsel %vm2127, %v946, 0
    %v2968 = vsel %vm2127, %v1534, 0
    %2970 = vmatprep.subr.mxu0 0.0
    %2971 = vmatpush1.xpose.msra.mxu0 %v2968
    %2972 = vmatprep.subr.mxu0 0.0
    %2973 = vmatpush1.xpose.msra.mxu0 0.0
    %2974 = vmatprep.subr.mxu0 0.0
    %2975 = vmatpush1.xpose.msra.mxu0 0.0
    %2976 = vmatprep.subr.mxu0 0.0
    %2977 = vmatpush1.xpose.msra.mxu0 0.0
    %2978 = vmatprep.subr.mxu0 0.0
    %2979 = vmatpush1.xpose.msra.mxu0 0.0
    %2980 = vmatprep.subr.mxu0 0.0
    %2981 = vmatpush1.xpose.msra.mxu0 0.0
    %2982 = vmatprep.subr.mxu0 0.0
    %2983 = vmatpush1.xpose.msra.mxu0 0.0
    %2984 = vmatprep.subr.mxu0 0.0
    %2985 = vmatpush1.xpose.msra.mxu0 0.0
    %2986 = vmatprep.subr.mxu0 0.0
    %2987 = vmatpush1.xpose.msra.mxu0 0.0
    %2988 = vmatprep.subr.mxu0 0.0
    %2989 = vmatpush1.xpose.msra.mxu0 0.0
    %2990 = vmatprep.subr.mxu0 0.0
    %2991 = vmatpush1.xpose.msra.mxu0 0.0
    %2992 = vmatprep.subr.mxu0 0.0
    %2993 = vmatpush1.xpose.msra.mxu0 0.0
    %2994 = vmatprep.subr.mxu0 0.0
    %2995 = vmatpush1.xpose.msra.mxu0 0.0
    %2996 = vmatprep.subr.mxu0 0.0
    %2997 = vmatpush1.xpose.msra.mxu0 0.0
    %2998 = vmatprep.subr.mxu0 0.0
    %2999 = vmatpush1.xpose.msra.mxu0 0.0
    %3000 = vmatprep.subr.mxu0 0.0
    %3001 = vmatpush1.xpose.msra.mxu0 0.0
    %3002 = vmatprep.subr.mxu0 0.0
    %3003 = vmatpush1.xpose.msra.mxu0 0.0
    %3004 = vmatprep.subr.mxu0 0.0
    %3005 = vmatpush1.xpose.msra.mxu0 0.0
    %3006 = vmatprep.subr.mxu0 0.0
    %3007 = vmatpush1.xpose.msra.mxu0 0.0
    %3008 = vmatprep.subr.mxu0 0.0
    %3009 = vmatpush1.xpose.msra.mxu0 0.0
    %3010 = vmatprep.subr.mxu0 0.0
    %3011 = vmatpush1.xpose.msra.mxu0 0.0
    %3012 = vmatprep.subr.mxu0 0.0
    %3013 = vmatpush1.xpose.msra.mxu0 0.0
    %3014 = vmatprep.subr.mxu0 0.0
    %3015 = vmatpush1.xpose.msra.mxu0 0.0
    %3016 = vmatprep.subr.mxu0 0.0
    %3017 = vmatpush1.xpose.msra.mxu0 0.0
    %3018 = vmatprep.subr.mxu0 0.0
    %3019 = vmatpush1.xpose.msra.mxu0 0.0
    %3020 = vmatprep.subr.mxu0 0.0
    %3021 = vmatpush1.xpose.msra.mxu0 0.0
    %3022 = vmatprep.subr.mxu0 0.0
    %3023 = vmatpush1.xpose.msra.mxu0 0.0
    %3024 = vmatprep.subr.mxu0 0.0
    %3025 = vmatpush1.xpose.msra.mxu0 0.0
    %3026 = vmatprep.subr.mxu0 0.0
    %3027 = vmatpush1.xpose.msra.mxu0 0.0
    %3028 = vmatprep.subr.mxu0 0.0
    %3029 = vmatpush1.xpose.msra.mxu0 0.0
    %3030 = vmatprep.subr.mxu0 0.0
    %3031 = vmatpush1.xpose.msra.mxu0 0.0
    %3032 = vmatprep.subr.mxu0 0.0
    %3033 = vmatpush1.xpose.msra.mxu0 0.0
    %3034 = vmatprep.mubr.f32.mxu0 0.0
    %3035 = vmatmul.mubr.f32.gmra.mrb[0].mxu0 %v2965
    %v3036 = vpop.f32.mrb[0].mxu0
    %v3037 = vadd.f32 0.0, %v3036
    %v3038 = vpop.f32.mrb[0].mxu0
    %3039 = vdwg.mxu0
    %v3041 = vsel %vm2127, %v947, 0
    %v3044 = vsel %vm2127, %v1535, 0
    %3046 = vmatprep.subr.mxu0 0.0
    %3047 = vmatpush1.xpose.msra.mxu0 %v3044
    %3048 = vmatprep.subr.mxu0 0.0
    %3049 = vmatpush1.xpose.msra.mxu0 0.0
    %3050 = vmatprep.subr.mxu0 0.0
    %3051 = vmatpush1.xpose.msra.mxu0 0.0
    %3052 = vmatprep.subr.mxu0 0.0
    %3053 = vmatpush1.xpose.msra.mxu0 0.0
    %3054 = vmatprep.subr.mxu0 0.0
    %3055 = vmatpush1.xpose.msra.mxu0 0.0
    %3056 = vmatprep.subr.mxu0 0.0
    %3057 = vmatpush1.xpose.msra.mxu0 0.0
    %3058 = vmatprep.subr.mxu0 0.0
    %3059 = vmatpush1.xpose.msra.mxu0 0.0
    %3060 = vmatprep.subr.mxu0 0.0
    %3061 = vmatpush1.xpose.msra.mxu0 0.0
    %3062 = vmatprep.subr.mxu0 0.0
    %3063 = vmatpush1.xpose.msra.mxu0 0.0
    %3064 = vmatprep.subr.mxu0 0.0
    %3065 = vmatpush1.xpose.msra.mxu0 0.0
    %3066 = vmatprep.subr.mxu0 0.0
    %3067 = vmatpush1.xpose.msra.mxu0 0.0
    %3068 = vmatprep.subr.mxu0 0.0
    %3069 = vmatpush1.xpose.msra.mxu0 0.0
    %3070 = vmatprep.subr.mxu0 0.0
    %3071 = vmatpush1.xpose.msra.mxu0 0.0
    %3072 = vmatprep.subr.mxu0 0.0
    %3073 = vmatpush1.xpose.msra.mxu0 0.0
    %3074 = vmatprep.subr.mxu0 0.0
    %3075 = vmatpush1.xpose.msra.mxu0 0.0
    %3076 = vmatprep.subr.mxu0 0.0
    %3077 = vmatpush1.xpose.msra.mxu0 0.0
    %3078 = vmatprep.subr.mxu0 0.0
    %3079 = vmatpush1.xpose.msra.mxu0 0.0
    %3080 = vmatprep.subr.mxu0 0.0
    %3081 = vmatpush1.xpose.msra.mxu0 0.0
    %3082 = vmatprep.subr.mxu0 0.0
    %3083 = vmatpush1.xpose.msra.mxu0 0.0
    %3084 = vmatprep.subr.mxu0 0.0
    %3085 = vmatpush1.xpose.msra.mxu0 0.0
    %3086 = vmatprep.subr.mxu0 0.0
    %3087 = vmatpush1.xpose.msra.mxu0 0.0
    %3088 = vmatprep.subr.mxu0 0.0
    %3089 = vmatpush1.xpose.msra.mxu0 0.0
    %3090 = vmatprep.subr.mxu0 0.0
    %3091 = vmatpush1.xpose.msra.mxu0 0.0
    %3092 = vmatprep.subr.mxu0 0.0
    %3093 = vmatpush1.xpose.msra.mxu0 0.0
    %3094 = vmatprep.subr.mxu0 0.0
    %3095 = vmatpush1.xpose.msra.mxu0 0.0
    %3096 = vmatprep.subr.mxu0 0.0
    %3097 = vmatpush1.xpose.msra.mxu0 0.0
    %3098 = vmatprep.subr.mxu0 0.0
    %3099 = vmatpush1.xpose.msra.mxu0 0.0
    %3100 = vmatprep.subr.mxu0 0.0
    %3101 = vmatpush1.xpose.msra.mxu0 0.0
    %3102 = vmatprep.subr.mxu0 0.0
    %3103 = vmatpush1.xpose.msra.mxu0 0.0
    %3104 = vmatprep.subr.mxu0 0.0
    %3105 = vmatpush1.xpose.msra.mxu0 0.0
    %3106 = vmatprep.subr.mxu0 0.0
    %3107 = vmatpush1.xpose.msra.mxu0 0.0
    %3108 = vmatprep.subr.mxu0 0.0
    %3109 = vmatpush1.xpose.msra.mxu0 0.0
    %3110 = vmatprep.mubr.f32.mxu0 0.0
    %3111 = vmatmul.mubr.f32.gmra.mrb[0].mxu0 %v3041
    %v3112 = vpop.f32.mrb[0].mxu0
    %v3113 = vadd.f32 0.0, %v3112
    %v3114 = vpop.f32.mrb[0].mxu0
    %3115 = vdwg.mxu0
    %v3117 = vsel %vm2127, %v948, 0
    %v3120 = vsel %vm2127, %v1536, 0
    %3122 = vmatprep.subr.mxu0 0.0
    %3123 = vmatpush1.xpose.msra.mxu0 %v3120
    %3124 = vmatprep.subr.mxu0 0.0
    %3125 = vmatpush1.xpose.msra.mxu0 0.0
    %3126 = vmatprep.subr.mxu0 0.0
    %3127 = vmatpush1.xpose.msra.mxu0 0.0
    %3128 = vmatprep.subr.mxu0 0.0
    %3129 = vmatpush1.xpose.msra.mxu0 0.0
    %3130 = vmatprep.subr.mxu0 0.0
    %3131 = vmatpush1.xpose.msra.mxu0 0.0
    %3132 = vmatprep.subr.mxu0 0.0
    %3133 = vmatpush1.xpose.msra.mxu0 0.0
    %3134 = vmatprep.subr.mxu0 0.0
    %3135 = vmatpush1.xpose.msra.mxu0 0.0
    %3136 = vmatprep.subr.mxu0 0.0
    %3137 = vmatpush1.xpose.msra.mxu0 0.0
    %3138 = vmatprep.subr.mxu0 0.0
    %3139 = vmatpush1.xpose.msra.mxu0 0.0
    %3140 = vmatprep.subr.mxu0 0.0
    %3141 = vmatpush1.xpose.msra.mxu0 0.0
    %3142 = vmatprep.subr.mxu0 0.0
    %3143 = vmatpush1.xpose.msra.mxu0 0.0
    %3144 = vmatprep.subr.mxu0 0.0
    %3145 = vmatpush1.xpose.msra.mxu0 0.0
    %3146 = vmatprep.subr.mxu0 0.0
    %3147 = vmatpush1.xpose.msra.mxu0 0.0
    %3148 = vmatprep.subr.mxu0 0.0
    %3149 = vmatpush1.xpose.msra.mxu0 0.0
    %3150 = vmatprep.subr.mxu0 0.0
    %3151 = vmatpush1.xpose.msra.mxu0 0.0
    %3152 = vmatprep.subr.mxu0 0.0
    %3153 = vmatpush1.xpose.msra.mxu0 0.0
    %3154 = vmatprep.subr.mxu0 0.0
    %3155 = vmatpush1.xpose.msra.mxu0 0.0
    %3156 = vmatprep.subr.mxu0 0.0
    %3157 = vmatpush1.xpose.msra.mxu0 0.0
    %3158 = vmatprep.subr.mxu0 0.0
    %3159 = vmatpush1.xpose.msra.mxu0 0.0
    %3160 = vmatprep.subr.mxu0 0.0
    %3161 = vmatpush1.xpose.msra.mxu0 0.0
    %3162 = vmatprep.subr.mxu0 0.0
    %3163 = vmatpush1.xpose.msra.mxu0 0.0
    %3164 = vmatprep.subr.mxu0 0.0
    %3165 = vmatpush1.xpose.msra.mxu0 0.0
    %3166 = vmatprep.subr.mxu0 0.0
    %3167 = vmatpush1.xpose.msra.mxu0 0.0
    %3168 = vmatprep.subr.mxu0 0.0
    %3169 = vmatpush1.xpose.msra.mxu0 0.0
    %3170 = vmatprep.subr.mxu0 0.0
    %3171 = vmatpush1.xpose.msra.mxu0 0.0
    %3172 = vmatprep.subr.mxu0 0.0
    %3173 = vmatpush1.xpose.msra.mxu0 0.0
    %3174 = vmatprep.subr.mxu0 0.0
    %3175 = vmatpush1.xpose.msra.mxu0 0.0
    %3176 = vmatprep.subr.mxu0 0.0
    %3177 = vmatpush1.xpose.msra.mxu0 0.0
    %3178 = vmatprep.subr.mxu0 0.0
    %3179 = vmatpush1.xpose.msra.mxu0 0.0
    %3180 = vmatprep.subr.mxu0 0.0
    %3181 = vmatpush1.xpose.msra.mxu0 0.0
    %3182 = vmatprep.subr.mxu0 0.0
    %3183 = vmatpush1.xpose.msra.mxu0 0.0
    %3184 = vmatprep.subr.mxu0 0.0
    %3185 = vmatpush1.xpose.msra.mxu0 0.0
    %3186 = vmatprep.mubr.f32.mxu0 0.0
    %3187 = vmatmul.mubr.f32.gmra.mrb[0].mxu0 %v3117
    %v3188 = vpop.f32.mrb[0].mxu0
    %v3189 = vadd.f32 0.0, %v3188
    %v3190 = vpop.f32.mrb[0].mxu0
    %3191 = vdwg.mxu0
    %v3193 = vsel %vm2127, %v949, 0
    %v3196 = vsel %vm2127, %v1537, 0
    %3198 = vmatprep.subr.mxu0 0.0
    %3199 = vmatpush1.xpose.msra.mxu0 %v3196
    %3200 = vmatprep.subr.mxu0 0.0
    %3201 = vmatpush1.xpose.msra.mxu0 0.0
    %3202 = vmatprep.subr.mxu0 0.0
    %3203 = vmatpush1.xpose.msra.mxu0 0.0
    %3204 = vmatprep.subr.mxu0 0.0
    %3205 = vmatpush1.xpose.msra.mxu0 0.0
    %3206 = vmatprep.subr.mxu0 0.0
    %3207 = vmatpush1.xpose.msra.mxu0 0.0
    %3208 = vmatprep.subr.mxu0 0.0
    %3209 = vmatpush1.xpose.msra.mxu0 0.0
    %3210 = vmatprep.subr.mxu0 0.0
    %3211 = vmatpush1.xpose.msra.mxu0 0.0
    %3212 = vmatprep.subr.mxu0 0.0
    %3213 = vmatpush1.xpose.msra.mxu0 0.0
    %3214 = vmatprep.subr.mxu0 0.0
    %3215 = vmatpush1.xpose.msra.mxu0 0.0
    %3216 = vmatprep.subr.mxu0 0.0
    %3217 = vmatpush1.xpose.msra.mxu0 0.0
    %3218 = vmatprep.subr.mxu0 0.0
    %3219 = vmatpush1.xpose.msra.mxu0 0.0
    %3220 = vmatprep.subr.mxu0 0.0
    %3221 = vmatpush1.xpose.msra.mxu0 0.0
    %3222 = vmatprep.subr.mxu0 0.0
    %3223 = vmatpush1.xpose.msra.mxu0 0.0
    %3224 = vmatprep.subr.mxu0 0.0
    %3225 = vmatpush1.xpose.msra.mxu0 0.0
    %3226 = vmatprep.subr.mxu0 0.0
    %3227 = vmatpush1.xpose.msra.mxu0 0.0
    %3228 = vmatprep.subr.mxu0 0.0
    %3229 = vmatpush1.xpose.msra.mxu0 0.0
    %3230 = vmatprep.subr.mxu0 0.0
    %3231 = vmatpush1.xpose.msra.mxu0 0.0
    %3232 = vmatprep.subr.mxu0 0.0
    %3233 = vmatpush1.xpose.msra.mxu0 0.0
    %3234 = vmatprep.subr.mxu0 0.0
    %3235 = vmatpush1.xpose.msra.mxu0 0.0
    %3236 = vmatprep.subr.mxu0 0.0
    %3237 = vmatpush1.xpose.msra.mxu0 0.0
    %3238 = vmatprep.subr.mxu0 0.0
    %3239 = vmatpush1.xpose.msra.mxu0 0.0
    %3240 = vmatprep.subr.mxu0 0.0
    %3241 = vmatpush1.xpose.msra.mxu0 0.0
    %3242 = vmatprep.subr.mxu0 0.0
    %3243 = vmatpush1.xpose.msra.mxu0 0.0
    %3244 = vmatprep.subr.mxu0 0.0
    %3245 = vmatpush1.xpose.msra.mxu0 0.0
    %3246 = vmatprep.subr.mxu0 0.0
    %3247 = vmatpush1.xpose.msra.mxu0 0.0
    %3248 = vmatprep.subr.mxu0 0.0
    %3249 = vmatpush1.xpose.msra.mxu0 0.0
    %3250 = vmatprep.subr.mxu0 0.0
    %3251 = vmatpush1.xpose.msra.mxu0 0.0
    %3252 = vmatprep.subr.mxu0 0.0
    %3253 = vmatpush1.xpose.msra.mxu0 0.0
    %3254 = vmatprep.subr.mxu0 0.0
    %3255 = vmatpush1.xpose.msra.mxu0 0.0
    %3256 = vmatprep.subr.mxu0 0.0
    %3257 = vmatpush1.xpose.msra.mxu0 0.0
    %3258 = vmatprep.subr.mxu0 0.0
    %3259 = vmatpush1.xpose.msra.mxu0 0.0
    %3260 = vmatprep.subr.mxu0 0.0
    %3261 = vmatpush1.xpose.msra.mxu0 0.0
    %3262 = vmatprep.mubr.f32.mxu0 0.0
    %3263 = vmatmul.mubr.f32.gmra.mrb[0].mxu0 %v3193
    %v3264 = vpop.f32.mrb[0].mxu0
    %v3265 = vadd.f32 0.0, %v3264
    %v3266 = vpop.f32.mrb[0].mxu0
    %3267 = vdwg.mxu0
    %v3269 = vsel %vm2127, %v950, 0
    %v3272 = vsel %vm2127, %v1538, 0
    %3274 = vmatprep.subr.mxu0 0.0
    %3275 = vmatpush1.xpose.msra.mxu0 %v3272
    %3276 = vmatprep.subr.mxu0 0.0
    %3277 = vmatpush1.xpose.msra.mxu0 0.0
    %3278 = vmatprep.subr.mxu0 0.0
    %3279 = vmatpush1.xpose.msra.mxu0 0.0
    %3280 = vmatprep.subr.mxu0 0.0
    %3281 = vmatpush1.xpose.msra.mxu0 0.0
    %3282 = vmatprep.subr.mxu0 0.0
    %3283 = vmatpush1.xpose.msra.mxu0 0.0
    %3284 = vmatprep.subr.mxu0 0.0
    %3285 = vmatpush1.xpose.msra.mxu0 0.0
    %3286 = vmatprep.subr.mxu0 0.0
    %3287 = vmatpush1.xpose.msra.mxu0 0.0
    %3288 = vmatprep.subr.mxu0 0.0
    %3289 = vmatpush1.xpose.msra.mxu0 0.0
    %3290 = vmatprep.subr.mxu0 0.0
    %3291 = vmatpush1.xpose.msra.mxu0 0.0
    %3292 = vmatprep.subr.mxu0 0.0
    %3293 = vmatpush1.xpose.msra.mxu0 0.0
    %3294 = vmatprep.subr.mxu0 0.0
    %3295 = vmatpush1.xpose.msra.mxu0 0.0
    %3296 = vmatprep.subr.mxu0 0.0
    %3297 = vmatpush1.xpose.msra.mxu0 0.0
    %3298 = vmatprep.subr.mxu0 0.0
    %3299 = vmatpush1.xpose.msra.mxu0 0.0
    %3300 = vmatprep.subr.mxu0 0.0
    %3301 = vmatpush1.xpose.msra.mxu0 0.0
    %3302 = vmatprep.subr.mxu0 0.0
    %3303 = vmatpush1.xpose.msra.mxu0 0.0
    %3304 = vmatprep.subr.mxu0 0.0
    %3305 = vmatpush1.xpose.msra.mxu0 0.0
    %3306 = vmatprep.subr.mxu0 0.0
    %3307 = vmatpush1.xpose.msra.mxu0 0.0
    %3308 = vmatprep.subr.mxu0 0.0
    %3309 = vmatpush1.xpose.msra.mxu0 0.0
    %3310 = vmatprep.subr.mxu0 0.0
    %3311 = vmatpush1.xpose.msra.mxu0 0.0
    %3312 = vmatprep.subr.mxu0 0.0
    %3313 = vmatpush1.xpose.msra.mxu0 0.0
    %3314 = vmatprep.subr.mxu0 0.0
    %3315 = vmatpush1.xpose.msra.mxu0 0.0
    %3316 = vmatprep.subr.mxu0 0.0
    %3317 = vmatpush1.xpose.msra.mxu0 0.0
    %3318 = vmatprep.subr.mxu0 0.0
    %3319 = vmatpush1.xpose.msra.mxu0 0.0
    %3320 = vmatprep.subr.mxu0 0.0
    %3321 = vmatpush1.xpose.msra.mxu0 0.0
    %3322 = vmatprep.subr.mxu0 0.0
    %3323 = vmatpush1.xpose.msra.mxu0 0.0
    %3324 = vmatprep.subr.mxu0 0.0
    %3325 = vmatpush1.xpose.msra.mxu0 0.0
    %3326 = vmatprep.subr.mxu0 0.0
    %3327 = vmatpush1.xpose.msra.mxu0 0.0
    %3328 = vmatprep.subr.mxu0 0.0
    %3329 = vmatpush1.xpose.msra.mxu0 0.0
    %3330 = vmatprep.subr.mxu0 0.0
    %3331 = vmatpush1.xpose.msra.mxu0 0.0
    %3332 = vmatprep.subr.mxu0 0.0
    %3333 = vmatpush1.xpose.msra.mxu0 0.0
    %3334 = vmatprep.subr.mxu0 0.0
    %3335 = vmatpush1.xpose.msra.mxu0 0.0
    %3336 = vmatprep.subr.mxu0 0.0
    %3337 = vmatpush1.xpose.msra.mxu0 0.0
    %3338 = vmatprep.mubr.f32.mxu0 0.0
    %3339 = vmatmul.mubr.f32.gmra.mrb[0].mxu0 %v3269
    %v3340 = vpop.f32.mrb[0].mxu0
    %v3341 = vadd.f32 0.0, %v3340
    %v3342 = vpop.f32.mrb[0].mxu0
    %3343 = vdwg.mxu0
    %vm3344 = vcmask 64512
    %v3345 = vsel %vm3344, %v2201, -inf
    %3346 = vmax.xlane.f32.xlu0 %v3345
    %v3347 = vpop.xlane.xlu0 %3346
    %v3348 = vsel %vm3344, %v2277, -inf
    %3349 = vmax.xlane.f32.xlu0 %v3348
    %v3350 = vpop.xlane.xlu0 %3349
    %v3351 = vsel %vm3344, %v2353, -inf
    %3352 = vmax.xlane.f32.xlu0 %v3351
    %v3353 = vpop.xlane.xlu0 %3352
    %v3354 = vsel %vm3344, %v2429, -inf
    %3355 = vmax.xlane.f32.xlu0 %v3354
    %v3356 = vpop.xlane.xlu0 %3355
    %v3357 = vsel %vm3344, %v2505, -inf
    %3358 = vmax.xlane.f32.xlu0 %v3357
    %v3359 = vpop.xlane.xlu0 %3358
    %v3360 = vsel %vm3344, %v2581, -inf
    %3361 = vmax.xlane.f32.xlu0 %v3360
    %v3362 = vpop.xlane.xlu0 %3361
    %v3363 = vsel %vm3344, %v2657, -inf
    %3364 = vmax.xlane.f32.xlu0 %v3363
    %v3365 = vpop.xlane.xlu0 %3364
    %v3366 = vsel %vm3344, %v2733, -inf
    %3367 = vmax.xlane.f32.xlu0 %v3366
    %v3368 = vpop.xlane.xlu0 %3367
    %v3369 = vsel %vm3344, %v2809, -inf
    %3370 = vmax.xlane.f32.xlu0 %v3369
    %v3371 = vpop.xlane.xlu0 %3370
    %v3372 = vsel %vm3344, %v2885, -inf
    %3373 = vmax.xlane.f32.xlu0 %v3372
    %v3374 = vpop.xlane.xlu0 %3373
    %v3375 = vsel %vm3344, %v2961, -inf
    %3376 = vmax.xlane.f32.xlu0 %v3375
    %v3377 = vpop.xlane.xlu0 %3376
    %v3378 = vsel %vm3344, %v3037, -inf
    %3379 = vmax.xlane.f32.xlu0 %v3378
    %v3380 = vpop.xlane.xlu0 %3379
    %v3381 = vsel %vm3344, %v3113, -inf
    %3382 = vmax.xlane.f32.xlu0 %v3381
    %v3383 = vpop.xlane.xlu0 %3382
    %v3384 = vsel %vm3344, %v3189, -inf
    %3385 = vmax.xlane.f32.xlu0 %v3384
    %v3386 = vpop.xlane.xlu0 %3385
    %v3387 = vsel %vm3344, %v3265, -inf
    %3388 = vmax.xlane.f32.xlu0 %v3387
    %v3389 = vpop.xlane.xlu0 %3388
    %v3390 = vsel %vm3344, %v3341, -inf
    %3391 = vmax.xlane.f32.xlu0 %v3390
    %v3392 = vpop.xlane.xlu0 %3391
    %v3393 = vsub.f32 %v2201, %v3347
    %v3394 = vsub.f32 %v2277, %v3350
    %v3395 = vsub.f32 %v2353, %v3353
    %v3396 = vsub.f32 %v2429, %v3356
    %v3397 = vsub.f32 %v2505, %v3359
    %v3398 = vsub.f32 %v2581, %v3362
    %v3399 = vsub.f32 %v2657, %v3365
    %v3400 = vsub.f32 %v2733, %v3368
    %v3401 = vsub.f32 %v2809, %v3371
    %v3402 = vsub.f32 %v2885, %v3374
    %v3403 = vsub.f32 %v2961, %v3377
    %v3404 = vsub.f32 %v3037, %v3380
    %v3405 = vsub.f32 %v3113, %v3383
    %v3406 = vsub.f32 %v3189, %v3386
    %v3407 = vsub.f32 %v3265, %v3389
    %v3408 = vsub.f32 %v3341, %v3392
    %v3409 = vmul.f32 %v3393, 1.442695
    %v3410 = vpow.pop %v3409
    %v3411 = vmul.f32 %v3394, 1.442695
    %v3412 = vpow.pop %v3411
    %v3413 = vmul.f32 %v3395, 1.442695
    %v3414 = vpow.pop %v3413
    %v3415 = vmul.f32 %v3396, 1.442695
    %v3416 = vpow.pop %v3415
    %v3417 = vmul.f32 %v3397, 1.442695
    %v3418 = vpow.pop %v3417
    %v3419 = vmul.f32 %v3398, 1.442695
    %v3420 = vpow.pop %v3419
    %v3421 = vmul.f32 %v3399, 1.442695
    %v3422 = vpow.pop %v3421
    %v3423 = vmul.f32 %v3400, 1.442695
    %v3424 = vpow.pop %v3423
    %v3425 = vmul.f32 %v3401, 1.442695
    %v3426 = vpow.pop %v3425
    %v3427 = vmul.f32 %v3402, 1.442695
    %v3428 = vpow.pop %v3427
    %v3429 = vmul.f32 %v3403, 1.442695
    %v3430 = vpow.pop %v3429
    %v3431 = vmul.f32 %v3404, 1.442695
    %v3432 = vpow.pop %v3431
    %v3433 = vmul.f32 %v3405, 1.442695
    %v3434 = vpow.pop %v3433
    %v3435 = vmul.f32 %v3406, 1.442695
    %v3436 = vpow.pop %v3435
    %v3437 = vmul.f32 %v3407, 1.442695
    %v3438 = vpow.pop %v3437
    %v3439 = vmul.f32 %v3408, 1.442695
    %v3440 = vpow.pop %v3439
    %v3441 = vsel %vm3344, %v3410, 0.0
    %3442 = vadd.xlane.f32.xlu0 %v3441
    %v3443 = vpop.xlane.xlu0 %3442
    %v3444 = vsel %vm3344, %v3412, 0.0
    %3445 = vadd.xlane.f32.xlu0 %v3444
    %v3446 = vpop.xlane.xlu0 %3445
    %v3447 = vsel %vm3344, %v3414, 0.0
    %3448 = vadd.xlane.f32.xlu0 %v3447
    %v3449 = vpop.xlane.xlu0 %3448
    %v3450 = vsel %vm3344, %v3416, 0.0
    %3451 = vadd.xlane.f32.xlu0 %v3450
    %v3452 = vpop.xlane.xlu0 %3451
    %v3453 = vsel %vm3344, %v3418, 0.0
    %3454 = vadd.xlane.f32.xlu0 %v3453
    %v3455 = vpop.xlane.xlu0 %3454
    %v3456 = vsel %vm3344, %v3420, 0.0
    %3457 = vadd.xlane.f32.xlu0 %v3456
    %v3458 = vpop.xlane.xlu0 %3457
    %v3459 = vsel %vm3344, %v3422, 0.0
    %3460 = vadd.xlane.f32.xlu0 %v3459
    %v3461 = vpop.xlane.xlu0 %3460
    %v3462 = vsel %vm3344, %v3424, 0.0
    %3463 = vadd.xlane.f32.xlu0 %v3462
    %v3464 = vpop.xlane.xlu0 %3463
    %v3465 = vsel %vm3344, %v3426, 0.0
    %3466 = vadd.xlane.f32.xlu0 %v3465
    %v3467 = vpop.xlane.xlu0 %3466
    %v3468 = vsel %vm3344, %v3428, 0.0
    %3469 = vadd.xlane.f32.xlu0 %v3468
    %v3470 = vpop.xlane.xlu0 %3469
    %v3471 = vsel %vm3344, %v3430, 0.0
    %3472 = vadd.xlane.f32.xlu0 %v3471
    %v3473 = vpop.xlane.xlu0 %3472
    %v3474 = vsel %vm3344, %v3432, 0.0
    %3475 = vadd.xlane.f32.xlu0 %v3474
    %v3476 = vpop.xlane.xlu0 %3475
    %v3477 = vsel %vm3344, %v3434, 0.0
    %3478 = vadd.xlane.f32.xlu0 %v3477
    %v3479 = vpop.xlane.xlu0 %3478
    %v3480 = vsel %vm3344, %v3436, 0.0
    %3481 = vadd.xlane.f32.xlu0 %v3480
    %v3482 = vpop.xlane.xlu0 %3481
    %v3483 = vsel %vm3344, %v3438, 0.0
    %3484 = vadd.xlane.f32.xlu0 %v3483
    %v3485 = vpop.xlane.xlu0 %3484
    %v3486 = vsel %vm3344, %v3440, 0.0
    %3487 = vadd.xlane.f32.xlu0 %v3486
    %v3488 = vpop.xlane.xlu0 %3487
    %v3489 = vrcp.pop %v3443
    %v3490 = vmul.f32 %v3410, %v3489
    %v3491 = vrcp.pop %v3446
    %v3492 = vmul.f32 %v3412, %v3491
    %v3493 = vrcp.pop %v3449
    %v3494 = vmul.f32 %v3414, %v3493
    %v3495 = vrcp.pop %v3452
    %v3496 = vmul.f32 %v3416, %v3495
    %v3497 = vrcp.pop %v3455
    %v3498 = vmul.f32 %v3418, %v3497
    %v3499 = vrcp.pop %v3458
    %v3500 = vmul.f32 %v3420, %v3499
    %v3501 = vrcp.pop %v3461
    %v3502 = vmul.f32 %v3422, %v3501
    %v3503 = vrcp.pop %v3464
    %v3504 = vmul.f32 %v3424, %v3503
    %v3505 = vrcp.pop %v3467
    %v3506 = vmul.f32 %v3426, %v3505
    %v3507 = vrcp.pop %v3470
    %v3508 = vmul.f32 %v3428, %v3507
    %v3509 = vrcp.pop %v3473
    %v3510 = vmul.f32 %v3430, %v3509
    %v3511 = vrcp.pop %v3476
    %v3512 = vmul.f32 %v3432, %v3511
    %v3513 = vrcp.pop %v3479
    %v3514 = vmul.f32 %v3434, %v3513
    %v3515 = vrcp.pop %v3482
    %v3516 = vmul.f32 %v3436, %v3515
    %v3517 = vrcp.pop %v3485
    %v3518 = vmul.f32 %v3438, %v3517
    %v3519 = vrcp.pop %v3488
    %v3520 = vmul.f32 %v3440, %v3519
    %v3522 = vsel %vm3344, %v3490, 0
    %3524 = vmatprep.subr.mxu0 0.0
    %3525 = vmatpush1.msra.mxu0 %v1983
    %3526 = vmatprep.subr.mxu0 0.0
    %3527 = vmatpush1.msra.mxu0 0.0
    %3528 = vmatprep.subr.mxu0 0.0
    %3529 = vmatpush1.msra.mxu0 0.0
    %3530 = vmatprep.subr.mxu0 0.0
    %3531 = vmatpush1.msra.mxu0 0.0
    %3532 = vmatprep.subr.mxu0 0.0
    %3533 = vmatpush1.msra.mxu0 0.0
    %3534 = vmatprep.subr.mxu0 0.0
    %3535 = vmatpush1.msra.mxu0 0.0
    %3536 = vmatprep.subr.mxu0 0.0
    %3537 = vmatpush1.msra.mxu0 0.0
    %3538 = vmatprep.subr.mxu0 0.0
    %3539 = vmatpush1.msra.mxu0 0.0
    %3540 = vmatprep.subr.mxu0 0.0
    %3541 = vmatpush1.msra.mxu0 0.0
    %3542 = vmatprep.subr.mxu0 0.0
    %3543 = vmatpush1.msra.mxu0 0.0
    %3544 = vmatprep.subr.mxu0 0.0
    %3545 = vmatpush1.msra.mxu0 0.0
    %3546 = vmatprep.subr.mxu0 0.0
    %3547 = vmatpush1.msra.mxu0 0.0
    %3548 = vmatprep.subr.mxu0 0.0
    %3549 = vmatpush1.msra.mxu0 0.0
    %3550 = vmatprep.subr.mxu0 0.0
    %3551 = vmatpush1.msra.mxu0 0.0
    %3552 = vmatprep.subr.mxu0 0.0
    %3553 = vmatpush1.msra.mxu0 0.0
    %3554 = vmatprep.subr.mxu0 0.0
    %3555 = vmatpush1.msra.mxu0 0.0
    %3556 = vmatprep.subr.mxu0 0.0
    %3557 = vmatpush1.msra.mxu0 0.0
    %3558 = vmatprep.subr.mxu0 0.0
    %3559 = vmatpush1.msra.mxu0 0.0
    %3560 = vmatprep.subr.mxu0 0.0
    %3561 = vmatpush1.msra.mxu0 0.0
    %3562 = vmatprep.subr.mxu0 0.0
    %3563 = vmatpush1.msra.mxu0 0.0
    %3564 = vmatprep.subr.mxu0 0.0
    %3565 = vmatpush1.msra.mxu0 0.0
    %3566 = vmatprep.subr.mxu0 0.0
    %3567 = vmatpush1.msra.mxu0 0.0
    %3568 = vmatprep.subr.mxu0 0.0
    %3569 = vmatpush1.msra.mxu0 0.0
    %3570 = vmatprep.subr.mxu0 0.0
    %3571 = vmatpush1.msra.mxu0 0.0
    %3572 = vmatprep.subr.mxu0 0.0
    %3573 = vmatpush1.msra.mxu0 0.0
    %3574 = vmatprep.subr.mxu0 0.0
    %3575 = vmatpush1.msra.mxu0 0.0
    %3576 = vmatprep.subr.mxu0 0.0
    %3577 = vmatpush1.msra.mxu0 0.0
    %3578 = vmatprep.subr.mxu0 0.0
    %3579 = vmatpush1.msra.mxu0 0.0
    %3580 = vmatprep.subr.mxu0 0.0
    %3581 = vmatpush1.msra.mxu0 0.0
    %3582 = vmatprep.subr.mxu0 0.0
    %3583 = vmatpush1.msra.mxu0 0.0
    %3584 = vmatprep.subr.mxu0 0.0
    %3585 = vmatpush1.msra.mxu0 0.0
    %3586 = vmatprep.subr.mxu0 0.0
    %3587 = vmatpush1.msra.mxu0 0.0
    %3588 = vmatprep.mubr.f32.mxu0 0.0
    %3589 = vmatmul.mubr.f32.gmra.mrb[0].mxu0 %v3522
    %v3590 = vpop.f32.mrb[0].mxu0
    %v3591 = vadd.f32 0.0, %v3590
    %v3592 = vpop.f32.mrb[0].mxu0
    %3593 = vdwg.mxu0
    %v3595 = vsel %vm3344, %v3492, 0
    %3597 = vmatprep.subr.mxu0 0.0
    %3598 = vmatpush1.msra.mxu0 %v1984
    %3599 = vmatprep.subr.mxu0 0.0
    %3600 = vmatpush1.msra.mxu0 0.0
    %3601 = vmatprep.subr.mxu0 0.0
    %3602 = vmatpush1.msra.mxu0 0.0
    %3603 = vmatprep.subr.mxu0 0.0
    %3604 = vmatpush1.msra.mxu0 0.0
    %3605 = vmatprep.subr.mxu0 0.0
    %3606 = vmatpush1.msra.mxu0 0.0
    %3607 = vmatprep.subr.mxu0 0.0
    %3608 = vmatpush1.msra.mxu0 0.0
    %3609 = vmatprep.subr.mxu0 0.0
    %3610 = vmatpush1.msra.mxu0 0.0
    %3611 = vmatprep.subr.mxu0 0.0
    %3612 = vmatpush1.msra.mxu0 0.0
    %3613 = vmatprep.subr.mxu0 0.0
    %3614 = vmatpush1.msra.mxu0 0.0
    %3615 = vmatprep.subr.mxu0 0.0
    %3616 = vmatpush1.msra.mxu0 0.0
    %3617 = vmatprep.subr.mxu0 0.0
    %3618 = vmatpush1.msra.mxu0 0.0
    %3619 = vmatprep.subr.mxu0 0.0
    %3620 = vmatpush1.msra.mxu0 0.0
    %3621 = vmatprep.subr.mxu0 0.0
    %3622 = vmatpush1.msra.mxu0 0.0
    %3623 = vmatprep.subr.mxu0 0.0
    %3624 = vmatpush1.msra.mxu0 0.0
    %3625 = vmatprep.subr.mxu0 0.0
    %3626 = vmatpush1.msra.mxu0 0.0
    %3627 = vmatprep.subr.mxu0 0.0
    %3628 = vmatpush1.msra.mxu0 0.0
    %3629 = vmatprep.subr.mxu0 0.0
    %3630 = vmatpush1.msra.mxu0 0.0
    %3631 = vmatprep.subr.mxu0 0.0
    %3632 = vmatpush1.msra.mxu0 0.0
    %3633 = vmatprep.subr.mxu0 0.0
    %3634 = vmatpush1.msra.mxu0 0.0
    %3635 = vmatprep.subr.mxu0 0.0
    %3636 = vmatpush1.msra.mxu0 0.0
    %3637 = vmatprep.subr.mxu0 0.0
    %3638 = vmatpush1.msra.mxu0 0.0
    %3639 = vmatprep.subr.mxu0 0.0
    %3640 = vmatpush1.msra.mxu0 0.0
    %3641 = vmatprep.subr.mxu0 0.0
    %3642 = vmatpush1.msra.mxu0 0.0
    %3643 = vmatprep.subr.mxu0 0.0
    %3644 = vmatpush1.msra.mxu0 0.0
    %3645 = vmatprep.subr.mxu0 0.0
    %3646 = vmatpush1.msra.mxu0 0.0
    %3647 = vmatprep.subr.mxu0 0.0
    %3648 = vmatpush1.msra.mxu0 0.0
    %3649 = vmatprep.subr.mxu0 0.0
    %3650 = vmatpush1.msra.mxu0 0.0
    %3651 = vmatprep.subr.mxu0 0.0
    %3652 = vmatpush1.msra.mxu0 0.0
    %3653 = vmatprep.subr.mxu0 0.0
    %3654 = vmatpush1.msra.mxu0 0.0
    %3655 = vmatprep.subr.mxu0 0.0
    %3656 = vmatpush1.msra.mxu0 0.0
    %3657 = vmatprep.subr.mxu0 0.0
    %3658 = vmatpush1.msra.mxu0 0.0
    %3659 = vmatprep.subr.mxu0 0.0
    %3660 = vmatpush1.msra.mxu0 0.0
    %3661 = vmatprep.mubr.f32.mxu0 0.0
    %3662 = vmatmul.mubr.f32.gmra.mrb[0].mxu0 %v3595
    %v3663 = vpop.f32.mrb[0].mxu0
    %v3664 = vadd.f32 0.0, %v3663
    %v3665 = vpop.f32.mrb[0].mxu0
    %3666 = vdwg.mxu0
    %v3668 = vsel %vm3344, %v3494, 0
    %3670 = vmatprep.subr.mxu0 0.0
    %3671 = vmatpush1.msra.mxu0 %v1985
    %3672 = vmatprep.subr.mxu0 0.0
    %3673 = vmatpush1.msra.mxu0 0.0
    %3674 = vmatprep.subr.mxu0 0.0
    %3675 = vmatpush1.msra.mxu0 0.0
    %3676 = vmatprep.subr.mxu0 0.0
    %3677 = vmatpush1.msra.mxu0 0.0
    %3678 = vmatprep.subr.mxu0 0.0
    %3679 = vmatpush1.msra.mxu0 0.0
    %3680 = vmatprep.subr.mxu0 0.0
    %3681 = vmatpush1.msra.mxu0 0.0
    %3682 = vmatprep.subr.mxu0 0.0
    %3683 = vmatpush1.msra.mxu0 0.0
    %3684 = vmatprep.subr.mxu0 0.0
    %3685 = vmatpush1.msra.mxu0 0.0
    %3686 = vmatprep.subr.mxu0 0.0
    %3687 = vmatpush1.msra.mxu0 0.0
    %3688 = vmatprep.subr.mxu0 0.0
    %3689 = vmatpush1.msra.mxu0 0.0
    %3690 = vmatprep.subr.mxu0 0.0
    %3691 = vmatpush1.msra.mxu0 0.0
    %3692 = vmatprep.subr.mxu0 0.0
    %3693 = vmatpush1.msra.mxu0 0.0
    %3694 = vmatprep.subr.mxu0 0.0
    %3695 = vmatpush1.msra.mxu0 0.0
    %3696 = vmatprep.subr.mxu0 0.0
    %3697 = vmatpush1.msra.mxu0 0.0
    %3698 = vmatprep.subr.mxu0 0.0
    %3699 = vmatpush1.msra.mxu0 0.0
    %3700 = vmatprep.subr.mxu0 0.0
    %3701 = vmatpush1.msra.mxu0 0.0
    %3702 = vmatprep.subr.mxu0 0.0
    %3703 = vmatpush1.msra.mxu0 0.0
    %3704 = vmatprep.subr.mxu0 0.0
    %3705 = vmatpush1.msra.mxu0 0.0
    %3706 = vmatprep.subr.mxu0 0.0
    %3707 = vmatpush1.msra.mxu0 0.0
    %3708 = vmatprep.subr.mxu0 0.0
    %3709 = vmatpush1.msra.mxu0 0.0
    %3710 = vmatprep.subr.mxu0 0.0
    %3711 = vmatpush1.msra.mxu0 0.0
    %3712 = vmatprep.subr.mxu0 0.0
    %3713 = vmatpush1.msra.mxu0 0.0
    %3714 = vmatprep.subr.mxu0 0.0
    %3715 = vmatpush1.msra.mxu0 0.0
    %3716 = vmatprep.subr.mxu0 0.0
    %3717 = vmatpush1.msra.mxu0 0.0
    %3718 = vmatprep.subr.mxu0 0.0
    %3719 = vmatpush1.msra.mxu0 0.0
    %3720 = vmatprep.subr.mxu0 0.0
    %3721 = vmatpush1.msra.mxu0 0.0
    %3722 = vmatprep.subr.mxu0 0.0
    %3723 = vmatpush1.msra.mxu0 0.0
    %3724 = vmatprep.subr.mxu0 0.0
    %3725 = vmatpush1.msra.mxu0 0.0
    %3726 = vmatprep.subr.mxu0 0.0
    %3727 = vmatpush1.msra.mxu0 0.0
    %3728 = vmatprep.subr.mxu0 0.0
    %3729 = vmatpush1.msra.mxu0 0.0
    %3730 = vmatprep.subr.mxu0 0.0
    %3731 = vmatpush1.msra.mxu0 0.0
    %3732 = vmatprep.subr.mxu0 0.0
    %3733 = vmatpush1.msra.mxu0 0.0
    %3734 = vmatprep.mubr.f32.mxu0 0.0
    %3735 = vmatmul.mubr.f32.gmra.mrb[0].mxu0 %v3668
    %v3736 = vpop.f32.mrb[0].mxu0
    %v3737 = vadd.f32 0.0, %v3736
    %v3738 = vpop.f32.mrb[0].mxu0
    %3739 = vdwg.mxu0
    %v3741 = vsel %vm3344, %v3496, 0
    %3743 = vmatprep.subr.mxu0 0.0
    %3744 = vmatpush1.msra.mxu0 %v1986
    %3745 = vmatprep.subr.mxu0 0.0
    %3746 = vmatpush1.msra.mxu0 0.0
    %3747 = vmatprep.subr.mxu0 0.0
    %3748 = vmatpush1.msra.mxu0 0.0
    %3749 = vmatprep.subr.mxu0 0.0
    %3750 = vmatpush1.msra.mxu0 0.0
    %3751 = vmatprep.subr.mxu0 0.0
    %3752 = vmatpush1.msra.mxu0 0.0
    %3753 = vmatprep.subr.mxu0 0.0
    %3754 = vmatpush1.msra.mxu0 0.0
    %3755 = vmatprep.subr.mxu0 0.0
    %3756 = vmatpush1.msra.mxu0 0.0
    %3757 = vmatprep.subr.mxu0 0.0
    %3758 = vmatpush1.msra.mxu0 0.0
    %3759 = vmatprep.subr.mxu0 0.0
    %3760 = vmatpush1.msra.mxu0 0.0
    %3761 = vmatprep.subr.mxu0 0.0
    %3762 = vmatpush1.msra.mxu0 0.0
    %3763 = vmatprep.subr.mxu0 0.0
    %3764 = vmatpush1.msra.mxu0 0.0
    %3765 = vmatprep.subr.mxu0 0.0
    %3766 = vmatpush1.msra.mxu0 0.0
    %3767 = vmatprep.subr.mxu0 0.0
    %3768 = vmatpush1.msra.mxu0 0.0
    %3769 = vmatprep.subr.mxu0 0.0
    %3770 = vmatpush1.msra.mxu0 0.0
    %3771 = vmatprep.subr.mxu0 0.0
    %3772 = vmatpush1.msra.mxu0 0.0
    %3773 = vmatprep.subr.mxu0 0.0
    %3774 = vmatpush1.msra.mxu0 0.0
    %3775 = vmatprep.subr.mxu0 0.0
    %3776 = vmatpush1.msra.mxu0 0.0
    %3777 = vmatprep.subr.mxu0 0.0
    %3778 = vmatpush1.msra.mxu0 0.0
    %3779 = vmatprep.subr.mxu0 0.0
    %3780 = vmatpush1.msra.mxu0 0.0
    %3781 = vmatprep.subr.mxu0 0.0
    %3782 = vmatpush1.msra.mxu0 0.0
    %3783 = vmatprep.subr.mxu0 0.0
    %3784 = vmatpush1.msra.mxu0 0.0
    %3785 = vmatprep.subr.mxu0 0.0
    %3786 = vmatpush1.msra.mxu0 0.0
    %3787 = vmatprep.subr.mxu0 0.0
    %3788 = vmatpush1.msra.mxu0 0.0
    %3789 = vmatprep.subr.mxu0 0.0
    %3790 = vmatpush1.msra.mxu0 0.0
    %3791 = vmatprep.subr.mxu0 0.0
    %3792 = vmatpush1.msra.mxu0 0.0
    %3793 = vmatprep.subr.mxu0 0.0
    %3794 = vmatpush1.msra.mxu0 0.0
    %3795 = vmatprep.subr.mxu0 0.0
    %3796 = vmatpush1.msra.mxu0 0.0
    %3797 = vmatprep.subr.mxu0 0.0
    %3798 = vmatpush1.msra.mxu0 0.0
    %3799 = vmatprep.subr.mxu0 0.0
    %3800 = vmatpush1.msra.mxu0 0.0
    %3801 = vmatprep.subr.mxu0 0.0
    %3802 = vmatpush1.msra.mxu0 0.0
    %3803 = vmatprep.subr.mxu0 0.0
    %3804 = vmatpush1.msra.mxu0 0.0
    %3805 = vmatprep.subr.mxu0 0.0
    %3806 = vmatpush1.msra.mxu0 0.0
    %3807 = vmatprep.mubr.f32.mxu0 0.0
    %3808 = vmatmul.mubr.f32.gmra.mrb[0].mxu0 %v3741
    %v3809 = vpop.f32.mrb[0].mxu0
    %v3810 = vadd.f32 0.0, %v3809
    %v3811 = vpop.f32.mrb[0].mxu0
    %3812 = vdwg.mxu0
    %v3814 = vsel %vm3344, %v3498, 0
    %3816 = vmatprep.subr.mxu0 0.0
    %3817 = vmatpush1.msra.mxu0 %v1987
    %3818 = vmatprep.subr.mxu0 0.0
    %3819 = vmatpush1.msra.mxu0 0.0
    %3820 = vmatprep.subr.mxu0 0.0
    %3821 = vmatpush1.msra.mxu0 0.0
    %3822 = vmatprep.subr.mxu0 0.0
    %3823 = vmatpush1.msra.mxu0 0.0
    %3824 = vmatprep.subr.mxu0 0.0
    %3825 = vmatpush1.msra.mxu0 0.0
    %3826 = vmatprep.subr.mxu0 0.0
    %3827 = vmatpush1.msra.mxu0 0.0
    %3828 = vmatprep.subr.mxu0 0.0
    %3829 = vmatpush1.msra.mxu0 0.0
    %3830 = vmatprep.subr.mxu0 0.0
    %3831 = vmatpush1.msra.mxu0 0.0
    %3832 = vmatprep.subr.mxu0 0.0
    %3833 = vmatpush1.msra.mxu0 0.0
    %3834 = vmatprep.subr.mxu0 0.0
    %3835 = vmatpush1.msra.mxu0 0.0
    %3836 = vmatprep.subr.mxu0 0.0
    %3837 = vmatpush1.msra.mxu0 0.0
    %3838 = vmatprep.subr.mxu0 0.0
    %3839 = vmatpush1.msra.mxu0 0.0
    %3840 = vmatprep.subr.mxu0 0.0
    %3841 = vmatpush1.msra.mxu0 0.0
    %3842 = vmatprep.subr.mxu0 0.0
    %3843 = vmatpush1.msra.mxu0 0.0
    %3844 = vmatprep.subr.mxu0 0.0
    %3845 = vmatpush1.msra.mxu0 0.0
    %3846 = vmatprep.subr.mxu0 0.0
    %3847 = vmatpush1.msra.mxu0 0.0
    %3848 = vmatprep.subr.mxu0 0.0
    %3849 = vmatpush1.msra.mxu0 0.0
    %3850 = vmatprep.subr.mxu0 0.0
    %3851 = vmatpush1.msra.mxu0 0.0
    %3852 = vmatprep.subr.mxu0 0.0
    %3853 = vmatpush1.msra.mxu0 0.0
    %3854 = vmatprep.subr.mxu0 0.0
    %3855 = vmatpush1.msra.mxu0 0.0
    %3856 = vmatprep.subr.mxu0 0.0
    %3857 = vmatpush1.msra.mxu0 0.0
    %3858 = vmatprep.subr.mxu0 0.0
    %3859 = vmatpush1.msra.mxu0 0.0
    %3860 = vmatprep.subr.mxu0 0.0
    %3861 = vmatpush1.msra.mxu0 0.0
    %3862 = vmatprep.subr.mxu0 0.0
    %3863 = vmatpush1.msra.mxu0 0.0
    %3864 = vmatprep.subr.mxu0 0.0
    %3865 = vmatpush1.msra.mxu0 0.0
    %3866 = vmatprep.subr.mxu0 0.0
    %3867 = vmatpush1.msra.mxu0 0.0
    %3868 = vmatprep.subr.mxu0 0.0
    %3869 = vmatpush1.msra.mxu0 0.0
    %3870 = vmatprep.subr.mxu0 0.0
    %3871 = vmatpush1.msra.mxu0 0.0
    %3872 = vmatprep.subr.mxu0 0.0
    %3873 = vmatpush1.msra.mxu0 0.0
    %3874 = vmatprep.subr.mxu0 0.0
    %3875 = vmatpush1.msra.mxu0 0.0
    %3876 = vmatprep.subr.mxu0 0.0
    %3877 = vmatpush1.msra.mxu0 0.0
    %3878 = vmatprep.subr.mxu0 0.0
    %3879 = vmatpush1.msra.mxu0 0.0
    %3880 = vmatprep.mubr.f32.mxu0 0.0
    %3881 = vmatmul.mubr.f32.gmra.mrb[0].mxu0 %v3814
    %v3882 = vpop.f32.mrb[0].mxu0
    %v3883 = vadd.f32 0.0, %v3882
    %v3884 = vpop.f32.mrb[0].mxu0
    %3885 = vdwg.mxu0
    %v3887 = vsel %vm3344, %v3500, 0
    %3889 = vmatprep.subr.mxu0 0.0
    %3890 = vmatpush1.msra.mxu0 %v1988
    %3891 = vmatprep.subr.mxu0 0.0
    %3892 = vmatpush1.msra.mxu0 0.0
    %3893 = vmatprep.subr.mxu0 0.0
    %3894 = vmatpush1.msra.mxu0 0.0
    %3895 = vmatprep.subr.mxu0 0.0
    %3896 = vmatpush1.msra.mxu0 0.0
    %3897 = vmatprep.subr.mxu0 0.0
    %3898 = vmatpush1.msra.mxu0 0.0
    %3899 = vmatprep.subr.mxu0 0.0
    %3900 = vmatpush1.msra.mxu0 0.0
    %3901 = vmatprep.subr.mxu0 0.0
    %3902 = vmatpush1.msra.mxu0 0.0
    %3903 = vmatprep.subr.mxu0 0.0
    %3904 = vmatpush1.msra.mxu0 0.0
    %3905 = vmatprep.subr.mxu0 0.0
    %3906 = vmatpush1.msra.mxu0 0.0
    %3907 = vmatprep.subr.mxu0 0.0
    %3908 = vmatpush1.msra.mxu0 0.0
    %3909 = vmatprep.subr.mxu0 0.0
    %3910 = vmatpush1.msra.mxu0 0.0
    %3911 = vmatprep.subr.mxu0 0.0
    %3912 = vmatpush1.msra.mxu0 0.0
    %3913 = vmatprep.subr.mxu0 0.0
    %3914 = vmatpush1.msra.mxu0 0.0
    %3915 = vmatprep.subr.mxu0 0.0
    %3916 = vmatpush1.msra.mxu0 0.0
    %3917 = vmatprep.subr.mxu0 0.0
    %3918 = vmatpush1.msra.mxu0 0.0
    %3919 = vmatprep.subr.mxu0 0.0
    %3920 = vmatpush1.msra.mxu0 0.0
    %3921 = vmatprep.subr.mxu0 0.0
    %3922 = vmatpush1.msra.mxu0 0.0
    %3923 = vmatprep.subr.mxu0 0.0
    %3924 = vmatpush1.msra.mxu0 0.0
    %3925 = vmatprep.subr.mxu0 0.0
    %3926 = vmatpush1.msra.mxu0 0.0
    %3927 = vmatprep.subr.mxu0 0.0
    %3928 = vmatpush1.msra.mxu0 0.0
    %3929 = vmatprep.subr.mxu0 0.0
    %3930 = vmatpush1.msra.mxu0 0.0
    %3931 = vmatprep.subr.mxu0 0.0
    %3932 = vmatpush1.msra.mxu0 0.0
    %3933 = vmatprep.subr.mxu0 0.0
    %3934 = vmatpush1.msra.mxu0 0.0
    %3935 = vmatprep.subr.mxu0 0.0
    %3936 = vmatpush1.msra.mxu0 0.0
    %3937 = vmatprep.subr.mxu0 0.0
    %3938 = vmatpush1.msra.mxu0 0.0
    %3939 = vmatprep.subr.mxu0 0.0
    %3940 = vmatpush1.msra.mxu0 0.0
    %3941 = vmatprep.subr.mxu0 0.0
    %3942 = vmatpush1.msra.mxu0 0.0
    %3943 = vmatprep.subr.mxu0 0.0
    %3944 = vmatpush1.msra.mxu0 0.0
    %3945 = vmatprep.subr.mxu0 0.0
    %3946 = vmatpush1.msra.mxu0 0.0
    %3947 = vmatprep.subr.mxu0 0.0
    %3948 = vmatpush1.msra.mxu0 0.0
    %3949 = vmatprep.subr.mxu0 0.0
    %3950 = vmatpush1.msra.mxu0 0.0
    %3951 = vmatprep.subr.mxu0 0.0
    %3952 = vmatpush1.msra.mxu0 0.0
    %3953 = vmatprep.mubr.f32.mxu0 0.0
    %3954 = vmatmul.mubr.f32.gmra.mrb[0].mxu0 %v3887
    %v3955 = vpop.f32.mrb[0].mxu0
    %v3956 = vadd.f32 0.0, %v3955
    %v3957 = vpop.f32.mrb[0].mxu0
    %3958 = vdwg.mxu0
    %v3960 = vsel %vm3344, %v3502, 0
    %3962 = vmatprep.subr.mxu0 0.0
    %3963 = vmatpush1.msra.mxu0 %v1989
    %3964 = vmatprep.subr.mxu0 0.0
    %3965 = vmatpush1.msra.mxu0 0.0
    %3966 = vmatprep.subr.mxu0 0.0
    %3967 = vmatpush1.msra.mxu0 0.0
    %3968 = vmatprep.subr.mxu0 0.0
    %3969 = vmatpush1.msra.mxu0 0.0
    %3970 = vmatprep.subr.mxu0 0.0
    %3971 = vmatpush1.msra.mxu0 0.0
    %3972 = vmatprep.subr.mxu0 0.0
    %3973 = vmatpush1.msra.mxu0 0.0
    %3974 = vmatprep.subr.mxu0 0.0
    %3975 = vmatpush1.msra.mxu0 0.0
    %3976 = vmatprep.subr.mxu0 0.0
    %3977 = vmatpush1.msra.mxu0 0.0
    %3978 = vmatprep.subr.mxu0 0.0
    %3979 = vmatpush1.msra.mxu0 0.0
    %3980 = vmatprep.subr.mxu0 0.0
    %3981 = vmatpush1.msra.mxu0 0.0
    %3982 = vmatprep.subr.mxu0 0.0
    %3983 = vmatpush1.msra.mxu0 0.0
    %3984 = vmatprep.subr.mxu0 0.0
    %3985 = vmatpush1.msra.mxu0 0.0
    %3986 = vmatprep.subr.mxu0 0.0
    %3987 = vmatpush1.msra.mxu0 0.0
    %3988 = vmatprep.subr.mxu0 0.0
    %3989 = vmatpush1.msra.mxu0 0.0
    %3990 = vmatprep.subr.mxu0 0.0
    %3991 = vmatpush1.msra.mxu0 0.0
    %3992 = vmatprep.subr.mxu0 0.0
    %3993 = vmatpush1.msra.mxu0 0.0
    %3994 = vmatprep.subr.mxu0 0.0
    %3995 = vmatpush1.msra.mxu0 0.0
    %3996 = vmatprep.subr.mxu0 0.0
    %3997 = vmatpush1.msra.mxu0 0.0
    %3998 = vmatprep.subr.mxu0 0.0
    %3999 = vmatpush1.msra.mxu0 0.0
    %4000 = vmatprep.subr.mxu0 0.0
    %4001 = vmatpush1.msra.mxu0 0.0
    %4002 = vmatprep.subr.mxu0 0.0
    %4003 = vmatpush1.msra.mxu0 0.0
    %4004 = vmatprep.subr.mxu0 0.0
    %4005 = vmatpush1.msra.mxu0 0.0
    %4006 = vmatprep.subr.mxu0 0.0
    %4007 = vmatpush1.msra.mxu0 0.0
    %4008 = vmatprep.subr.mxu0 0.0
    %4009 = vmatpush1.msra.mxu0 0.0
    %4010 = vmatprep.subr.mxu0 0.0
    %4011 = vmatpush1.msra.mxu0 0.0
    %4012 = vmatprep.subr.mxu0 0.0
    %4013 = vmatpush1.msra.mxu0 0.0
    %4014 = vmatprep.subr.mxu0 0.0
    %4015 = vmatpush1.msra.mxu0 0.0
    %4016 = vmatprep.subr.mxu0 0.0
    %4017 = vmatpush1.msra.mxu0 0.0
    %4018 = vmatprep.subr.mxu0 0.0
    %4019 = vmatpush1.msra.mxu0 0.0
    %4020 = vmatprep.subr.mxu0 0.0
    %4021 = vmatpush1.msra.mxu0 0.0
    %4022 = vmatprep.subr.mxu0 0.0
    %4023 = vmatpush1.msra.mxu0 0.0
    %4024 = vmatprep.subr.mxu0 0.0
    %4025 = vmatpush1.msra.mxu0 0.0
    %4026 = vmatprep.mubr.f32.mxu0 0.0
    %4027 = vmatmul.mubr.f32.gmra.mrb[0].mxu0 %v3960
    %v4028 = vpop.f32.mrb[0].mxu0
    %v4029 = vadd.f32 0.0, %v4028
    %v4030 = vpop.f32.mrb[0].mxu0
    %4031 = vdwg.mxu0
    %v4033 = vsel %vm3344, %v3504, 0
    %4035 = vmatprep.subr.mxu0 0.0
    %4036 = vmatpush1.msra.mxu0 %v1990
    %4037 = vmatprep.subr.mxu0 0.0
    %4038 = vmatpush1.msra.mxu0 0.0
    %4039 = vmatprep.subr.mxu0 0.0
    %4040 = vmatpush1.msra.mxu0 0.0
    %4041 = vmatprep.subr.mxu0 0.0
    %4042 = vmatpush1.msra.mxu0 0.0
    %4043 = vmatprep.subr.mxu0 0.0
    %4044 = vmatpush1.msra.mxu0 0.0
    %4045 = vmatprep.subr.mxu0 0.0
    %4046 = vmatpush1.msra.mxu0 0.0
    %4047 = vmatprep.subr.mxu0 0.0
    %4048 = vmatpush1.msra.mxu0 0.0
    %4049 = vmatprep.subr.mxu0 0.0
    %4050 = vmatpush1.msra.mxu0 0.0
    %4051 = vmatprep.subr.mxu0 0.0
    %4052 = vmatpush1.msra.mxu0 0.0
    %4053 = vmatprep.subr.mxu0 0.0
    %4054 = vmatpush1.msra.mxu0 0.0
    %4055 = vmatprep.subr.mxu0 0.0
    %4056 = vmatpush1.msra.mxu0 0.0
    %4057 = vmatprep.subr.mxu0 0.0
    %4058 = vmatpush1.msra.mxu0 0.0
    %4059 = vmatprep.subr.mxu0 0.0
    %4060 = vmatpush1.msra.mxu0 0.0
    %4061 = vmatprep.subr.mxu0 0.0
    %4062 = vmatpush1.msra.mxu0 0.0
    %4063 = vmatprep.subr.mxu0 0.0
    %4064 = vmatpush1.msra.mxu0 0.0
    %4065 = vmatprep.subr.mxu0 0.0
    %4066 = vmatpush1.msra.mxu0 0.0
    %4067 = vmatprep.subr.mxu0 0.0
    %4068 = vmatpush1.msra.mxu0 0.0
    %4069 = vmatprep.subr.mxu0 0.0
    %4070 = vmatpush1.msra.mxu0 0.0
    %4071 = vmatprep.subr.mxu0 0.0
    %4072 = vmatpush1.msra.mxu0 0.0
    %4073 = vmatprep.subr.mxu0 0.0
    %4074 = vmatpush1.msra.mxu0 0.0
    %4075 = vmatprep.subr.mxu0 0.0
    %4076 = vmatpush1.msra.mxu0 0.0
    %4077 = vmatprep.subr.mxu0 0.0
    %4078 = vmatpush1.msra.mxu0 0.0
    %4079 = vmatprep.subr.mxu0 0.0
    %4080 = vmatpush1.msra.mxu0 0.0
    %4081 = vmatprep.subr.mxu0 0.0
    %4082 = vmatpush1.msra.mxu0 0.0
    %4083 = vmatprep.subr.mxu0 0.0
    %4084 = vmatpush1.msra.mxu0 0.0
    %4085 = vmatprep.subr.mxu0 0.0
    %4086 = vmatpush1.msra.mxu0 0.0
    %4087 = vmatprep.subr.mxu0 0.0
    %4088 = vmatpush1.msra.mxu0 0.0
    %4089 = vmatprep.subr.mxu0 0.0
    %4090 = vmatpush1.msra.mxu0 0.0
    %4091 = vmatprep.subr.mxu0 0.0
    %4092 = vmatpush1.msra.mxu0 0.0
    %4093 = vmatprep.subr.mxu0 0.0
    %4094 = vmatpush1.msra.mxu0 0.0
    %4095 = vmatprep.subr.mxu0 0.0
    %4096 = vmatpush1.msra.mxu0 0.0
    %4097 = vmatprep.subr.mxu0 0.0
    %4098 = vmatpush1.msra.mxu0 0.0
    %4099 = vmatprep.mubr.f32.mxu0 0.0
    %4100 = vmatmul.mubr.f32.gmra.mrb[0].mxu0 %v4033
    %v4101 = vpop.f32.mrb[0].mxu0
    %v4102 = vadd.f32 0.0, %v4101
    %v4103 = vpop.f32.mrb[0].mxu0
    %4104 = vdwg.mxu0
    %v4106 = vsel %vm3344, %v3506, 0
    %4108 = vmatprep.subr.mxu0 0.0
    %4109 = vmatpush1.msra.mxu0 %v2119
    %4110 = vmatprep.subr.mxu0 0.0
    %4111 = vmatpush1.msra.mxu0 0.0
    %4112 = vmatprep.subr.mxu0 0.0
    %4113 = vmatpush1.msra.mxu0 0.0
    %4114 = vmatprep.subr.mxu0 0.0
    %4115 = vmatpush1.msra.mxu0 0.0
    %4116 = vmatprep.subr.mxu0 0.0
    %4117 = vmatpush1.msra.mxu0 0.0
    %4118 = vmatprep.subr.mxu0 0.0
    %4119 = vmatpush1.msra.mxu0 0.0
    %4120 = vmatprep.subr.mxu0 0.0
    %4121 = vmatpush1.msra.mxu0 0.0
    %4122 = vmatprep.subr.mxu0 0.0
    %4123 = vmatpush1.msra.mxu0 0.0
    %4124 = vmatprep.subr.mxu0 0.0
    %4125 = vmatpush1.msra.mxu0 0.0
    %4126 = vmatprep.subr.mxu0 0.0
    %4127 = vmatpush1.msra.mxu0 0.0
    %4128 = vmatprep.subr.mxu0 0.0
    %4129 = vmatpush1.msra.mxu0 0.0
    %4130 = vmatprep.subr.mxu0 0.0
    %4131 = vmatpush1.msra.mxu0 0.0
    %4132 = vmatprep.subr.mxu0 0.0
    %4133 = vmatpush1.msra.mxu0 0.0
    %4134 = vmatprep.subr.mxu0 0.0
    %4135 = vmatpush1.msra.mxu0 0.0
    %4136 = vmatprep.subr.mxu0 0.0
    %4137 = vmatpush1.msra.mxu0 0.0
    %4138 = vmatprep.subr.mxu0 0.0
    %4139 = vmatpush1.msra.mxu0 0.0
    %4140 = vmatprep.subr.mxu0 0.0
    %4141 = vmatpush1.msra.mxu0 0.0
    %4142 = vmatprep.subr.mxu0 0.0
    %4143 = vmatpush1.msra.mxu0 0.0
    %4144 = vmatprep.subr.mxu0 0.0
    %4145 = vmatpush1.msra.mxu0 0.0
    %4146 = vmatprep.subr.mxu0 0.0
    %4147 = vmatpush1.msra.mxu0 0.0
    %4148 = vmatprep.subr.mxu0 0.0
    %4149 = vmatpush1.msra.mxu0 0.0
    %4150 = vmatprep.subr.mxu0 0.0
    %4151 = vmatpush1.msra.mxu0 0.0
    %4152 = vmatprep.subr.mxu0 0.0
    %4153 = vmatpush1.msra.mxu0 0.0
    %4154 = vmatprep.subr.mxu0 0.0
    %4155 = vmatpush1.msra.mxu0 0.0
    %4156 = vmatprep.subr.mxu0 0.0
    %4157 = vmatpush1.msra.mxu0 0.0
    %4158 = vmatprep.subr.mxu0 0.0
    %4159 = vmatpush1.msra.mxu0 0.0
    %4160 = vmatprep.subr.mxu0 0.0
    %4161 = vmatpush1.msra.mxu0 0.0
    %4162 = vmatprep.subr.mxu0 0.0
    %4163 = vmatpush1.msra.mxu0 0.0
    %4164 = vmatprep.subr.mxu0 0.0
    %4165 = vmatpush1.msra.mxu0 0.0
    %4166 = vmatprep.subr.mxu0 0.0
    %4167 = vmatpush1.msra.mxu0 0.0
    %4168 = vmatprep.subr.mxu0 0.0
    %4169 = vmatpush1.msra.mxu0 0.0
    %4170 = vmatprep.subr.mxu0 0.0
    %4171 = vmatpush1.msra.mxu0 0.0
    %4172 = vmatprep.mubr.f32.mxu0 0.0
    %4173 = vmatmul.mubr.f32.gmra.mrb[0].mxu0 %v4106
    %v4174 = vpop.f32.mrb[0].mxu0
    %v4175 = vadd.f32 0.0, %v4174
    %v4176 = vpop.f32.mrb[0].mxu0
    %4177 = vdwg.mxu0
    %v4179 = vsel %vm3344, %v3508, 0
    %4181 = vmatprep.subr.mxu0 0.0
    %4182 = vmatpush1.msra.mxu0 %v2120
    %4183 = vmatprep.subr.mxu0 0.0
    %4184 = vmatpush1.msra.mxu0 0.0
    %4185 = vmatprep.subr.mxu0 0.0
    %4186 = vmatpush1.msra.mxu0 0.0
    %4187 = vmatprep.subr.mxu0 0.0
    %4188 = vmatpush1.msra.mxu0 0.0
    %4189 = vmatprep.subr.mxu0 0.0
    %4190 = vmatpush1.msra.mxu0 0.0
    %4191 = vmatprep.subr.mxu0 0.0
    %4192 = vmatpush1.msra.mxu0 0.0
    %4193 = vmatprep.subr.mxu0 0.0
    %4194 = vmatpush1.msra.mxu0 0.0
    %4195 = vmatprep.subr.mxu0 0.0
    %4196 = vmatpush1.msra.mxu0 0.0
    %4197 = vmatprep.subr.mxu0 0.0
    %4198 = vmatpush1.msra.mxu0 0.0
    %4199 = vmatprep.subr.mxu0 0.0
    %4200 = vmatpush1.msra.mxu0 0.0
    %4201 = vmatprep.subr.mxu0 0.0
    %4202 = vmatpush1.msra.mxu0 0.0
    %4203 = vmatprep.subr.mxu0 0.0
    %4204 = vmatpush1.msra.mxu0 0.0
    %4205 = vmatprep.subr.mxu0 0.0
    %4206 = vmatpush1.msra.mxu0 0.0
    %4207 = vmatprep.subr.mxu0 0.0
    %4208 = vmatpush1.msra.mxu0 0.0
    %4209 = vmatprep.subr.mxu0 0.0
    %4210 = vmatpush1.msra.mxu0 0.0
    %4211 = vmatprep.subr.mxu0 0.0
    %4212 = vmatpush1.msra.mxu0 0.0
    %4213 = vmatprep.subr.mxu0 0.0
    %4214 = vmatpush1.msra.mxu0 0.0
    %4215 = vmatprep.subr.mxu0 0.0
    %4216 = vmatpush1.msra.mxu0 0.0
    %4217 = vmatprep.subr.mxu0 0.0
    %4218 = vmatpush1.msra.mxu0 0.0
    %4219 = vmatprep.subr.mxu0 0.0
    %4220 = vmatpush1.msra.mxu0 0.0
    %4221 = vmatprep.subr.mxu0 0.0
    %4222 = vmatpush1.msra.mxu0 0.0
    %4223 = vmatprep.subr.mxu0 0.0
    %4224 = vmatpush1.msra.mxu0 0.0
    %4225 = vmatprep.subr.mxu0 0.0
    %4226 = vmatpush1.msra.mxu0 0.0
    %4227 = vmatprep.subr.mxu0 0.0
    %4228 = vmatpush1.msra.mxu0 0.0
    %4229 = vmatprep.subr.mxu0 0.0
    %4230 = vmatpush1.msra.mxu0 0.0
    %4231 = vmatprep.subr.mxu0 0.0
    %4232 = vmatpush1.msra.mxu0 0.0
    %4233 = vmatprep.subr.mxu0 0.0
    %4234 = vmatpush1.msra.mxu0 0.0
    %4235 = vmatprep.subr.mxu0 0.0
    %4236 = vmatpush1.msra.mxu0 0.0
    %4237 = vmatprep.subr.mxu0 0.0
    %4238 = vmatpush1.msra.mxu0 0.0
    %4239 = vmatprep.subr.mxu0 0.0
    %4240 = vmatpush1.msra.mxu0 0.0
    %4241 = vmatprep.subr.mxu0 0.0
    %4242 = vmatpush1.msra.mxu0 0.0
    %4243 = vmatprep.subr.mxu0 0.0
    %4244 = vmatpush1.msra.mxu0 0.0
    %4245 = vmatprep.mubr.f32.mxu0 0.0
    %4246 = vmatmul.mubr.f32.gmra.mrb[0].mxu0 %v4179
    %v4247 = vpop.f32.mrb[0].mxu0
    %v4248 = vadd.f32 0.0, %v4247
    %v4249 = vpop.f32.mrb[0].mxu0
    %4250 = vdwg.mxu0
    %v4252 = vsel %vm3344, %v3510, 0
    %4254 = vmatprep.subr.mxu0 0.0
    %4255 = vmatpush1.msra.mxu0 %v2121
    %4256 = vmatprep.subr.mxu0 0.0
    %4257 = vmatpush1.msra.mxu0 0.0
    %4258 = vmatprep.subr.mxu0 0.0
    %4259 = vmatpush1.msra.mxu0 0.0
    %4260 = vmatprep.subr.mxu0 0.0
    %4261 = vmatpush1.msra.mxu0 0.0
    %4262 = vmatprep.subr.mxu0 0.0
    %4263 = vmatpush1.msra.mxu0 0.0
    %4264 = vmatprep.subr.mxu0 0.0
    %4265 = vmatpush1.msra.mxu0 0.0
    %4266 = vmatprep.subr.mxu0 0.0
    %4267 = vmatpush1.msra.mxu0 0.0
    %4268 = vmatprep.subr.mxu0 0.0
    %4269 = vmatpush1.msra.mxu0 0.0
    %4270 = vmatprep.subr.mxu0 0.0
    %4271 = vmatpush1.msra.mxu0 0.0
    %4272 = vmatprep.subr.mxu0 0.0
    %4273 = vmatpush1.msra.mxu0 0.0
    %4274 = vmatprep.subr.mxu0 0.0
    %4275 = vmatpush1.msra.mxu0 0.0
    %4276 = vmatprep.subr.mxu0 0.0
    %4277 = vmatpush1.msra.mxu0 0.0
    %4278 = vmatprep.subr.mxu0 0.0
    %4279 = vmatpush1.msra.mxu0 0.0
    %4280 = vmatprep.subr.mxu0 0.0
    %4281 = vmatpush1.msra.mxu0 0.0
    %4282 = vmatprep.subr.mxu0 0.0
    %4283 = vmatpush1.msra.mxu0 0.0
    %4284 = vmatprep.subr.mxu0 0.0
    %4285 = vmatpush1.msra.mxu0 0.0
    %4286 = vmatprep.subr.mxu0 0.0
    %4287 = vmatpush1.msra.mxu0 0.0
    %4288 = vmatprep.subr.mxu0 0.0
    %4289 = vmatpush1.msra.mxu0 0.0
    %4290 = vmatprep.subr.mxu0 0.0
    %4291 = vmatpush1.msra.mxu0 0.0
    %4292 = vmatprep.subr.mxu0 0.0
    %4293 = vmatpush1.msra.mxu0 0.0
    %4294 = vmatprep.subr.mxu0 0.0
    %4295 = vmatpush1.msra.mxu0 0.0
    %4296 = vmatprep.subr.mxu0 0.0
    %4297 = vmatpush1.msra.mxu0 0.0
    %4298 = vmatprep.subr.mxu0 0.0
    %4299 = vmatpush1.msra.mxu0 0.0
    %4300 = vmatprep.subr.mxu0 0.0
    %4301 = vmatpush1.msra.mxu0 0.0
    %4302 = vmatprep.subr.mxu0 0.0
    %4303 = vmatpush1.msra.mxu0 0.0
    %4304 = vmatprep.subr.mxu0 0.0
    %4305 = vmatpush1.msra.mxu0 0.0
    %4306 = vmatprep.subr.mxu0 0.0
    %4307 = vmatpush1.msra.mxu0 0.0
    %4308 = vmatprep.subr.mxu0 0.0
    %4309 = vmatpush1.msra.mxu0 0.0
    %4310 = vmatprep.subr.mxu0 0.0
    %4311 = vmatpush1.msra.mxu0 0.0
    %4312 = vmatprep.subr.mxu0 0.0
    %4313 = vmatpush1.msra.mxu0 0.0
    %4314 = vmatprep.subr.mxu0 0.0
    %4315 = vmatpush1.msra.mxu0 0.0
    %4316 = vmatprep.subr.mxu0 0.0
    %4317 = vmatpush1.msra.mxu0 0.0
    %4318 = vmatprep.mubr.f32.mxu0 0.0
    %4319 = vmatmul.mubr.f32.gmra.mrb[0].mxu0 %v4252
    %v4320 = vpop.f32.mrb[0].mxu0
    %v4321 = vadd.f32 0.0, %v4320
    %v4322 = vpop.f32.mrb[0].mxu0
    %4323 = vdwg.mxu0
    %v4325 = vsel %vm3344, %v3512, 0
    %4327 = vmatprep.subr.mxu0 0.0
    %4328 = vmatpush1.msra.mxu0 %v2122
    %4329 = vmatprep.subr.mxu0 0.0
    %4330 = vmatpush1.msra.mxu0 0.0
    %4331 = vmatprep.subr.mxu0 0.0
    %4332 = vmatpush1.msra.mxu0 0.0
    %4333 = vmatprep.subr.mxu0 0.0
    %4334 = vmatpush1.msra.mxu0 0.0
    %4335 = vmatprep.subr.mxu0 0.0
    %4336 = vmatpush1.msra.mxu0 0.0
    %4337 = vmatprep.subr.mxu0 0.0
    %4338 = vmatpush1.msra.mxu0 0.0
    %4339 = vmatprep.subr.mxu0 0.0
    %4340 = vmatpush1.msra.mxu0 0.0
    %4341 = vmatprep.subr.mxu0 0.0
    %4342 = vmatpush1.msra.mxu0 0.0
    %4343 = vmatprep.subr.mxu0 0.0
    %4344 = vmatpush1.msra.mxu0 0.0
    %4345 = vmatprep.subr.mxu0 0.0
    %4346 = vmatpush1.msra.mxu0 0.0
    %4347 = vmatprep.subr.mxu0 0.0
    %4348 = vmatpush1.msra.mxu0 0.0
    %4349 = vmatprep.subr.mxu0 0.0
    %4350 = vmatpush1.msra.mxu0 0.0
    %4351 = vmatprep.subr.mxu0 0.0
    %4352 = vmatpush1.msra.mxu0 0.0
    %4353 = vmatprep.subr.mxu0 0.0
    %4354 = vmatpush1.msra.mxu0 0.0
    %4355 = vmatprep.subr.mxu0 0.0
    %4356 = vmatpush1.msra.mxu0 0.0
    %4357 = vmatprep.subr.mxu0 0.0
    %4358 = vmatpush1.msra.mxu0 0.0
    %4359 = vmatprep.subr.mxu0 0.0
    %4360 = vmatpush1.msra.mxu0 0.0
    %4361 = vmatprep.subr.mxu0 0.0
    %4362 = vmatpush1.msra.mxu0 0.0
    %4363 = vmatprep.subr.mxu0 0.0
    %4364 = vmatpush1.msra.mxu0 0.0
    %4365 = vmatprep.subr.mxu0 0.0
    %4366 = vmatpush1.msra.mxu0 0.0
    %4367 = vmatprep.subr.mxu0 0.0
    %4368 = vmatpush1.msra.mxu0 0.0
    %4369 = vmatprep.subr.mxu0 0.0
    %4370 = vmatpush1.msra.mxu0 0.0
    %4371 = vmatprep.subr.mxu0 0.0
    %4372 = vmatpush1.msra.mxu0 0.0
    %4373 = vmatprep.subr.mxu0 0.0
    %4374 = vmatpush1.msra.mxu0 0.0
    %4375 = vmatprep.subr.mxu0 0.0
    %4376 = vmatpush1.msra.mxu0 0.0
    %4377 = vmatprep.subr.mxu0 0.0
    %4378 = vmatpush1.msra.mxu0 0.0
    %4379 = vmatprep.subr.mxu0 0.0
    %4380 = vmatpush1.msra.mxu0 0.0
    %4381 = vmatprep.subr.mxu0 0.0
    %4382 = vmatpush1.msra.mxu0 0.0
    %4383 = vmatprep.subr.mxu0 0.0
    %4384 = vmatpush1.msra.mxu0 0.0
    %4385 = vmatprep.subr.mxu0 0.0
    %4386 = vmatpush1.msra.mxu0 0.0
    %4387 = vmatprep.subr.mxu0 0.0
    %4388 = vmatpush1.msra.mxu0 0.0
    %4389 = vmatprep.subr.mxu0 0.0
    %4390 = vmatpush1.msra.mxu0 0.0
    %4391 = vmatprep.mubr.f32.mxu0 0.0
    %4392 = vmatmul.mubr.f32.gmra.mrb[0].mxu0 %v4325
    %v4393 = vpop.f32.mrb[0].mxu0
    %v4394 = vadd.f32 0.0, %v4393
    %v4395 = vpop.f32.mrb[0].mxu0
    %4396 = vdwg.mxu0
    %v4398 = vsel %vm3344, %v3514, 0
    %4400 = vmatprep.subr.mxu0 0.0
    %4401 = vmatpush1.msra.mxu0 %v2123
    %4402 = vmatprep.subr.mxu0 0.0
    %4403 = vmatpush1.msra.mxu0 0.0
    %4404 = vmatprep.subr.mxu0 0.0
    %4405 = vmatpush1.msra.mxu0 0.0
    %4406 = vmatprep.subr.mxu0 0.0
    %4407 = vmatpush1.msra.mxu0 0.0
    %4408 = vmatprep.subr.mxu0 0.0
    %4409 = vmatpush1.msra.mxu0 0.0
    %4410 = vmatprep.subr.mxu0 0.0
    %4411 = vmatpush1.msra.mxu0 0.0
    %4412 = vmatprep.subr.mxu0 0.0
    %4413 = vmatpush1.msra.mxu0 0.0
    %4414 = vmatprep.subr.mxu0 0.0
    %4415 = vmatpush1.msra.mxu0 0.0
    %4416 = vmatprep.subr.mxu0 0.0
    %4417 = vmatpush1.msra.mxu0 0.0
    %4418 = vmatprep.subr.mxu0 0.0
    %4419 = vmatpush1.msra.mxu0 0.0
    %4420 = vmatprep.subr.mxu0 0.0
    %4421 = vmatpush1.msra.mxu0 0.0
    %4422 = vmatprep.subr.mxu0 0.0
    %4423 = vmatpush1.msra.mxu0 0.0
    %4424 = vmatprep.subr.mxu0 0.0
    %4425 = vmatpush1.msra.mxu0 0.0
    %4426 = vmatprep.subr.mxu0 0.0
    %4427 = vmatpush1.msra.mxu0 0.0
    %4428 = vmatprep.subr.mxu0 0.0
    %4429 = vmatpush1.msra.mxu0 0.0
    %4430 = vmatprep.subr.mxu0 0.0
    %4431 = vmatpush1.msra.mxu0 0.0
    %4432 = vmatprep.subr.mxu0 0.0
    %4433 = vmatpush1.msra.mxu0 0.0
    %4434 = vmatprep.subr.mxu0 0.0
    %4435 = vmatpush1.msra.mxu0 0.0
    %4436 = vmatprep.subr.mxu0 0.0
    %4437 = vmatpush1.msra.mxu0 0.0
    %4438 = vmatprep.subr.mxu0 0.0
    %4439 = vmatpush1.msra.mxu0 0.0
    %4440 = vmatprep.subr.mxu0 0.0
    %4441 = vmatpush1.msra.mxu0 0.0
    %4442 = vmatprep.subr.mxu0 0.0
    %4443 = vmatpush1.msra.mxu0 0.0
    %4444 = vmatprep.subr.mxu0 0.0
    %4445 = vmatpush1.msra.mxu0 0.0
    %4446 = vmatprep.subr.mxu0 0.0
    %4447 = vmatpush1.msra.mxu0 0.0
    %4448 = vmatprep.subr.mxu0 0.0
    %4449 = vmatpush1.msra.mxu0 0.0
    %4450 = vmatprep.subr.mxu0 0.0
    %4451 = vmatpush1.msra.mxu0 0.0
    %4452 = vmatprep.subr.mxu0 0.0
    %4453 = vmatpush1.msra.mxu0 0.0
    %4454 = vmatprep.subr.mxu0 0.0
    %4455 = vmatpush1.msra.mxu0 0.0
    %4456 = vmatprep.subr.mxu0 0.0
    %4457 = vmatpush1.msra.mxu0 0.0
    %4458 = vmatprep.subr.mxu0 0.0
    %4459 = vmatpush1.msra.mxu0 0.0
    %4460 = vmatprep.subr.mxu0 0.0
    %4461 = vmatpush1.msra.mxu0 0.0
    %4462 = vmatprep.subr.mxu0 0.0
    %4463 = vmatpush1.msra.mxu0 0.0
    %4464 = vmatprep.mubr.f32.mxu0 0.0
    %4465 = vmatmul.mubr.f32.gmra.mrb[0].mxu0 %v4398
    %v4466 = vpop.f32.mrb[0].mxu0
    %v4467 = vadd.f32 0.0, %v4466
    %v4468 = vpop.f32.mrb[0].mxu0
    %4469 = vdwg.mxu0
    %v4471 = vsel %vm3344, %v3516, 0
    %4473 = vmatprep.subr.mxu0 0.0
    %4474 = vmatpush1.msra.mxu0 %v2124
    %4475 = vmatprep.subr.mxu0 0.0
    %4476 = vmatpush1.msra.mxu0 0.0
    %4477 = vmatprep.subr.mxu0 0.0
    %4478 = vmatpush1.msra.mxu0 0.0
    %4479 = vmatprep.subr.mxu0 0.0
    %4480 = vmatpush1.msra.mxu0 0.0
    %4481 = vmatprep.subr.mxu0 0.0
    %4482 = vmatpush1.msra.mxu0 0.0
    %4483 = vmatprep.subr.mxu0 0.0
    %4484 = vmatpush1.msra.mxu0 0.0
    %4485 = vmatprep.subr.mxu0 0.0
    %4486 = vmatpush1.msra.mxu0 0.0
    %4487 = vmatprep.subr.mxu0 0.0
    %4488 = vmatpush1.msra.mxu0 0.0
    %4489 = vmatprep.subr.mxu0 0.0
    %4490 = vmatpush1.msra.mxu0 0.0
    %4491 = vmatprep.subr.mxu0 0.0
    %4492 = vmatpush1.msra.mxu0 0.0
    %4493 = vmatprep.subr.mxu0 0.0
    %4494 = vmatpush1.msra.mxu0 0.0
    %4495 = vmatprep.subr.mxu0 0.0
    %4496 = vmatpush1.msra.mxu0 0.0
    %4497 = vmatprep.subr.mxu0 0.0
    %4498 = vmatpush1.msra.mxu0 0.0
    %4499 = vmatprep.subr.mxu0 0.0
    %4500 = vmatpush1.msra.mxu0 0.0
    %4501 = vmatprep.subr.mxu0 0.0
    %4502 = vmatpush1.msra.mxu0 0.0
    %4503 = vmatprep.subr.mxu0 0.0
    %4504 = vmatpush1.msra.mxu0 0.0
    %4505 = vmatprep.subr.mxu0 0.0
    %4506 = vmatpush1.msra.mxu0 0.0
    %4507 = vmatprep.subr.mxu0 0.0
    %4508 = vmatpush1.msra.mxu0 0.0
    %4509 = vmatprep.subr.mxu0 0.0
    %4510 = vmatpush1.msra.mxu0 0.0
    %4511 = vmatprep.subr.mxu0 0.0
    %4512 = vmatpush1.msra.mxu0 0.0
    %4513 = vmatprep.subr.mxu0 0.0
    %4514 = vmatpush1.msra.mxu0 0.0
    %4515 = vmatprep.subr.mxu0 0.0
    %4516 = vmatpush1.msra.mxu0 0.0
    %4517 = vmatprep.subr.mxu0 0.0
    %4518 = vmatpush1.msra.mxu0 0.0
    %4519 = vmatprep.subr.mxu0 0.0
    %4520 = vmatpush1.msra.mxu0 0.0
    %4521 = vmatprep.subr.mxu0 0.0
    %4522 = vmatpush1.msra.mxu0 0.0
    %4523 = vmatprep.subr.mxu0 0.0
    %4524 = vmatpush1.msra.mxu0 0.0
    %4525 = vmatprep.subr.mxu0 0.0
    %4526 = vmatpush1.msra.mxu0 0.0
    %4527 = vmatprep.subr.mxu0 0.0
    %4528 = vmatpush1.msra.mxu0 0.0
    %4529 = vmatprep.subr.mxu0 0.0
    %4530 = vmatpush1.msra.mxu0 0.0
    %4531 = vmatprep.subr.mxu0 0.0
    %4532 = vmatpush1.msra.mxu0 0.0
    %4533 = vmatprep.subr.mxu0 0.0
    %4534 = vmatpush1.msra.mxu0 0.0
    %4535 = vmatprep.subr.mxu0 0.0
    %4536 = vmatpush1.msra.mxu0 0.0
    %4537 = vmatprep.mubr.f32.mxu0 0.0
    %4538 = vmatmul.mubr.f32.gmra.mrb[0].mxu0 %v4471
    %v4539 = vpop.f32.mrb[0].mxu0
    %v4540 = vadd.f32 0.0, %v4539
    %v4541 = vpop.f32.mrb[0].mxu0
    %4542 = vdwg.mxu0
    %v4544 = vsel %vm3344, %v3518, 0
    %4546 = vmatprep.subr.mxu0 0.0
    %4547 = vmatpush1.msra.mxu0 %v2125
    %4548 = vmatprep.subr.mxu0 0.0
    %4549 = vmatpush1.msra.mxu0 0.0
    %4550 = vmatprep.subr.mxu0 0.0
    %4551 = vmatpush1.msra.mxu0 0.0
    %4552 = vmatprep.subr.mxu0 0.0
    %4553 = vmatpush1.msra.mxu0 0.0
    %4554 = vmatprep.subr.mxu0 0.0
    %4555 = vmatpush1.msra.mxu0 0.0
    %4556 = vmatprep.subr.mxu0 0.0
    %4557 = vmatpush1.msra.mxu0 0.0
    %4558 = vmatprep.subr.mxu0 0.0
    %4559 = vmatpush1.msra.mxu0 0.0
    %4560 = vmatprep.subr.mxu0 0.0
    %4561 = vmatpush1.msra.mxu0 0.0
    %4562 = vmatprep.subr.mxu0 0.0
    %4563 = vmatpush1.msra.mxu0 0.0
    %4564 = vmatprep.subr.mxu0 0.0
    %4565 = vmatpush1.msra.mxu0 0.0
    %4566 = vmatprep.subr.mxu0 0.0
    %4567 = vmatpush1.msra.mxu0 0.0
    %4568 = vmatprep.subr.mxu0 0.0
    %4569 = vmatpush1.msra.mxu0 0.0
    %4570 = vmatprep.subr.mxu0 0.0
    %4571 = vmatpush1.msra.mxu0 0.0
    %4572 = vmatprep.subr.mxu0 0.0
    %4573 = vmatpush1.msra.mxu0 0.0
    %4574 = vmatprep.subr.mxu0 0.0
    %4575 = vmatpush1.msra.mxu0 0.0
    %4576 = vmatprep.subr.mxu0 0.0
    %4577 = vmatpush1.msra.mxu0 0.0
    %4578 = vmatprep.subr.mxu0 0.0
    %4579 = vmatpush1.msra.mxu0 0.0
    %4580 = vmatprep.subr.mxu0 0.0
    %4581 = vmatpush1.msra.mxu0 0.0
    %4582 = vmatprep.subr.mxu0 0.0
    %4583 = vmatpush1.msra.mxu0 0.0
    %4584 = vmatprep.subr.mxu0 0.0
    %4585 = vmatpush1.msra.mxu0 0.0
    %4586 = vmatprep.subr.mxu0 0.0
    %4587 = vmatpush1.msra.mxu0 0.0
    %4588 = vmatprep.subr.mxu0 0.0
    %4589 = vmatpush1.msra.mxu0 0.0
    %4590 = vmatprep.subr.mxu0 0.0
    %4591 = vmatpush1.msra.mxu0 0.0
    %4592 = vmatprep.subr.mxu0 0.0
    %4593 = vmatpush1.msra.mxu0 0.0
    %4594 = vmatprep.subr.mxu0 0.0
    %4595 = vmatpush1.msra.mxu0 0.0
    %4596 = vmatprep.subr.mxu0 0.0
    %4597 = vmatpush1.msra.mxu0 0.0
    %4598 = vmatprep.subr.mxu0 0.0
    %4599 = vmatpush1.msra.mxu0 0.0
    %4600 = vmatprep.subr.mxu0 0.0
    %4601 = vmatpush1.msra.mxu0 0.0
    %4602 = vmatprep.subr.mxu0 0.0
    %4603 = vmatpush1.msra.mxu0 0.0
    %4604 = vmatprep.subr.mxu0 0.0
    %4605 = vmatpush1.msra.mxu0 0.0
    %4606 = vmatprep.subr.mxu0 0.0
    %4607 = vmatpush1.msra.mxu0 0.0
    %4608 = vmatprep.subr.mxu0 0.0
    %4609 = vmatpush1.msra.mxu0 0.0
    %4610 = vmatprep.mubr.f32.mxu0 0.0
    %4611 = vmatmul.mubr.f32.gmra.mrb[0].mxu0 %v4544
    %v4612 = vpop.f32.mrb[0].mxu0
    %v4613 = vadd.f32 0.0, %v4612
    %v4614 = vpop.f32.mrb[0].mxu0
    %4615 = vdwg.mxu0
    %v4617 = vsel %vm3344, %v3520, 0
    %4619 = vmatprep.subr.mxu0 0.0
    %4620 = vmatpush1.msra.mxu0 %v2126
    %4621 = vmatprep.subr.mxu0 0.0
    %4622 = vmatpush1.msra.mxu0 0.0
    %4623 = vmatprep.subr.mxu0 0.0
    %4624 = vmatpush1.msra.mxu0 0.0
    %4625 = vmatprep.subr.mxu0 0.0
    %4626 = vmatpush1.msra.mxu0 0.0
    %4627 = vmatprep.subr.mxu0 0.0
    %4628 = vmatpush1.msra.mxu0 0.0
    %4629 = vmatprep.subr.mxu0 0.0
    %4630 = vmatpush1.msra.mxu0 0.0
    %4631 = vmatprep.subr.mxu0 0.0
    %4632 = vmatpush1.msra.mxu0 0.0
    %4633 = vmatprep.subr.mxu0 0.0
    %4634 = vmatpush1.msra.mxu0 0.0
    %4635 = vmatprep.subr.mxu0 0.0
    %4636 = vmatpush1.msra.mxu0 0.0
    %4637 = vmatprep.subr.mxu0 0.0
    %4638 = vmatpush1.msra.mxu0 0.0
    %4639 = vmatprep.subr.mxu0 0.0
    %4640 = vmatpush1.msra.mxu0 0.0
    %4641 = vmatprep.subr.mxu0 0.0
    %4642 = vmatpush1.msra.mxu0 0.0
    %4643 = vmatprep.subr.mxu0 0.0
    %4644 = vmatpush1.msra.mxu0 0.0
    %4645 = vmatprep.subr.mxu0 0.0
    %4646 = vmatpush1.msra.mxu0 0.0
    %4647 = vmatprep.subr.mxu0 0.0
    %4648 = vmatpush1.msra.mxu0 0.0
    %4649 = vmatprep.subr.mxu0 0.0
    %4650 = vmatpush1.msra.mxu0 0.0
    %4651 = vmatprep.subr.mxu0 0.0
    %4652 = vmatpush1.msra.mxu0 0.0
    %4653 = vmatprep.subr.mxu0 0.0
    %4654 = vmatpush1.msra.mxu0 0.0
    %4655 = vmatprep.subr.mxu0 0.0
    %4656 = vmatpush1.msra.mxu0 0.0
    %4657 = vmatprep.subr.mxu0 0.0
    %4658 = vmatpush1.msra.mxu0 0.0
    %4659 = vmatprep.subr.mxu0 0.0
    %4660 = vmatpush1.msra.mxu0 0.0
    %4661 = vmatprep.subr.mxu0 0.0
    %4662 = vmatpush1.msra.mxu0 0.0
    %4663 = vmatprep.subr.mxu0 0.0
    %4664 = vmatpush1.msra.mxu0 0.0
    %4665 = vmatprep.subr.mxu0 0.0
    %4666 = vmatpush1.msra.mxu0 0.0
    %4667 = vmatprep.subr.mxu0 0.0
    %4668 = vmatpush1.msra.mxu0 0.0
    %4669 = vmatprep.subr.mxu0 0.0
    %4670 = vmatpush1.msra.mxu0 0.0
    %4671 = vmatprep.subr.mxu0 0.0
    %4672 = vmatpush1.msra.mxu0 0.0
    %4673 = vmatprep.subr.mxu0 0.0
    %4674 = vmatpush1.msra.mxu0 0.0
    %4675 = vmatprep.subr.mxu0 0.0
    %4676 = vmatpush1.msra.mxu0 0.0
    %4677 = vmatprep.subr.mxu0 0.0
    %4678 = vmatpush1.msra.mxu0 0.0
    %4679 = vmatprep.subr.mxu0 0.0
    %4680 = vmatpush1.msra.mxu0 0.0
    %4681 = vmatprep.subr.mxu0 0.0
    %4682 = vmatpush1.msra.mxu0 0.0
    %4683 = vmatprep.mubr.f32.mxu0 0.0
    %4684 = vmatmul.mubr.f32.gmra.mrb[0].mxu0 %v4617
    %v4685 = vpop.f32.mrb[0].mxu0
    %v4686 = vadd.f32 0.0, %v4685
    %v4687 = vpop.f32.mrb[0].mxu0
    %4688 = vdwg.mxu0
    %v4689 = vcombine.low %v3591, %v3737
    %v4690 = vcombine.high %v3591, %v3737
    %v4692 = vunpack.c.l.s4 1983009808
    %v4693 = vunpack.c.0.s8 %v4692
    %v4694 = vlaneseq
    %v4695 = vshrl.u32 %v4694, 7
    %v4696 = vsub.s32 %v4693, %v4695
    %v4697 = vrot.slane %v4689, %v4696
    %v4699 = vunpack.c.l.s4 1983009808
    %v4700 = vunpack.c.0.s8 %v4699
    %v4701 = vlaneseq
    %v4702 = vshrl.u32 %v4701, 7
    %v4703 = vsub.s32 %v4700, %v4702
    %v4704 = vrot.slane %v4690, %v4703
    %v4705 = vcombine.low %v3664, %v3810
    %v4706 = vcombine.high %v3664, %v3810
    %v4708 = vunpack.c.l.s4 1983009808
    %v4709 = vunpack.c.0.s8 %v4708
    %v4710 = vlaneseq
    %v4711 = vshrl.u32 %v4710, 7
    %v4712 = vsub.s32 %v4709, %v4711
    %v4713 = vrot.slane %v4705, %v4712
    %v4715 = vunpack.c.l.s4 1983009808
    %v4716 = vunpack.c.0.s8 %v4715
    %v4717 = vlaneseq
    %v4718 = vshrl.u32 %v4717, 7
    %v4719 = vsub.s32 %v4716, %v4718
    %v4720 = vrot.slane %v4706, %v4719
    %v4721 = vcombine.low %v3883, %v4029
    %v4722 = vcombine.high %v3883, %v4029
    %v4724 = vunpack.c.l.s4 1983009808
    %v4725 = vunpack.c.0.s8 %v4724
    %v4726 = vlaneseq
    %v4727 = vshrl.u32 %v4726, 7
    %v4728 = vsub.s32 %v4725, %v4727
    %v4729 = vrot.slane %v4721, %v4728
    %v4731 = vunpack.c.l.s4 1983009808
    %v4732 = vunpack.c.0.s8 %v4731
    %v4733 = vlaneseq
    %v4734 = vshrl.u32 %v4733, 7
    %v4735 = vsub.s32 %v4732, %v4734
    %v4736 = vrot.slane %v4722, %v4735
    %v4737 = vcombine.low %v3956, %v4102
    %v4738 = vcombine.high %v3956, %v4102
    %v4740 = vunpack.c.l.s4 1983009808
    %v4741 = vunpack.c.0.s8 %v4740
    %v4742 = vlaneseq
    %v4743 = vshrl.u32 %v4742, 7
    %v4744 = vsub.s32 %v4741, %v4743
    %v4745 = vrot.slane %v4737, %v4744
    %v4747 = vunpack.c.l.s4 1983009808
    %v4748 = vunpack.c.0.s8 %v4747
    %v4749 = vlaneseq
    %v4750 = vshrl.u32 %v4749, 7
    %v4751 = vsub.s32 %v4748, %v4750
    %v4752 = vrot.slane %v4738, %v4751
    %v4753 = vcombine.low %v4697, %v4713
    %v4754 = vcombine.high %v4697, %v4713
    %v4756 = vunpack.c.l.s4 1934713408
    %v4757 = vunpack.c.0.s8 %v4756
    %v4758 = vlaneseq
    %v4759 = vshrl.u32 %v4758, 7
    %v4760 = vsub.s32 %v4757, %v4759
    %v4761 = vrot.slane %v4753, %v4760
    %v4763 = vunpack.c.l.s4 1934713408
    %v4764 = vunpack.c.0.s8 %v4763
    %v4765 = vlaneseq
    %v4766 = vshrl.u32 %v4765, 7
    %v4767 = vsub.s32 %v4764, %v4766
    %v4768 = vrot.slane %v4754, %v4767
    %v4769 = vcombine.low %v4704, %v4720
    %v4770 = vcombine.high %v4704, %v4720
    %v4772 = vunpack.c.l.s4 1934713408
    %v4773 = vunpack.c.0.s8 %v4772
    %v4774 = vlaneseq
    %v4775 = vshrl.u32 %v4774, 7
    %v4776 = vsub.s32 %v4773, %v4775
    %v4777 = vrot.slane %v4769, %v4776
    %v4779 = vunpack.c.l.s4 1934713408
    %v4780 = vunpack.c.0.s8 %v4779
    %v4781 = vlaneseq
    %v4782 = vshrl.u32 %v4781, 7
    %v4783 = vsub.s32 %v4780, %v4782
    %v4784 = vrot.slane %v4770, %v4783
    %v4785 = vcombine.low %v4729, %v4745
    %v4786 = vcombine.high %v4729, %v4745
    %v4788 = vunpack.c.l.s4 1934713408
    %v4789 = vunpack.c.0.s8 %v4788
    %v4790 = vlaneseq
    %v4791 = vshrl.u32 %v4790, 7
    %v4792 = vsub.s32 %v4789, %v4791
    %v4793 = vrot.slane %v4785, %v4792
    %v4795 = vunpack.c.l.s4 1934713408
    %v4796 = vunpack.c.0.s8 %v4795
    %v4797 = vlaneseq
    %v4798 = vshrl.u32 %v4797, 7
    %v4799 = vsub.s32 %v4796, %v4798
    %v4800 = vrot.slane %v4786, %v4799
    %v4801 = vcombine.low %v4736, %v4752
    %v4802 = vcombine.high %v4736, %v4752
    %v4804 = vunpack.c.l.s4 1934713408
    %v4805 = vunpack.c.0.s8 %v4804
    %v4806 = vlaneseq
    %v4807 = vshrl.u32 %v4806, 7
    %v4808 = vsub.s32 %v4805, %v4807
    %v4809 = vrot.slane %v4801, %v4808
    %v4811 = vunpack.c.l.s4 1934713408
    %v4812 = vunpack.c.0.s8 %v4811
    %v4813 = vlaneseq
    %v4814 = vshrl.u32 %v4813, 7
    %v4815 = vsub.s32 %v4812, %v4814
    %v4816 = vrot.slane %v4802, %v4815
    %v4817 = vcombine.low %v4761, %v4793
    %v4818 = vcombine.high %v4761, %v4793
    %v4819 = vcombine.low %v4768, %v4800
    %v4820 = vcombine.high %v4768, %v4800
    %v4821 = vcombine.low %v4777, %v4809
    %v4822 = vcombine.high %v4777, %v4809
    %v4823 = vcombine.low %v4784, %v4816
    %v4824 = vcombine.high %v4784, %v4816
    %v4825 = vcombine.low %v4175, %v4321
    %v4826 = vcombine.high %v4175, %v4321
    %v4828 = vunpack.c.l.s4 1983009808
    %v4829 = vunpack.c.0.s8 %v4828
    %v4830 = vlaneseq
    %v4831 = vshrl.u32 %v4830, 7
    %v4832 = vsub.s32 %v4829, %v4831
    %v4833 = vrot.slane %v4825, %v4832
    %v4835 = vunpack.c.l.s4 1983009808
    %v4836 = vunpack.c.0.s8 %v4835
    %v4837 = vlaneseq
    %v4838 = vshrl.u32 %v4837, 7
    %v4839 = vsub.s32 %v4836, %v4838
    %v4840 = vrot.slane %v4826, %v4839
    %v4841 = vcombine.low %v4248, %v4394
    %v4842 = vcombine.high %v4248, %v4394
    %v4844 = vunpack.c.l.s4 1983009808
    %v4845 = vunpack.c.0.s8 %v4844
    %v4846 = vlaneseq
    %v4847 = vshrl.u32 %v4846, 7
    %v4848 = vsub.s32 %v4845, %v4847
    %v4849 = vrot.slane %v4841, %v4848
    %v4851 = vunpack.c.l.s4 1983009808
    %v4852 = vunpack.c.0.s8 %v4851
    %v4853 = vlaneseq
    %v4854 = vshrl.u32 %v4853, 7
    %v4855 = vsub.s32 %v4852, %v4854
    %v4856 = vrot.slane %v4842, %v4855
    %v4857 = vcombine.low %v4467, %v4613
    %v4858 = vcombine.high %v4467, %v4613
    %v4860 = vunpack.c.l.s4 1983009808
    %v4861 = vunpack.c.0.s8 %v4860
    %v4862 = vlaneseq
    %v4863 = vshrl.u32 %v4862, 7
    %v4864 = vsub.s32 %v4861, %v4863
    %v4865 = vrot.slane %v4857, %v4864
    %v4867 = vunpack.c.l.s4 1983009808
    %v4868 = vunpack.c.0.s8 %v4867
    %v4869 = vlaneseq
    %v4870 = vshrl.u32 %v4869, 7
    %v4871 = vsub.s32 %v4868, %v4870
    %v4872 = vrot.slane %v4858, %v4871
    %v4873 = vcombine.low %v4540, %v4686
    %v4874 = vcombine.high %v4540, %v4686
    %v4876 = vunpack.c.l.s4 1983009808
    %v4877 = vunpack.c.0.s8 %v4876
    %v4878 = vlaneseq
    %v4879 = vshrl.u32 %v4878, 7
    %v4880 = vsub.s32 %v4877, %v4879
    %v4881 = vrot.slane %v4873, %v4880
    %v4883 = vunpack.c.l.s4 1983009808
    %v4884 = vunpack.c.0.s8 %v4883
    %v4885 = vlaneseq
    %v4886 = vshrl.u32 %v4885, 7
    %v4887 = vsub.s32 %v4884, %v4886
    %v4888 = vrot.slane %v4874, %v4887
    %v4889 = vcombine.low %v4833, %v4849
    %v4890 = vcombine.high %v4833, %v4849
    %v4892 = vunpack.c.l.s4 1934713408
    %v4893 = vunpack.c.0.s8 %v4892
    %v4894 = vlaneseq
    %v4895 = vshrl.u32 %v4894, 7
    %v4896 = vsub.s32 %v4893, %v4895
    %v4897 = vrot.slane %v4889, %v4896
    %v4899 = vunpack.c.l.s4 1934713408
    %v4900 = vunpack.c.0.s8 %v4899
    %v4901 = vlaneseq
    %v4902 = vshrl.u32 %v4901, 7
    %v4903 = vsub.s32 %v4900, %v4902
    %v4904 = vrot.slane %v4890, %v4903
    %v4905 = vcombine.low %v4840, %v4856
    %v4906 = vcombine.high %v4840, %v4856
    %v4908 = vunpack.c.l.s4 1934713408
    %v4909 = vunpack.c.0.s8 %v4908
    %v4910 = vlaneseq
    %v4911 = vshrl.u32 %v4910, 7
    %v4912 = vsub.s32 %v4909, %v4911
    %v4913 = vrot.slane %v4905, %v4912
    %v4915 = vunpack.c.l.s4 1934713408
    %v4916 = vunpack.c.0.s8 %v4915
    %v4917 = vlaneseq
    %v4918 = vshrl.u32 %v4917, 7
    %v4919 = vsub.s32 %v4916, %v4918
    %v4920 = vrot.slane %v4906, %v4919
    %v4921 = vcombine.low %v4865, %v4881
    %v4922 = vcombine.high %v4865, %v4881
    %v4924 = vunpack.c.l.s4 1934713408
    %v4925 = vunpack.c.0.s8 %v4924
    %v4926 = vlaneseq
    %v4927 = vshrl.u32 %v4926, 7
    %v4928 = vsub.s32 %v4925, %v4927
    %v4929 = vrot.slane %v4921, %v4928
    %v4931 = vunpack.c.l.s4 1934713408
    %v4932 = vunpack.c.0.s8 %v4931
    %v4933 = vlaneseq
    %v4934 = vshrl.u32 %v4933, 7
    %v4935 = vsub.s32 %v4932, %v4934
    %v4936 = vrot.slane %v4922, %v4935
    %v4937 = vcombine.low %v4872, %v4888
    %v4938 = vcombine.high %v4872, %v4888
    %v4940 = vunpack.c.l.s4 1934713408
    %v4941 = vunpack.c.0.s8 %v4940
    %v4942 = vlaneseq
    %v4943 = vshrl.u32 %v4942, 7
    %v4944 = vsub.s32 %v4941, %v4943
    %v4945 = vrot.slane %v4937, %v4944
    %v4947 = vunpack.c.l.s4 1934713408
    %v4948 = vunpack.c.0.s8 %v4947
    %v4949 = vlaneseq
    %v4950 = vshrl.u32 %v4949, 7
    %v4951 = vsub.s32 %v4948, %v4950
    %v4952 = vrot.slane %v4938, %v4951
    %v4953 = vcombine.low %v4897, %v4929
    %v4954 = vcombine.high %v4897, %v4929
    %v4955 = vcombine.low %v4904, %v4936
    %v4956 = vcombine.high %v4904, %v4936
    %v4957 = vcombine.low %v4913, %v4945
    %v4958 = vcombine.high %v4913, %v4945
    %v4959 = vcombine.low %v4920, %v4952
    %v4960 = vcombine.high %v4920, %v4952
    %v4961 = vcombine.low %v4817, %v4819
    %v4962 = vcombine.high %v4817, %v4819
    %v4964 = vunpack.c.l.s4 1983009808
    %v4965 = vunpack.c.0.s8 %v4964
    %v4966 = vlaneseq
    %v4967 = vshrl.u32 %v4966, 7
    %v4968 = vsub.s32 %v4965, %v4967
    %v4969 = vrot.slane %v4961, %v4968
    %v4971 = vunpack.c.l.s4 1983009808
    %v4972 = vunpack.c.0.s8 %v4971
    %v4973 = vlaneseq
    %v4974 = vshrl.u32 %v4973, 7
    %v4975 = vsub.s32 %v4972, %v4974
    %v4976 = vrot.slane %v4962, %v4975
    %v4977 = vcombine.low %v4818, %v4820
    %v4978 = vcombine.high %v4818, %v4820
    %v4980 = vunpack.c.l.s4 1983009808
    %v4981 = vunpack.c.0.s8 %v4980
    %v4982 = vlaneseq
    %v4983 = vshrl.u32 %v4982, 7
    %v4984 = vsub.s32 %v4981, %v4983
    %v4985 = vrot.slane %v4977, %v4984
    %v4987 = vunpack.c.l.s4 1983009808
    %v4988 = vunpack.c.0.s8 %v4987
    %v4989 = vlaneseq
    %v4990 = vshrl.u32 %v4989, 7
    %v4991 = vsub.s32 %v4988, %v4990
    %v4992 = vrot.slane %v4978, %v4991
    %v4993 = vcombine.low %v4821, %v4823
    %v4994 = vcombine.high %v4821, %v4823
    %v4996 = vunpack.c.l.s4 1983009808
    %v4997 = vunpack.c.0.s8 %v4996
    %v4998 = vlaneseq
    %v4999 = vshrl.u32 %v4998, 7
    %v5000 = vsub.s32 %v4997, %v4999
    %v5001 = vrot.slane %v4993, %v5000
    %v5003 = vunpack.c.l.s4 1983009808
    %v5004 = vunpack.c.0.s8 %v5003
    %v5005 = vlaneseq
    %v5006 = vshrl.u32 %v5005, 7
    %v5007 = vsub.s32 %v5004, %v5006
    %v5008 = vrot.slane %v4994, %v5007
    %v5009 = vcombine.low %v4822, %v4824
    %v5010 = vcombine.high %v4822, %v4824
    %v5012 = vunpack.c.l.s4 1983009808
    %v5013 = vunpack.c.0.s8 %v5012
    %v5014 = vlaneseq
    %v5015 = vshrl.u32 %v5014, 7
    %v5016 = vsub.s32 %v5013, %v5015
    %v5017 = vrot.slane %v5009, %v5016
    %v5019 = vunpack.c.l.s4 1983009808
    %v5020 = vunpack.c.0.s8 %v5019
    %v5021 = vlaneseq
    %v5022 = vshrl.u32 %v5021, 7
    %v5023 = vsub.s32 %v5020, %v5022
    %v5024 = vrot.slane %v5010, %v5023
    %v5025 = vcombine.low %v4969, %v4985
    %v5026 = vcombine.high %v4969, %v4985
    %v5028 = vunpack.c.l.s4 1934713408
    %v5029 = vunpack.c.0.s8 %v5028
    %v5030 = vlaneseq
    %v5031 = vshrl.u32 %v5030, 7
    %v5032 = vsub.s32 %v5029, %v5031
    %v5033 = vrot.slane %v5025, %v5032
    %v5035 = vunpack.c.l.s4 1934713408
    %v5036 = vunpack.c.0.s8 %v5035
    %v5037 = vlaneseq
    %v5038 = vshrl.u32 %v5037, 7
    %v5039 = vsub.s32 %v5036, %v5038
    %v5040 = vrot.slane %v5026, %v5039
    %v5041 = vcombine.low %v4976, %v4992
    %v5042 = vcombine.high %v4976, %v4992
    %v5044 = vunpack.c.l.s4 1934713408
    %v5045 = vunpack.c.0.s8 %v5044
    %v5046 = vlaneseq
    %v5047 = vshrl.u32 %v5046, 7
    %v5048 = vsub.s32 %v5045, %v5047
    %v5049 = vrot.slane %v5041, %v5048
    %v5051 = vunpack.c.l.s4 1934713408
    %v5052 = vunpack.c.0.s8 %v5051
    %v5053 = vlaneseq
    %v5054 = vshrl.u32 %v5053, 7
    %v5055 = vsub.s32 %v5052, %v5054
    %v5056 = vrot.slane %v5042, %v5055
    %v5057 = vcombine.low %v5001, %v5017
    %v5058 = vcombine.high %v5001, %v5017
    %v5060 = vunpack.c.l.s4 1934713408
    %v5061 = vunpack.c.0.s8 %v5060
    %v5062 = vlaneseq
    %v5063 = vshrl.u32 %v5062, 7
    %v5064 = vsub.s32 %v5061, %v5063
    %v5065 = vrot.slane %v5057, %v5064
    %v5067 = vunpack.c.l.s4 1934713408
    %v5068 = vunpack.c.0.s8 %v5067
    %v5069 = vlaneseq
    %v5070 = vshrl.u32 %v5069, 7
    %v5071 = vsub.s32 %v5068, %v5070
    %v5072 = vrot.slane %v5058, %v5071
    %v5073 = vcombine.low %v5008, %v5024
    %v5074 = vcombine.high %v5008, %v5024
    %v5076 = vunpack.c.l.s4 1934713408
    %v5077 = vunpack.c.0.s8 %v5076
    %v5078 = vlaneseq
    %v5079 = vshrl.u32 %v5078, 7
    %v5080 = vsub.s32 %v5077, %v5079
    %v5081 = vrot.slane %v5073, %v5080
    %v5083 = vunpack.c.l.s4 1934713408
    %v5084 = vunpack.c.0.s8 %v5083
    %v5085 = vlaneseq
    %v5086 = vshrl.u32 %v5085, 7
    %v5087 = vsub.s32 %v5084, %v5086
    %v5088 = vrot.slane %v5074, %v5087
    %v5089 = vcombine.low %v5033, %v5065
    %v5090 = vcombine.high %v5033, %v5065
    %v5091 = vcombine.low %v5040, %v5072
    %v5092 = vcombine.high %v5040, %v5072
    %v5093 = vcombine.low %v5049, %v5081
    %v5094 = vcombine.high %v5049, %v5081
    %v5095 = vcombine.low %v5056, %v5088
    %v5096 = vcombine.high %v5056, %v5088
    %v5097 = vcombine.low %v4953, %v4955
    %v5098 = vcombine.high %v4953, %v4955
    %v5100 = vunpack.c.l.s4 1983009808
    %v5101 = vunpack.c.0.s8 %v5100
    %v5102 = vlaneseq
    %v5103 = vshrl.u32 %v5102, 7
    %v5104 = vsub.s32 %v5101, %v5103
    %v5105 = vrot.slane %v5097, %v5104
    %v5107 = vunpack.c.l.s4 1983009808
    %v5108 = vunpack.c.0.s8 %v5107
    %v5109 = vlaneseq
    %v5110 = vshrl.u32 %v5109, 7
    %v5111 = vsub.s32 %v5108, %v5110
    %v5112 = vrot.slane %v5098, %v5111
    %v5113 = vcombine.low %v4954, %v4956
    %v5114 = vcombine.high %v4954, %v4956
    %v5116 = vunpack.c.l.s4 1983009808
    %v5117 = vunpack.c.0.s8 %v5116
    %v5118 = vlaneseq
    %v5119 = vshrl.u32 %v5118, 7
    %v5120 = vsub.s32 %v5117, %v5119
    %v5121 = vrot.slane %v5113, %v5120
    %v5123 = vunpack.c.l.s4 1983009808
    %v5124 = vunpack.c.0.s8 %v5123
    %v5125 = vlaneseq
    %v5126 = vshrl.u32 %v5125, 7
    %v5127 = vsub.s32 %v5124, %v5126
    %v5128 = vrot.slane %v5114, %v5127
    %v5129 = vcombine.low %v4957, %v4959
    %v5130 = vcombine.high %v4957, %v4959
    %v5132 = vunpack.c.l.s4 1983009808
    %v5133 = vunpack.c.0.s8 %v5132
    %v5134 = vlaneseq
    %v5135 = vshrl.u32 %v5134, 7
    %v5136 = vsub.s32 %v5133, %v5135
    %v5137 = vrot.slane %v5129, %v5136
    %v5139 = vunpack.c.l.s4 1983009808
    %v5140 = vunpack.c.0.s8 %v5139
    %v5141 = vlaneseq
    %v5142 = vshrl.u32 %v5141, 7
    %v5143 = vsub.s32 %v5140, %v5142
    %v5144 = vrot.slane %v5130, %v5143
    %v5145 = vcombine.low %v4958, %v4960
    %v5146 = vcombine.high %v4958, %v4960
    %v5148 = vunpack.c.l.s4 1983009808
    %v5149 = vunpack.c.0.s8 %v5148
    %v5150 = vlaneseq
    %v5151 = vshrl.u32 %v5150, 7
    %v5152 = vsub.s32 %v5149, %v5151
    %v5153 = vrot.slane %v5145, %v5152
    %v5155 = vunpack.c.l.s4 1983009808
    %v5156 = vunpack.c.0.s8 %v5155
    %v5157 = vlaneseq
    %v5158 = vshrl.u32 %v5157, 7
    %v5159 = vsub.s32 %v5156, %v5158
    %v5160 = vrot.slane %v5146, %v5159
    %v5161 = vcombine.low %v5105, %v5121
    %v5162 = vcombine.high %v5105, %v5121
    %v5164 = vunpack.c.l.s4 1934713408
    %v5165 = vunpack.c.0.s8 %v5164
    %v5166 = vlaneseq
    %v5167 = vshrl.u32 %v5166, 7
    %v5168 = vsub.s32 %v5165, %v5167
    %v5169 = vrot.slane %v5161, %v5168
    %v5171 = vunpack.c.l.s4 1934713408
    %v5172 = vunpack.c.0.s8 %v5171
    %v5173 = vlaneseq
    %v5174 = vshrl.u32 %v5173, 7
    %v5175 = vsub.s32 %v5172, %v5174
    %v5176 = vrot.slane %v5162, %v5175
    %v5177 = vcombine.low %v5112, %v5128
    %v5178 = vcombine.high %v5112, %v5128
    %v5180 = vunpack.c.l.s4 1934713408
    %v5181 = vunpack.c.0.s8 %v5180
    %v5182 = vlaneseq
    %v5183 = vshrl.u32 %v5182, 7
    %v5184 = vsub.s32 %v5181, %v5183
    %v5185 = vrot.slane %v5177, %v5184
    %v5187 = vunpack.c.l.s4 1934713408
    %v5188 = vunpack.c.0.s8 %v5187
    %v5189 = vlaneseq
    %v5190 = vshrl.u32 %v5189, 7
    %v5191 = vsub.s32 %v5188, %v5190
    %v5192 = vrot.slane %v5178, %v5191
    %v5193 = vcombine.low %v5137, %v5153
    %v5194 = vcombine.high %v5137, %v5153
    %v5196 = vunpack.c.l.s4 1934713408
    %v5197 = vunpack.c.0.s8 %v5196
    %v5198 = vlaneseq
    %v5199 = vshrl.u32 %v5198, 7
    %v5200 = vsub.s32 %v5197, %v5199
    %v5201 = vrot.slane %v5193, %v5200
    %v5203 = vunpack.c.l.s4 1934713408
    %v5204 = vunpack.c.0.s8 %v5203
    %v5205 = vlaneseq
    %v5206 = vshrl.u32 %v5205, 7
    %v5207 = vsub.s32 %v5204, %v5206
    %v5208 = vrot.slane %v5194, %v5207
    %v5209 = vcombine.low %v5144, %v5160
    %v5210 = vcombine.high %v5144, %v5160
    %v5212 = vunpack.c.l.s4 1934713408
    %v5213 = vunpack.c.0.s8 %v5212
    %v5214 = vlaneseq
    %v5215 = vshrl.u32 %v5214, 7
    %v5216 = vsub.s32 %v5213, %v5215
    %v5217 = vrot.slane %v5209, %v5216
    %v5219 = vunpack.c.l.s4 1934713408
    %v5220 = vunpack.c.0.s8 %v5219
    %v5221 = vlaneseq
    %v5222 = vshrl.u32 %v5221, 7
    %v5223 = vsub.s32 %v5220, %v5222
    %v5224 = vrot.slane %v5210, %v5223
    %v5225 = vcombine.low %v5169, %v5201
    %v5226 = vcombine.high %v5169, %v5201
    %v5227 = vcombine.low %v5176, %v5208
    %v5228 = vcombine.high %v5176, %v5208
    %v5229 = vcombine.low %v5185, %v5217
    %v5230 = vcombine.high %v5185, %v5217
    %v5231 = vcombine.low %v5192, %v5224
    %v5232 = vcombine.high %v5192, %v5224
    %5235 = vrot.lane.b32.xlu0 %v5090, 4
    %v5236 = vpop.permute.xlu0 %5235
    %5237 = vrot.lane.b32.xlu0 %v5226, 4
    %v5238 = vpop.permute.xlu0 %5237
    %5243 = vrot.lane.b32.xlu0 %v5091, 8
    %v5244 = vpop.permute.xlu0 %5243
    %5245 = vrot.lane.b32.xlu0 %v5227, 8
    %v5246 = vpop.permute.xlu0 %5245
    %5251 = vrot.lane.b32.xlu0 %v5092, 12
    %v5252 = vpop.permute.xlu0 %5251
    %5253 = vrot.lane.b32.xlu0 %v5228, 12
    %v5254 = vpop.permute.xlu0 %5253
    %5259 = vrot.lane.b32.xlu0 %v5093, 16
    %v5260 = vpop.permute.xlu0 %5259
    %5261 = vrot.lane.b32.xlu0 %v5229, 16
    %v5262 = vpop.permute.xlu0 %5261
    %5267 = vrot.lane.b32.xlu0 %v5094, 20
    %v5268 = vpop.permute.xlu0 %5267
    %5269 = vrot.lane.b32.xlu0 %v5230, 20
    %v5270 = vpop.permute.xlu0 %5269
    %5275 = vrot.lane.b32.xlu0 %v5095, 24
    %v5276 = vpop.permute.xlu0 %5275
    %5277 = vrot.lane.b32.xlu0 %v5231, 24
    %v5278 = vpop.permute.xlu0 %5277
    %5283 = vrot.lane.b32.xlu0 %v5096, 28
    %v5284 = vpop.permute.xlu0 %5283
    %5285 = vrot.lane.b32.xlu0 %v5232, 28
    %v5286 = vpop.permute.xlu0 %5285
    %v5289 = vsel %vm2127, %v5089, %v5236
    %v5290 = vsel %vm2127, %v5225, %v5238
    %v5291 = vsel %vm3344, %v5289, %v5244
    %v5292 = vsel %vm3344, %v5290, %v5246
    %vm5293 = vcmask 97280
    %v5294 = vsel %vm5293, %v5291, %v5252
    %v5295 = vsel %vm5293, %v5292, %v5254
    %vm5296 = vcmask 130048
    %v5297 = vsel %vm5296, %v5294, %v5260
    %v5298 = vsel %vm5296, %v5295, %v5262
    %vm5299 = vcmask 162816
    %v5300 = vsel %vm5299, %v5297, %v5268
    %v5301 = vsel %vm5299, %v5298, %v5270
    %vm5302 = vcmask 195584
    %v5303 = vsel %vm5302, %v5300, %v5276
    %v5304 = vsel %vm5302, %v5301, %v5278
    %vm5305 = vcmask 228352
    %v5306 = vsel %vm5305, %v5303, %v5284
    %v5307 = vsel %vm5305, %v5304, %v5286
    %s5308 = scalar_lea.vmem [#allocation8], 96
    %v5309 = vld [vmem:[%s5308] sm:$0xff]
    %v5310 = vld [vmem:[%s5308 + $0x8] sm:$0xff]
    %v5311 = vld [vmem:[%s5308 + $0x10] sm:$0xff]
    %v5312 = vld [vmem:[%s5308 + $0x18] sm:$0xff]
    %s5313 = scalar_lea.vmem %s4, 3
    %v5314 = vld [vmem:[%s5313] sm:$0x1]
    %v5316 = vlaneseq
    %v5317 = vshrl.u32 %v5316, 7
    %v5318 = vsub.s32 0, %v5317
    %v5319 = vrot.slane %v5314, %v5318
    %v5322 = vsel %vm93, %v5306, 0
    %v5325 = vsel %vm93, %v5307, 0
    %5327 = vmatprep.subr.mxu0 0.0
    %5328 = vmatpush1.msra.mxu0 %v5309
    %5329 = vmatprep.subr.mxu0 0.0
    %5330 = vmatpush1.msra.mxu0 %v5310
    %5331 = vmatprep.subr.mxu0 0.0
    %5332 = vmatpush1.msra.mxu0 %v5311
    %5333 = vmatprep.subr.mxu0 0.0
    %5334 = vmatpush1.msra.mxu0 %v5312
    %5335 = vmatprep.subr.mxu0 0.0
    %5336 = vmatpush1.msra.mxu0 0.0
    %5337 = vmatprep.subr.mxu0 0.0
    %5338 = vmatpush1.msra.mxu0 0.0
    %5339 = vmatprep.subr.mxu0 0.0
    %5340 = vmatpush1.msra.mxu0 0.0
    %5341 = vmatprep.subr.mxu0 0.0
    %5342 = vmatpush1.msra.mxu0 0.0
    %5343 = vmatprep.subr.mxu0 0.0
    %5344 = vmatpush1.msra.mxu0 0.0
    %5345 = vmatprep.subr.mxu0 0.0
    %5346 = vmatpush1.msra.mxu0 0.0
    %5347 = vmatprep.subr.mxu0 0.0
    %5348 = vmatpush1.msra.mxu0 0.0
    %5349 = vmatprep.subr.mxu0 0.0
    %5350 = vmatpush1.msra.mxu0 0.0
    %5351 = vmatprep.subr.mxu0 0.0
    %5352 = vmatpush1.msra.mxu0 0.0
    %5353 = vmatprep.subr.mxu0 0.0
    %5354 = vmatpush1.msra.mxu0 0.0
    %5355 = vmatprep.subr.mxu0 0.0
    %5356 = vmatpush1.msra.mxu0 0.0
    %5357 = vmatprep.subr.mxu0 0.0
    %5358 = vmatpush1.msra.mxu0 0.0
    %5359 = vmatprep.subr.mxu0 0.0
    %5360 = vmatpush1.msra.mxu0 0.0
    %5361 = vmatprep.subr.mxu0 0.0
    %5362 = vmatpush1.msra.mxu0 0.0
    %5363 = vmatprep.subr.mxu0 0.0
    %5364 = vmatpush1.msra.mxu0 0.0
    %5365 = vmatprep.subr.mxu0 0.0
    %5366 = vmatpush1.msra.mxu0 0.0
    %5367 = vmatprep.subr.mxu0 0.0
    %5368 = vmatpush1.msra.mxu0 0.0
    %5369 = vmatprep.subr.mxu0 0.0
    %5370 = vmatpush1.msra.mxu0 0.0
    %5371 = vmatprep.subr.mxu0 0.0
    %5372 = vmatpush1.msra.mxu0 0.0
    %5373 = vmatprep.subr.mxu0 0.0
    %5374 = vmatpush1.msra.mxu0 0.0
    %5375 = vmatprep.subr.mxu0 0.0
    %5376 = vmatpush1.msra.mxu0 0.0
    %5377 = vmatprep.subr.mxu0 0.0
    %5378 = vmatpush1.msra.mxu0 0.0
    %5379 = vmatprep.subr.mxu0 0.0
    %5380 = vmatpush1.msra.mxu0 0.0
    %5381 = vmatprep.subr.mxu0 0.0
    %5382 = vmatpush1.msra.mxu0 0.0
    %5383 = vmatprep.subr.mxu0 0.0
    %5384 = vmatpush1.msra.mxu0 0.0
    %5385 = vmatprep.subr.mxu0 0.0
    %5386 = vmatpush1.msra.mxu0 0.0
    %5387 = vmatprep.subr.mxu0 0.0
    %5388 = vmatpush1.msra.mxu0 0.0
    %5389 = vmatprep.subr.mxu0 0.0
    %5390 = vmatpush1.msra.mxu0 0.0
    %5391 = vmatprep.mubr.f32.mxu0 0.0
    %5392 = vmatmul.mubr.f32.gmra.mrb[0].mxu0 %v5322
    %v5393 = vpop.f32.mrb[0].mxu0
    %v5394 = vadd.f32 %v5319, %v5393
    %v5395 = vpop.f32.mrb[0].mxu0
    %5396 = vmatprep.mubr.f32.mxu0 0.0
    %5397 = vmatmul.mubr.f32.gmra.mrb[0].mxu0 %v5325
    %v5398 = vpop.f32.mrb[0].mxu0
    %v5399 = vadd.f32 %v5319, %v5398
    %v5400 = vpop.f32.mrb[0].mxu0
    %5401 = vdwg.mxu0
    %5402 = vst.msk [vmem:[#allocation10] sm:$0xff] %vm93, %v5394
    %5403 = vst.msk [vmem:[#allocation10 + $0x8] sm:$0xff] %vm93, %v5399
    // Predicated region
    $region38: #{tpu_custom_call.1} parent=1 // pred_check
      _
    $region39: #{tpu_custom_call.1} parent=1 // pred_check_branch
      %5405 = sbr.rel (0) target = $region41
    $region40: #{tpu_custom_call.1} parent=1 // pred_region
      %s5407 = ssub.s32 256, 256
      %5408 = vsyncadd [#allocation4], %s5407
      %s5409 = sshll.u32 [#allocation10], 4
      %s5410 = int_to_ptr.vmem [resolvable:$true] %s5409
      %5415 = dma.vmem_to_hbm [thread:$0]  %s5410, 256, %s5, [#allocation4], 128, 128, 8
    $region41: #{tpu_custom_call.1} parent=1 // pred_fallthru
      _
    // Predicated region
    $region42: #{tpu_custom_call.1} parent=1 // pred_check
      _
    $region43: #{tpu_custom_call.1} parent=1 // pred_check_branch
      %5417 = sbr.rel (0) target = $region45
    $region44: #{tpu_custom_call.1} parent=1 // pred_region
      %5418 = dma.done [#allocation4], 256
    $region45: #{tpu_custom_call.1} parent=1 // pred_fallthru
      _
    %5419 = vsyncpa [#allocation3], 1
    %5420 = vsyncpa [#allocation6], 1
    %5421 = vsyncpa [#allocation9], 1
    %5422 = vsyncpa [#allocation4], 1

</llo_original>
